<compile_context>
chip_gen: v7x
topology: tpu7x:2x2x1
jax: 0.10.0
libtpu: 0.0.40
codegen_flags: <defaults>
</compile_context>

<pallas_src>
import math

import jax
import jax.numpy as jnp
from jax.experimental import pallas as pl
from jax.experimental.pallas import tpu as pltpu

# ----------------------------- config (small BERT) -----------------------------
BATCH = 2
SEQ = 8
HIDDEN = 128
NUM_HEADS = 2
HEAD_DIM = HIDDEN // NUM_HEADS
INTERMEDIATE = 4 * HIDDEN
NUM_LAYERS = 2
VOCAB = 128
MAX_POS = 64
TYPE_VOCAB = 2
LN_EPS = 1e-12

PAD_HEAD = 128                               # each head padded to a full lane tile
QKV_COLS = 3 * NUM_HEADS * PAD_HEAD          # 768
CTX_COLS = NUM_HEADS * PAD_HEAD              # 256
GROUPS = BATCH * NUM_HEADS                   # packed (batch, head) groups
PACKED_ROWS = GROUPS * SEQ                   # 32

_VMEM = pl.BlockSpec(memory_space=pltpu.MemorySpace.VMEM)
_NUM_INPUTS = 20


# ----------------------------- fused Pallas kernel ------------------------------
def _bert_fused_kernel(emb_ref, bias_ref, ln0g_ref, ln0b_ref,
                       wqkv_ref, bqkv_ref, wo_ref, bo_ref, ln1g_ref, ln1b_ref,
                       wi_ref, bi_ref, wd_ref, bd_ref, ln2g_ref, ln2b_ref,
                       pw_ref, pb_ref, ow_ref, ob_ref, out_ref):
    """Whole BERT forward (post embedding-gather) with VMEM/register-resident
    activations.

    emb:  [B*S, H] f32
    bias: [B*NH*S, B*NH*S] f32 additive attention bias (block-diag + key pad)
    Per-layer matmul weights are stacked with a leading L axis (bf16); biases /
    LN params are f32.  Output: [B*S, 128] f32, per-row logit broadcast over
    lanes (CLS rows selected outside).
    """

    def ln(x, g, b):
        mu = jnp.mean(x, axis=-1, keepdims=True)
        var = jnp.mean(jnp.square(x - mu), axis=-1, keepdims=True)
        return (x - mu) * jax.lax.rsqrt(var + LN_EPS) * g + b

    def gelu_tanh(x):
        # tanh-approx GELU (EUP slot); ~1e-3 from HF's exact erf gelu.
        c = 0.7978845608028654  # sqrt(2/pi)
        return 0.5 * x * (1.0 + jnp.tanh(c * (x + 0.044715 * x * x * x)))

    def pack_part(qkv, part):
        # [B*S, 3*NH*128] -> [B*NH*S, 128]; row (b, head, s).
        # All slices are sublane-tile (8-row) and lane-tile (128-col) aligned.
        blocks = []
        for b in range(BATCH):
            for hh in range(NUM_HEADS):
                c0 = (part * NUM_HEADS + hh) * PAD_HEAD
                blocks.append(qkv[b * SEQ:(b + 1) * SEQ, c0:c0 + PAD_HEAD])
        return jnp.concatenate(blocks, axis=0)

    def unpack_ctx(ctx_p):
        # [B*NH*S, 128] -> [B*S, NH*128]; aligned slices + concats only,
        # everything stays in registers (no VMEM scratch round-trip).
        heads = []
        for hh in range(NUM_HEADS):
            rows = [ctx_p[(b * NUM_HEADS + hh) * SEQ:(b * NUM_HEADS + hh + 1) * SEQ, :]
                    for b in range(BATCH)]
            heads.append(jnp.concatenate(rows, axis=0))       # [B*S, 128]
        return jnp.concatenate(heads, axis=1)                  # [B*S, NH*128]

    # --- embedding LayerNorm ---
    h = ln(emb_ref[...], ln0g_ref[...], ln0b_ref[...])         # [B*S, H] f32
    attn_bias = bias_ref[...]                                   # [32, 32] f32

    # Layers unrolled in Python (static trip count = NUM_LAYERS).
    for l in range(NUM_LAYERS):
        # fused (head-padded) QKV projection: one MXU pass, bf16 in / f32 acc.
        h_bf = h.astype(jnp.bfloat16)                           # cast once
        qkv = jnp.dot(h_bf, wqkv_ref[l],
                      preferred_element_type=jnp.float32) + bqkv_ref[l]   # [B*S, 768]

        # pack to [(B*NH)*S, 128]; padded lanes are exactly zero (zero weight
        # columns + zero bias), so they contribute nothing to the matmuls.
        q_p = pack_part(qkv, 0).astype(jnp.bfloat16)
        k_p = pack_part(qkv, 1).astype(jnp.bfloat16)
        v_p = pack_part(qkv, 2).astype(jnp.bfloat16)

        # ONE block-diagonal QK^T over all (batch, head) groups.
        # 1/sqrt(HEAD_DIM) is folded into W_q at init -> no scale multiply here.
        s = jax.lax.dot_general(q_p, k_p, (((1,), (1,)), ((), ())),
                                preferred_element_type=jnp.float32)       # [32, 32]
        s = s + attn_bias
        s = s - jnp.max(s, axis=-1, keepdims=True)
        p = jnp.exp(s)
        p = p * pl.reciprocal(jnp.sum(p, axis=-1, keepdims=True), approx=True)

        # ONE PV matmul; ctx stays in registers.
        ctx_p = jnp.dot(p.astype(jnp.bfloat16), v_p,
                        preferred_element_type=jnp.float32)               # [32, 128]
        ctx = unpack_ctx(ctx_p)                                           # [B*S, 256]

        # output projection (W_o rows padded to match the packed ctx layout).
        attn_out = jnp.dot(ctx.astype(jnp.bfloat16), wo_ref[l],
                           preferred_element_type=jnp.float32) + bo_ref[l]
        h = ln(attn_out + h, ln1g_ref[l], ln1b_ref[l])

        # FFN
        h_bf = h.astype(jnp.bfloat16)                           # cast once
        inter = gelu_tanh(jnp.dot(h_bf, wi_ref[l],
                                  preferred_element_type=jnp.float32) + bi_ref[l])
        ffn = jnp.dot(inter.astype(jnp.bfloat16), wd_ref[l],
                      preferred_element_type=jnp.float32) + bd_ref[l]
        h = ln(ffn + h, ln2g_ref[l], ln2b_ref[l])

    # --- pooler + classifier (fused) ---
    # Pooler runs over all B*S rows (one tiny dense MXU pass, no single-row
    # slices / sublane shuffles); CLS rows are selected outside the kernel.
    pooled = jnp.tanh(jnp.dot(h.astype(jnp.bfloat16), pw_ref[...],
                              preferred_element_type=jnp.float32) + pb_ref[...])
    # TODO(synk): nn.Dropout(config.DROP_OUT) is the identity at inference (eval).
    # HIDDEN -> 1 projection as a VPU row-reduce; logit broadcast across 128
    # lanes so the output store is a full unmasked vst.
    logit = jnp.sum(pooled * ow_ref[...], axis=-1, keepdims=True) + ob_ref[...]
    out_ref[...] = jnp.broadcast_to(logit, (BATCH * SEQ, 128))


# ----------------------------- model wrapper -------------------------------------
def bert_forward(params, ids, mask, token_type_ids):
    b, s = ids.shape
    # embedding gathers stay in XLA (data-dependent row gather); sum is trivial.
    we = jnp.take(params["word_emb"], ids, axis=0)                       # [B,S,H]
    pe = params["pos_emb"][:s][None, :, :]                               # [1,S,H]
    te = jnp.take(params["type_emb"], token_type_ids, axis=0)            # [B,S,H]
    emb = (we + pe + te).reshape(b * s, HIDDEN).astype(jnp.float32)

    # Combined additive attention bias over the packed [(B*NH)*S] layout:
    # 0 where (same batch, same head) AND the key token is not padded,
    # -1e9 everywhere else.  Built once in XLA, consumed directly in-kernel.
    mask_f = mask.astype(jnp.float32)
    groups = b * NUM_HEADS
    same_group = jnp.kron(jnp.eye(groups, dtype=jnp.float32),
                          jnp.ones((s, s), jnp.float32))                 # [G*S, G*S]
    key_ok = jnp.repeat(mask_f, NUM_HEADS, axis=0).reshape(1, groups * s)
    attn_bias = (1.0 - same_group * key_ok) * (-1e9)                     # [32, 32]

    padded = pl.pallas_call(
        _bert_fused_kernel,
        out_shape=jax.ShapeDtypeStruct((b * s, 128), jnp.float32),
        in_specs=[_VMEM] * _NUM_INPUTS,
        out_specs=_VMEM,
    )(emb, attn_bias,
      params["emb_ln_g"], params["emb_ln_b"],
      params["w_qkv"], params["b_qkv"],
      params["w_o"], params["b_o"],
      params["ln1_g"], params["ln1_b"],
      params["w_i"], params["b_i"],
      params["w_d"], params["b_d"],
      params["ln2_g"], params["ln2_b"],
      params["pooler_w"], params["pooler_b"],
      params["out_w"], params["out_b"])

    # CLS row + first lane per sequence -> [B, 1]
    return padded.reshape(b, s, 128)[:, 0, :1]


# ----------------------------- pure-JAX reference --------------------------------
def bert_reference(params, ids, mask, token_type_ids):
    """f32 reference (exact erf GELU / exact softmax) over the same weights."""
    b, s = ids.shape
    we = jnp.take(params["word_emb"], ids, axis=0)
    pe = params["pos_emb"][:s][None, :, :]
    te = jnp.take(params["type_emb"], token_type_ids, axis=0)
    x = (we + pe + te).astype(jnp.float32)                                # [B,S,H]

    def ln(t, g, beta):
        mu = jnp.mean(t, -1, keepdims=True)
        var = jnp.mean(jnp.square(t - mu), -1, keepdims=True)
        return (t - mu) * jax.lax.rsqrt(var + LN_EPS) * g.reshape(-1) + beta.reshape(-1)

    def strip_cols(w_pad, part):      # [H, 3*NH*128] -> [H, H] for part in {Q,K,V}
        return jnp.concatenate(
            [w_pad[:, (part * NUM_HEADS + hh) * PAD_HEAD:
                      (part * NUM_HEADS + hh) * PAD_HEAD + HEAD_DIM]
             for hh in range(NUM_HEADS)], axis=1)

    h = ln(x, params["emb_ln_g"], params["emb_ln_b"])
    add_mask = (1.0 - mask.astype(jnp.float32))[:, None, None, :] * (-1e9)

    for l in range(NUM_LAYERS):
        wqkv = params["w_qkv"][l].astype(jnp.float32)
        bqkv = params["b_qkv"][l]
        q = h @ strip_cols(wqkv, 0) + strip_cols(bqkv, 0)
        k = h @ strip_cols(wqkv, 1) + strip_cols(bqkv, 1)
        v = h @ strip_cols(wqkv, 2) + strip_cols(bqkv, 2)

        def split(t):
            return t.reshape(b, s, NUM_HEADS, HEAD_DIM).transpose(0, 2, 1, 3)

        qh, kh, vh = split(q), split(k), split(v)
        scores = jnp.einsum("bhid,bhjd->bhij", qh, kh) + add_mask   # scale folded in W_q
        probs = jax.nn.softmax(scores, axis=-1)
        ctx = jnp.einsum("bhij,bhjd->bhid", probs, vh)
        ctx = ctx.transpose(0, 2, 1, 3).reshape(b, s, HIDDEN)

        wo_pad = params["w_o"][l].astype(jnp.float32)               # [NH*128, H]
        wo = jnp.concatenate([wo_pad[hh * PAD_HEAD:hh * PAD_HEAD + HEAD_DIM, :]
                              for hh in range(NUM_HEADS)], axis=0)  # [H, H]
        attn_out = ctx @ wo + params["b_o"][l]
        h = ln(attn_out + h, params["ln1_g"][l], params["ln1_b"][l])

        inter = jax.nn.gelu(h @ params["w_i"][l].astype(jnp.float32) + params["b_i"][l],
                            approximate=False)
        ffn = inter @ params["w_d"][l].astype(jnp.float32) + params["b_d"][l]
        h = ln(ffn + h, params["ln2_g"][l], params["ln2_b"][l])

    pooled = jnp.tanh(h[:, 0, :] @ params["pooler_w"].astype(jnp.float32)
                      + params["pooler_b"])
    return pooled @ params["out_w"].T + params["out_b"]


# ----------------------------- deterministic init --------------------------------
def init_params(key):
    def nrm(k, shape):
        return jax.random.normal(k, shape, dtype=jnp.float32) * 0.02

    scale = 1.0 / math.sqrt(HEAD_DIM)
    it = iter(jax.random.split(key, 5 + NUM_LAYERS * 6))
    word = nrm(next(it), (VOCAB, HIDDEN))
    pos = nrm(next(it), (MAX_POS, HIDDEN))
    typ = nrm(next(it), (TYPE_VOCAB, HIDDEN))
    pooler_w = nrm(next(it), (HIDDEN, HIDDEN))
    out_w = nrm(next(it), (1, HIDDEN))          # transposed Linear(H,1) weight (lane-dense)

    def pad_cols(w):   # [H, HEAD_DIM] -> [H, PAD_HEAD] (zero-padded lanes)
        return jnp.pad(w, ((0, 0), (0, PAD_HEAD - HEAD_DIM)))

    wqkv, wo, wi, wd = [], [], [], []
    for _ in range(NUM_LAYERS):
        # 1/sqrt(HEAD_DIM) folded into W_q at init (b_q is zero) -> free.
        wq = nrm(next(it), (HIDDEN, HIDDEN)) * scale
        wk = nrm(next(it), (HIDDEN, HIDDEN))
        wv = nrm(next(it), (HIDDEN, HIDDEN))
        wo_l = nrm(next(it), (HIDDEN, HIDDEN))
        # per-head columns padded to full 128-lane tiles, part-major ordering
        # [Q_h0 | Q_h1 | K_h0 | K_h1 | V_h0 | V_h1], each 128 wide.
        cols = []
        for w in (wq, wk, wv):
            for hh in range(NUM_HEADS):
                cols.append(pad_cols(w[:, hh * HEAD_DIM:(hh + 1) * HEAD_DIM]))
        wqkv.append(jnp.concatenate(cols, axis=1))                  # [H, 768]
        # W_o rows padded to match the packed ctx layout: [NH*128, H]
        rows = []
        for hh in range(NUM_HEADS):
            blk = wo_l[hh * HEAD_DIM:(hh + 1) * HEAD_DIM, :]        # [64, H]
            rows.append(jnp.pad(blk, ((0, PAD_HEAD - HEAD_DIM), (0, 0))))
        wo.append(jnp.concatenate(rows, axis=0))                    # [256, H]
        wi.append(nrm(next(it), (HIDDEN, INTERMEDIATE)))
        wd.append(nrm(next(it), (INTERMEDIATE, HIDDEN)))

    return {
        "word_emb": word,
        "pos_emb": pos,
        "type_emb": typ,
        "emb_ln_g": jnp.ones((1, HIDDEN), jnp.float32),
        "emb_ln_b": jnp.zeros((1, HIDDEN), jnp.float32),
        # matmul weights stored bf16 (MXU inputs); biases / LN params f32.
        "w_qkv": jnp.stack(wqkv).astype(jnp.bfloat16),              # [L,H,3*NH*128]
        "b_qkv": jnp.zeros((NUM_LAYERS, 1, QKV_COLS), jnp.float32),
        "w_o": jnp.stack(wo).astype(jnp.bfloat16),                  # [L,NH*128,H]
        "b_o": jnp.zeros((NUM_LAYERS, 1, HIDDEN), jnp.float32),
        "ln1_g": jnp.ones((NUM_LAYERS, 1, HIDDEN), jnp.float32),
        "ln1_b": jnp.zeros((NUM_LAYERS, 1, HIDDEN), jnp.float32),
        "w_i": jnp.stack(wi).astype(jnp.bfloat16),                  # [L,H,I]
        "b_i": jnp.zeros((NUM_LAYERS, 1, INTERMEDIATE), jnp.float32),
        "w_d": jnp.stack(wd).astype(jnp.bfloat16),                  # [L,I,H]
        "b_d": jnp.zeros((NUM_LAYERS, 1, HIDDEN), jnp.float32),
        "ln2_g": jnp.ones((NUM_LAYERS, 1, HIDDEN), jnp.float32),
        "ln2_b": jnp.zeros((NUM_LAYERS, 1, HIDDEN), jnp.float32),
        "pooler_w": pooler_w.astype(jnp.bfloat16),
        "pooler_b": jnp.zeros((1, HIDDEN), jnp.float32),
        "out_w": out_w,
        "out_b": jnp.zeros((1, 1), jnp.float32),
    }


# ----------------------------- main ----------------------------------------------
if __name__ == "__main__":
    root = jax.random.PRNGKey(0)
    k_params, k_ids, k_types = jax.random.split(root, 3)

    params = init_params(k_params)

    ids = jax.random.randint(k_ids, (BATCH, SEQ), 0, VOCAB, dtype=jnp.int32)
    token_type_ids = jax.random.randint(k_types, (BATCH, SEQ), 0, TYPE_VOCAB,
                                        dtype=jnp.int32)
    # attention mask: second sequence padded after 6 tokens
    mask = jnp.ones((BATCH, SEQ), dtype=jnp.int32)
    mask = mask.at[1, 6:].set(0)

    fwd = jax.jit(bert_forward)
    logits = fwd(params, ids, mask, token_type_ids)
    jax.block_until_ready(logits)

    # tolerance check vs f32 pure-JAX reference (bf16 matmuls + tanh-GELU +
    # approx reciprocal => loose tolerance, not bit-parity).
    ref = jax.jit(bert_reference)(params, ids, mask, token_type_ids)
    jax.block_until_ready(ref)

    assert logits.shape == (BATCH, 1), logits.shape
    assert logits.dtype == jnp.float32
    assert bool(jnp.all(jnp.isfinite(logits)))
    assert bool(jnp.allclose(logits, ref, atol=1e-2)), (logits, ref)
    print("KERNEL_OK")
</pallas_src>

<mosaic_0001>
module attributes {stable_mosaic.version = 11 : i64} {
  func.func @_bert_fused_kernel(%arg0: memref<16x128xf32, #tpu.memory_space<vmem>>, %arg1: memref<32x32xf32, #tpu.memory_space<vmem>>, %arg2: memref<1x128xf32, #tpu.memory_space<vmem>>, %arg3: memref<1x128xf32, #tpu.memory_space<vmem>>, %arg4: memref<2x128x768xbf16, #tpu.memory_space<vmem>>, %arg5: memref<2x1x768xf32, #tpu.memory_space<vmem>>, %arg6: memref<2x256x128xbf16, #tpu.memory_space<vmem>>, %arg7: memref<2x1x128xf32, #tpu.memory_space<vmem>>, %arg8: memref<2x1x128xf32, #tpu.memory_space<vmem>>, %arg9: memref<2x1x128xf32, #tpu.memory_space<vmem>>, %arg10: memref<2x128x512xbf16, #tpu.memory_space<vmem>>, %arg11: memref<2x1x512xf32, #tpu.memory_space<vmem>>, %arg12: memref<2x512x128xbf16, #tpu.memory_space<vmem>>, %arg13: memref<2x1x128xf32, #tpu.memory_space<vmem>>, %arg14: memref<2x1x128xf32, #tpu.memory_space<vmem>>, %arg15: memref<2x1x128xf32, #tpu.memory_space<vmem>>, %arg16: memref<128x128xbf16, #tpu.memory_space<vmem>>, %arg17: memref<1x128xf32, #tpu.memory_space<vmem>>, %arg18: memref<1x128xf32, #tpu.memory_space<vmem>>, %arg19: memref<1x1xf32, #tpu.memory_space<vmem>>, %arg20: memref<16x128xf32, #tpu.memory_space<vmem>>) attributes {dimension_semantics = [], scalar_prefetch = 0 : i64, scratch_operands = 0 : i64, tpu.core_type = #tpu.core_type<tc>} {
    %c0 = arith.constant 0 : index
    %c0_0 = arith.constant 0 : index
    %0 = vector.load %arg0[%c0, %c0_0] : memref<16x128xf32, #tpu.memory_space<vmem>>, vector<16x128xf32>
    %c0_1 = arith.constant 0 : index
    %c0_2 = arith.constant 0 : index
    %1 = vector.load %arg2[%c0_1, %c0_2] : memref<1x128xf32, #tpu.memory_space<vmem>>, vector<1x128xf32>
    %c0_3 = arith.constant 0 : index
    %c0_4 = arith.constant 0 : index
    %2 = vector.load %arg3[%c0_3, %c0_4] : memref<1x128xf32, #tpu.memory_space<vmem>>, vector<1x128xf32>
    %cst = arith.constant dense<0.000000e+00> : vector<16xf32>
    %3 = vector.multi_reduction <add>, %0, %cst [1] : vector<16x128xf32> to vector<16xf32>
    %4 = vector.shape_cast %3 : vector<16xf32> to vector<16x1xf32>
    %cst_5 = arith.constant 1.280000e+02 : f32
    %5 = vector.broadcast %cst_5 : f32 to vector<16x1xf32>
    %6 = arith.divf %4, %5 : vector<16x1xf32>
    %7 = vector.broadcast %6 : vector<16x1xf32> to vector<16x128xf32>
    %8 = arith.subf %0, %7 : vector<16x128xf32>
    %9 = arith.mulf %8, %8 : vector<16x128xf32>
    %cst_6 = arith.constant dense<0.000000e+00> : vector<16xf32>
    %10 = vector.multi_reduction <add>, %9, %cst_6 [1] : vector<16x128xf32> to vector<16xf32>
    %11 = vector.shape_cast %10 : vector<16xf32> to vector<16x1xf32>
    %cst_7 = arith.constant 1.280000e+02 : f32
    %12 = vector.broadcast %cst_7 : f32 to vector<16x1xf32>
    %13 = arith.divf %11, %12 : vector<16x1xf32>
    %14 = vector.broadcast %6 : vector<16x1xf32> to vector<16x128xf32>
    %15 = arith.subf %0, %14 : vector<16x128xf32>
    %cst_8 = arith.constant 9.99999996E-13 : f32
    %16 = vector.broadcast %cst_8 : f32 to vector<16x1xf32>
    %17 = arith.addf %13, %16 : vector<16x1xf32>
    %18 = math.rsqrt %17 : vector<16x1xf32>
    %19 = vector.broadcast %18 : vector<16x1xf32> to vector<16x128xf32>
    %20 = arith.mulf %15, %19 : vector<16x128xf32>
    %21 = vector.broadcast %1 : vector<1x128xf32> to vector<16x128xf32>
    %22 = arith.mulf %20, %21 : vector<16x128xf32>
    %23 = vector.broadcast %2 : vector<1x128xf32> to vector<16x128xf32>
    %24 = arith.addf %22, %23 : vector<16x128xf32>
    %c0_9 = arith.constant 0 : index
    %c0_10 = arith.constant 0 : index
    %25 = vector.load %arg1[%c0_9, %c0_10] : memref<32x32xf32, #tpu.memory_space<vmem>>, vector<32x32xf32>
    %26 = arith.truncf %24 : vector<16x128xf32> to vector<16x128xbf16>
    %c0_11 = arith.constant 0 : index
    %c0_12 = arith.constant 0 : index
    %c0_13 = arith.constant 0 : index
    %27 = vector.load %arg4[%c0_11, %c0_12, %c0_13] : memref<2x128x768xbf16, #tpu.memory_space<vmem>>, vector<1x128x768xbf16>
    %28 = vector.shape_cast %27 : vector<1x128x768xbf16> to vector<128x768xbf16>
    %cst_14 = arith.constant dense<0.000000e+00> : vector<16x768xf32>
    %29 = tpu.matmul %26, %28, %cst_14 {dimension_numbers = #tpu.dot_dimension_numbers<[1], [0], [0], [1], [0, 0, 1, 1], [], []>} : vector<16x128xbf16>, vector<128x768xbf16>, vector<16x768xf32> -> vector<16x768xf32>
    %c0_15 = arith.constant 0 : index
    %c0_16 = arith.constant 0 : index
    %c0_17 = arith.constant 0 : index
    %30 = vector.load %arg5[%c0_15, %c0_16, %c0_17] : memref<2x1x768xf32, #tpu.memory_space<vmem>>, vector<1x1x768xf32>
    %31 = vector.shape_cast %30 : vector<1x1x768xf32> to vector<1x768xf32>
    %32 = vector.broadcast %31 : vector<1x768xf32> to vector<16x768xf32>
    %33 = arith.addf %29, %32 : vector<16x768xf32>
    %34 = vector.extract_strided_slice %33 {offsets = [0, 0], sizes = [8, 128], strides = [1, 1]} : vector<16x768xf32> to vector<8x128xf32>
    %35 = vector.extract_strided_slice %33 {offsets = [0, 128], sizes = [8, 128], strides = [1, 1]} : vector<16x768xf32> to vector<8x128xf32>
    %36 = vector.extract_strided_slice %33 {offsets = [8, 0], sizes = [8, 128], strides = [1, 1]} : vector<16x768xf32> to vector<8x128xf32>
    %37 = vector.extract_strided_slice %33 {offsets = [8, 128], sizes = [8, 128], strides = [1, 1]} : vector<16x768xf32> to vector<8x128xf32>
    %38 = tpu.concatenate %34, %35, %36, %37 in 0 : vector<8x128xf32>, vector<8x128xf32>, vector<8x128xf32>, vector<8x128xf32> -> vector<32x128xf32>
    %39 = arith.truncf %38 : vector<32x128xf32> to vector<32x128xbf16>
    %40 = vector.extract_strided_slice %33 {offsets = [0, 256], sizes = [8, 128], strides = [1, 1]} : vector<16x768xf32> to vector<8x128xf32>
    %41 = vector.extract_strided_slice %33 {offsets = [0, 384], sizes = [8, 128], strides = [1, 1]} : vector<16x768xf32> to vector<8x128xf32>
    %42 = vector.extract_strided_slice %33 {offsets = [8, 256], sizes = [8, 128], strides = [1, 1]} : vector<16x768xf32> to vector<8x128xf32>
    %43 = vector.extract_strided_slice %33 {offsets = [8, 384], sizes = [8, 128], strides = [1, 1]} : vector<16x768xf32> to vector<8x128xf32>
    %44 = tpu.concatenate %40, %41, %42, %43 in 0 : vector<8x128xf32>, vector<8x128xf32>, vector<8x128xf32>, vector<8x128xf32> -> vector<32x128xf32>
    %45 = arith.truncf %44 : vector<32x128xf32> to vector<32x128xbf16>
    %46 = vector.extract_strided_slice %33 {offsets = [0, 512], sizes = [8, 128], strides = [1, 1]} : vector<16x768xf32> to vector<8x128xf32>
    %47 = vector.extract_strided_slice %33 {offsets = [0, 640], sizes = [8, 128], strides = [1, 1]} : vector<16x768xf32> to vector<8x128xf32>
    %48 = vector.extract_strided_slice %33 {offsets = [8, 512], sizes = [8, 128], strides = [1, 1]} : vector<16x768xf32> to vector<8x128xf32>
    %49 = vector.extract_strided_slice %33 {offsets = [8, 640], sizes = [8, 128], strides = [1, 1]} : vector<16x768xf32> to vector<8x128xf32>
    %50 = tpu.concatenate %46, %47, %48, %49 in 0 : vector<8x128xf32>, vector<8x128xf32>, vector<8x128xf32>, vector<8x128xf32> -> vector<32x128xf32>
    %51 = arith.truncf %50 : vector<32x128xf32> to vector<32x128xbf16>
    %cst_18 = arith.constant dense<0.000000e+00> : vector<32x32xf32>
    %52 = tpu.matmul %39, %45, %cst_18 {dimension_numbers = #tpu.dot_dimension_numbers<[1], [1], [0], [0], [0, 0, 1, 0], [], []>} : vector<32x128xbf16>, vector<32x128xbf16>, vector<32x32xf32> -> vector<32x32xf32>
    %53 = arith.addf %52, %25 : vector<32x32xf32>
    %cst_19 = arith.constant dense<0xFF800000> : vector<32xf32>
    %54 = vector.multi_reduction <maximumf>, %53, %cst_19 [1] : vector<32x32xf32> to vector<32xf32>
    %55 = vector.shape_cast %54 : vector<32xf32> to vector<32x1xf32>
    %56 = vector.broadcast %55 : vector<32x1xf32> to vector<32x32xf32>
    %57 = arith.subf %53, %56 : vector<32x32xf32>
    %58 = math.exp %57 : vector<32x32xf32>
    %cst_20 = arith.constant dense<0.000000e+00> : vector<32xf32>
    %59 = vector.multi_reduction <add>, %58, %cst_20 [1] : vector<32x32xf32> to vector<32xf32>
    %60 = vector.shape_cast %59 : vector<32xf32> to vector<32x1xf32>
    %61 = tpu.reciprocal %60 {approx = true} : vector<32x1xf32> -> vector<32x1xf32>
    %62 = vector.broadcast %61 : vector<32x1xf32> to vector<32x32xf32>
    %63 = arith.mulf %58, %62 : vector<32x32xf32>
    %64 = arith.truncf %63 : vector<32x32xf32> to vector<32x32xbf16>
    %cst_21 = arith.constant dense<0.000000e+00> : vector<32x128xf32>
    %65 = tpu.matmul %64, %51, %cst_21 {dimension_numbers = #tpu.dot_dimension_numbers<[1], [0], [0], [1], [0, 0, 1, 1], [], []>} : vector<32x32xbf16>, vector<32x128xbf16>, vector<32x128xf32> -> vector<32x128xf32>
    %66 = vector.extract_strided_slice %65 {offsets = [0, 0], sizes = [8, 128], strides = [1, 1]} : vector<32x128xf32> to vector<8x128xf32>
    %67 = vector.extract_strided_slice %65 {offsets = [16, 0], sizes = [8, 128], strides = [1, 1]} : vector<32x128xf32> to vector<8x128xf32>
    %68 = tpu.concatenate %66, %67 in 0 : vector<8x128xf32>, vector<8x128xf32> -> vector<16x128xf32>
    %69 = vector.extract_strided_slice %65 {offsets = [8, 0], sizes = [8, 128], strides = [1, 1]} : vector<32x128xf32> to vector<8x128xf32>
    %70 = vector.extract_strided_slice %65 {offsets = [24, 0], sizes = [8, 128], strides = [1, 1]} : vector<32x128xf32> to vector<8x128xf32>
    %71 = tpu.concatenate %69, %70 in 0 : vector<8x128xf32>, vector<8x128xf32> -> vector<16x128xf32>
    %72 = tpu.concatenate %68, %71 in 1 : vector<16x128xf32>, vector<16x128xf32> -> vector<16x256xf32>
    %73 = arith.truncf %72 : vector<16x256xf32> to vector<16x256xbf16>
    %c0_22 = arith.constant 0 : index
    %c0_23 = arith.constant 0 : index
    %c0_24 = arith.constant 0 : index
    %74 = vector.load %arg6[%c0_22, %c0_23, %c0_24] : memref<2x256x128xbf16, #tpu.memory_space<vmem>>, vector<1x256x128xbf16>
    %75 = vector.shape_cast %74 : vector<1x256x128xbf16> to vector<256x128xbf16>
    %cst_25 = arith.constant dense<0.000000e+00> : vector<16x128xf32>
    %76 = tpu.matmul %73, %75, %cst_25 {dimension_numbers = #tpu.dot_dimension_numbers<[1], [0], [0], [1], [0, 0, 1, 1], [], []>} : vector<16x256xbf16>, vector<256x128xbf16>, vector<16x128xf32> -> vector<16x128xf32>
    %c0_26 = arith.constant 0 : index
    %c0_27 = arith.constant 0 : index
    %c0_28 = arith.constant 0 : index
    %77 = vector.load %arg7[%c0_26, %c0_27, %c0_28] : memref<2x1x128xf32, #tpu.memory_space<vmem>>, vector<1x1x128xf32>
    %78 = vector.shape_cast %77 : vector<1x1x128xf32> to vector<1x128xf32>
    %79 = vector.broadcast %78 : vector<1x128xf32> to vector<16x128xf32>
    %80 = arith.addf %76, %79 : vector<16x128xf32>
    %81 = arith.addf %80, %24 : vector<16x128xf32>
    %c0_29 = arith.constant 0 : index
    %c0_30 = arith.constant 0 : index
    %c0_31 = arith.constant 0 : index
    %82 = vector.load %arg8[%c0_29, %c0_30, %c0_31] : memref<2x1x128xf32, #tpu.memory_space<vmem>>, vector<1x1x128xf32>
    %83 = vector.shape_cast %82 : vector<1x1x128xf32> to vector<1x128xf32>
    %c0_32 = arith.constant 0 : index
    %c0_33 = arith.constant 0 : index
    %c0_34 = arith.constant 0 : index
    %84 = vector.load %arg9[%c0_32, %c0_33, %c0_34] : memref<2x1x128xf32, #tpu.memory_space<vmem>>, vector<1x1x128xf32>
    %85 = vector.shape_cast %84 : vector<1x1x128xf32> to vector<1x128xf32>
    %cst_35 = arith.constant dense<0.000000e+00> : vector<16xf32>
    %86 = vector.multi_reduction <add>, %81, %cst_35 [1] : vector<16x128xf32> to vector<16xf32>
    %87 = vector.shape_cast %86 : vector<16xf32> to vector<16x1xf32>
    %cst_36 = arith.constant 1.280000e+02 : f32
    %88 = vector.broadcast %cst_36 : f32 to vector<16x1xf32>
    %89 = arith.divf %87, %88 : vector<16x1xf32>
    %90 = vector.broadcast %89 : vector<16x1xf32> to vector<16x128xf32>
    %91 = arith.subf %81, %90 : vector<16x128xf32>
    %92 = arith.mulf %91, %91 : vector<16x128xf32>
    %cst_37 = arith.constant dense<0.000000e+00> : vector<16xf32>
    %93 = vector.multi_reduction <add>, %92, %cst_37 [1] : vector<16x128xf32> to vector<16xf32>
    %94 = vector.shape_cast %93 : vector<16xf32> to vector<16x1xf32>
    %cst_38 = arith.constant 1.280000e+02 : f32
    %95 = vector.broadcast %cst_38 : f32 to vector<16x1xf32>
    %96 = arith.divf %94, %95 : vector<16x1xf32>
    %97 = vector.broadcast %89 : vector<16x1xf32> to vector<16x128xf32>
    %98 = arith.subf %81, %97 : vector<16x128xf32>
    %cst_39 = arith.constant 9.99999996E-13 : f32
    %99 = vector.broadcast %cst_39 : f32 to vector<16x1xf32>
    %100 = arith.addf %96, %99 : vector<16x1xf32>
    %101 = math.rsqrt %100 : vector<16x1xf32>
    %102 = vector.broadcast %101 : vector<16x1xf32> to vector<16x128xf32>
    %103 = arith.mulf %98, %102 : vector<16x128xf32>
    %104 = vector.broadcast %83 : vector<1x128xf32> to vector<16x128xf32>
    %105 = arith.mulf %103, %104 : vector<16x128xf32>
    %106 = vector.broadcast %85 : vector<1x128xf32> to vector<16x128xf32>
    %107 = arith.addf %105, %106 : vector<16x128xf32>
    %108 = arith.truncf %107 : vector<16x128xf32> to vector<16x128xbf16>
    %c0_40 = arith.constant 0 : index
    %c0_41 = arith.constant 0 : index
    %c0_42 = arith.constant 0 : index
    %109 = vector.load %arg10[%c0_40, %c0_41, %c0_42] : memref<2x128x512xbf16, #tpu.memory_space<vmem>>, vector<1x128x512xbf16>
    %110 = vector.shape_cast %109 : vector<1x128x512xbf16> to vector<128x512xbf16>
    %cst_43 = arith.constant dense<0.000000e+00> : vector<16x512xf32>
    %111 = tpu.matmul %108, %110, %cst_43 {dimension_numbers = #tpu.dot_dimension_numbers<[1], [0], [0], [1], [0, 0, 1, 1], [], []>} : vector<16x128xbf16>, vector<128x512xbf16>, vector<16x512xf32> -> vector<16x512xf32>
    %c0_44 = arith.constant 0 : index
    %c0_45 = arith.constant 0 : index
    %c0_46 = arith.constant 0 : index
    %112 = vector.load %arg11[%c0_44, %c0_45, %c0_46] : memref<2x1x512xf32, #tpu.memory_space<vmem>>, vector<1x1x512xf32>
    %113 = vector.shape_cast %112 : vector<1x1x512xf32> to vector<1x512xf32>
    %114 = vector.broadcast %113 : vector<1x512xf32> to vector<16x512xf32>
    %115 = arith.addf %111, %114 : vector<16x512xf32>
    %cst_47 = arith.constant 5.000000e-01 : f32
    %116 = vector.broadcast %cst_47 : f32 to vector<16x512xf32>
    %117 = arith.mulf %116, %115 : vector<16x512xf32>
    %cst_48 = arith.constant 4.471500e-02 : f32
    %118 = vector.broadcast %cst_48 : f32 to vector<16x512xf32>
    %119 = arith.mulf %118, %115 : vector<16x512xf32>
    %120 = arith.mulf %119, %115 : vector<16x512xf32>
    %121 = arith.mulf %120, %115 : vector<16x512xf32>
    %122 = arith.addf %115, %121 : vector<16x512xf32>
    %cst_49 = arith.constant 0.797884583 : f32
    %123 = vector.broadcast %cst_49 : f32 to vector<16x512xf32>
    %124 = arith.mulf %123, %122 : vector<16x512xf32>
    %125 = math.tanh %124 : vector<16x512xf32>
    %cst_50 = arith.constant 1.000000e+00 : f32
    %126 = vector.broadcast %cst_50 : f32 to vector<16x512xf32>
    %127 = arith.addf %126, %125 : vector<16x512xf32>
    %128 = arith.mulf %117, %127 : vector<16x512xf32>
    %129 = arith.truncf %128 : vector<16x512xf32> to vector<16x512xbf16>
    %c0_51 = arith.constant 0 : index
    %c0_52 = arith.constant 0 : index
    %c0_53 = arith.constant 0 : index
    %130 = vector.load %arg12[%c0_51, %c0_52, %c0_53] : memref<2x512x128xbf16, #tpu.memory_space<vmem>>, vector<1x512x128xbf16>
    %131 = vector.shape_cast %130 : vector<1x512x128xbf16> to vector<512x128xbf16>
    %cst_54 = arith.constant dense<0.000000e+00> : vector<16x128xf32>
    %132 = tpu.matmul %129, %131, %cst_54 {dimension_numbers = #tpu.dot_dimension_numbers<[1], [0], [0], [1], [0, 0, 1, 1], [], []>} : vector<16x512xbf16>, vector<512x128xbf16>, vector<16x128xf32> -> vector<16x128xf32>
    %c0_55 = arith.constant 0 : index
    %c0_56 = arith.constant 0 : index
    %c0_57 = arith.constant 0 : index
    %133 = vector.load %arg13[%c0_55, %c0_56, %c0_57] : memref<2x1x128xf32, #tpu.memory_space<vmem>>, vector<1x1x128xf32>
    %134 = vector.shape_cast %133 : vector<1x1x128xf32> to vector<1x128xf32>
    %135 = vector.broadcast %134 : vector<1x128xf32> to vector<16x128xf32>
    %136 = arith.addf %132, %135 : vector<16x128xf32>
    %137 = arith.addf %136, %107 : vector<16x128xf32>
    %c0_58 = arith.constant 0 : index
    %c0_59 = arith.constant 0 : index
    %c0_60 = arith.constant 0 : index
    %138 = vector.load %arg14[%c0_58, %c0_59, %c0_60] : memref<2x1x128xf32, #tpu.memory_space<vmem>>, vector<1x1x128xf32>
    %139 = vector.shape_cast %138 : vector<1x1x128xf32> to vector<1x128xf32>
    %c0_61 = arith.constant 0 : index
    %c0_62 = arith.constant 0 : index
    %c0_63 = arith.constant 0 : index
    %140 = vector.load %arg15[%c0_61, %c0_62, %c0_63] : memref<2x1x128xf32, #tpu.memory_space<vmem>>, vector<1x1x128xf32>
    %141 = vector.shape_cast %140 : vector<1x1x128xf32> to vector<1x128xf32>
    %cst_64 = arith.constant dense<0.000000e+00> : vector<16xf32>
    %142 = vector.multi_reduction <add>, %137, %cst_64 [1] : vector<16x128xf32> to vector<16xf32>
    %143 = vector.shape_cast %142 : vector<16xf32> to vector<16x1xf32>
    %cst_65 = arith.constant 1.280000e+02 : f32
    %144 = vector.broadcast %cst_65 : f32 to vector<16x1xf32>
    %145 = arith.divf %143, %144 : vector<16x1xf32>
    %146 = vector.broadcast %145 : vector<16x1xf32> to vector<16x128xf32>
    %147 = arith.subf %137, %146 : vector<16x128xf32>
    %148 = arith.mulf %147, %147 : vector<16x128xf32>
    %cst_66 = arith.constant dense<0.000000e+00> : vector<16xf32>
    %149 = vector.multi_reduction <add>, %148, %cst_66 [1] : vector<16x128xf32> to vector<16xf32>
    %150 = vector.shape_cast %149 : vector<16xf32> to vector<16x1xf32>
    %cst_67 = arith.constant 1.280000e+02 : f32
    %151 = vector.broadcast %cst_67 : f32 to vector<16x1xf32>
    %152 = arith.divf %150, %151 : vector<16x1xf32>
    %153 = vector.broadcast %145 : vector<16x1xf32> to vector<16x128xf32>
    %154 = arith.subf %137, %153 : vector<16x128xf32>
    %cst_68 = arith.constant 9.99999996E-13 : f32
    %155 = vector.broadcast %cst_68 : f32 to vector<16x1xf32>
    %156 = arith.addf %152, %155 : vector<16x1xf32>
    %157 = math.rsqrt %156 : vector<16x1xf32>
    %158 = vector.broadcast %157 : vector<16x1xf32> to vector<16x128xf32>
    %159 = arith.mulf %154, %158 : vector<16x128xf32>
    %160 = vector.broadcast %139 : vector<1x128xf32> to vector<16x128xf32>
    %161 = arith.mulf %159, %160 : vector<16x128xf32>
    %162 = vector.broadcast %141 : vector<1x128xf32> to vector<16x128xf32>
    %163 = arith.addf %161, %162 : vector<16x128xf32>
    %164 = arith.truncf %163 : vector<16x128xf32> to vector<16x128xbf16>
    %c1 = arith.constant 1 : index
    %c0_69 = arith.constant 0 : index
    %c0_70 = arith.constant 0 : index
    %165 = vector.load %arg4[%c1, %c0_69, %c0_70] : memref<2x128x768xbf16, #tpu.memory_space<vmem>>, vector<1x128x768xbf16>
    %166 = vector.shape_cast %165 : vector<1x128x768xbf16> to vector<128x768xbf16>
    %cst_71 = arith.constant dense<0.000000e+00> : vector<16x768xf32>
    %167 = tpu.matmul %164, %166, %cst_71 {dimension_numbers = #tpu.dot_dimension_numbers<[1], [0], [0], [1], [0, 0, 1, 1], [], []>} : vector<16x128xbf16>, vector<128x768xbf16>, vector<16x768xf32> -> vector<16x768xf32>
    %c1_72 = arith.constant 1 : index
    %c0_73 = arith.constant 0 : index
    %c0_74 = arith.constant 0 : index
    %168 = vector.load %arg5[%c1_72, %c0_73, %c0_74] : memref<2x1x768xf32, #tpu.memory_space<vmem>>, vector<1x1x768xf32>
    %169 = vector.shape_cast %168 : vector<1x1x768xf32> to vector<1x768xf32>
    %170 = vector.broadcast %169 : vector<1x768xf32> to vector<16x768xf32>
    %171 = arith.addf %167, %170 : vector<16x768xf32>
    %172 = vector.extract_strided_slice %171 {offsets = [0, 0], sizes = [8, 128], strides = [1, 1]} : vector<16x768xf32> to vector<8x128xf32>
    %173 = vector.extract_strided_slice %171 {offsets = [0, 128], sizes = [8, 128], strides = [1, 1]} : vector<16x768xf32> to vector<8x128xf32>
    %174 = vector.extract_strided_slice %171 {offsets = [8, 0], sizes = [8, 128], strides = [1, 1]} : vector<16x768xf32> to vector<8x128xf32>
    %175 = vector.extract_strided_slice %171 {offsets = [8, 128], sizes = [8, 128], strides = [1, 1]} : vector<16x768xf32> to vector<8x128xf32>
    %176 = tpu.concatenate %172, %173, %174, %175 in 0 : vector<8x128xf32>, vector<8x128xf32>, vector<8x128xf32>, vector<8x128xf32> -> vector<32x128xf32>
    %177 = arith.truncf %176 : vector<32x128xf32> to vector<32x128xbf16>
    %178 = vector.extract_strided_slice %171 {offsets = [0, 256], sizes = [8, 128], strides = [1, 1]} : vector<16x768xf32> to vector<8x128xf32>
    %179 = vector.extract_strided_slice %171 {offsets = [0, 384], sizes = [8, 128], strides = [1, 1]} : vector<16x768xf32> to vector<8x128xf32>
    %180 = vector.extract_strided_slice %171 {offsets = [8, 256], sizes = [8, 128], strides = [1, 1]} : vector<16x768xf32> to vector<8x128xf32>
    %181 = vector.extract_strided_slice %171 {offsets = [8, 384], sizes = [8, 128], strides = [1, 1]} : vector<16x768xf32> to vector<8x128xf32>
    %182 = tpu.concatenate %178, %179, %180, %181 in 0 : vector<8x128xf32>, vector<8x128xf32>, vector<8x128xf32>, vector<8x128xf32> -> vector<32x128xf32>
    %183 = arith.truncf %182 : vector<32x128xf32> to vector<32x128xbf16>
    %184 = vector.extract_strided_slice %171 {offsets = [0, 512], sizes = [8, 128], strides = [1, 1]} : vector<16x768xf32> to vector<8x128xf32>
    %185 = vector.extract_strided_slice %171 {offsets = [0, 640], sizes = [8, 128], strides = [1, 1]} : vector<16x768xf32> to vector<8x128xf32>
    %186 = vector.extract_strided_slice %171 {offsets = [8, 512], sizes = [8, 128], strides = [1, 1]} : vector<16x768xf32> to vector<8x128xf32>
    %187 = vector.extract_strided_slice %171 {offsets = [8, 640], sizes = [8, 128], strides = [1, 1]} : vector<16x768xf32> to vector<8x128xf32>
    %188 = tpu.concatenate %184, %185, %186, %187 in 0 : vector<8x128xf32>, vector<8x128xf32>, vector<8x128xf32>, vector<8x128xf32> -> vector<32x128xf32>
    %189 = arith.truncf %188 : vector<32x128xf32> to vector<32x128xbf16>
    %cst_75 = arith.constant dense<0.000000e+00> : vector<32x32xf32>
    %190 = tpu.matmul %177, %183, %cst_75 {dimension_numbers = #tpu.dot_dimension_numbers<[1], [1], [0], [0], [0, 0, 1, 0], [], []>} : vector<32x128xbf16>, vector<32x128xbf16>, vector<32x32xf32> -> vector<32x32xf32>
    %191 = arith.addf %190, %25 : vector<32x32xf32>
    %cst_76 = arith.constant dense<0xFF800000> : vector<32xf32>
    %192 = vector.multi_reduction <maximumf>, %191, %cst_76 [1] : vector<32x32xf32> to vector<32xf32>
    %193 = vector.shape_cast %192 : vector<32xf32> to vector<32x1xf32>
    %194 = vector.broadcast %193 : vector<32x1xf32> to vector<32x32xf32>
    %195 = arith.subf %191, %194 : vector<32x32xf32>
    %196 = math.exp %195 : vector<32x32xf32>
    %cst_77 = arith.constant dense<0.000000e+00> : vector<32xf32>
    %197 = vector.multi_reduction <add>, %196, %cst_77 [1] : vector<32x32xf32> to vector<32xf32>
    %198 = vector.shape_cast %197 : vector<32xf32> to vector<32x1xf32>
    %199 = tpu.reciprocal %198 {approx = true} : vector<32x1xf32> -> vector<32x1xf32>
    %200 = vector.broadcast %199 : vector<32x1xf32> to vector<32x32xf32>
    %201 = arith.mulf %196, %200 : vector<32x32xf32>
    %202 = arith.truncf %201 : vector<32x32xf32> to vector<32x32xbf16>
    %cst_78 = arith.constant dense<0.000000e+00> : vector<32x128xf32>
    %203 = tpu.matmul %202, %189, %cst_78 {dimension_numbers = #tpu.dot_dimension_numbers<[1], [0], [0], [1], [0, 0, 1, 1], [], []>} : vector<32x32xbf16>, vector<32x128xbf16>, vector<32x128xf32> -> vector<32x128xf32>
    %204 = vector.extract_strided_slice %203 {offsets = [0, 0], sizes = [8, 128], strides = [1, 1]} : vector<32x128xf32> to vector<8x128xf32>
    %205 = vector.extract_strided_slice %203 {offsets = [16, 0], sizes = [8, 128], strides = [1, 1]} : vector<32x128xf32> to vector<8x128xf32>
    %206 = tpu.concatenate %204, %205 in 0 : vector<8x128xf32>, vector<8x128xf32> -> vector<16x128xf32>
    %207 = vector.extract_strided_slice %203 {offsets = [8, 0], sizes = [8, 128], strides = [1, 1]} : vector<32x128xf32> to vector<8x128xf32>
    %208 = vector.extract_strided_slice %203 {offsets = [24, 0], sizes = [8, 128], strides = [1, 1]} : vector<32x128xf32> to vector<8x128xf32>
    %209 = tpu.concatenate %207, %208 in 0 : vector<8x128xf32>, vector<8x128xf32> -> vector<16x128xf32>
    %210 = tpu.concatenate %206, %209 in 1 : vector<16x128xf32>, vector<16x128xf32> -> vector<16x256xf32>
    %211 = arith.truncf %210 : vector<16x256xf32> to vector<16x256xbf16>
    %c1_79 = arith.constant 1 : index
    %c0_80 = arith.constant 0 : index
    %c0_81 = arith.constant 0 : index
    %212 = vector.load %arg6[%c1_79, %c0_80, %c0_81] : memref<2x256x128xbf16, #tpu.memory_space<vmem>>, vector<1x256x128xbf16>
    %213 = vector.shape_cast %212 : vector<1x256x128xbf16> to vector<256x128xbf16>
    %cst_82 = arith.constant dense<0.000000e+00> : vector<16x128xf32>
    %214 = tpu.matmul %211, %213, %cst_82 {dimension_numbers = #tpu.dot_dimension_numbers<[1], [0], [0], [1], [0, 0, 1, 1], [], []>} : vector<16x256xbf16>, vector<256x128xbf16>, vector<16x128xf32> -> vector<16x128xf32>
    %c1_83 = arith.constant 1 : index
    %c0_84 = arith.constant 0 : index
    %c0_85 = arith.constant 0 : index
    %215 = vector.load %arg7[%c1_83, %c0_84, %c0_85] : memref<2x1x128xf32, #tpu.memory_space<vmem>>, vector<1x1x128xf32>
    %216 = vector.shape_cast %215 : vector<1x1x128xf32> to vector<1x128xf32>
    %217 = vector.broadcast %216 : vector<1x128xf32> to vector<16x128xf32>
    %218 = arith.addf %214, %217 : vector<16x128xf32>
    %219 = arith.addf %218, %163 : vector<16x128xf32>
    %c1_86 = arith.constant 1 : index
    %c0_87 = arith.constant 0 : index
    %c0_88 = arith.constant 0 : index
    %220 = vector.load %arg8[%c1_86, %c0_87, %c0_88] : memref<2x1x128xf32, #tpu.memory_space<vmem>>, vector<1x1x128xf32>
    %221 = vector.shape_cast %220 : vector<1x1x128xf32> to vector<1x128xf32>
    %c1_89 = arith.constant 1 : index
    %c0_90 = arith.constant 0 : index
    %c0_91 = arith.constant 0 : index
    %222 = vector.load %arg9[%c1_89, %c0_90, %c0_91] : memref<2x1x128xf32, #tpu.memory_space<vmem>>, vector<1x1x128xf32>
    %223 = vector.shape_cast %222 : vector<1x1x128xf32> to vector<1x128xf32>
    %cst_92 = arith.constant dense<0.000000e+00> : vector<16xf32>
    %224 = vector.multi_reduction <add>, %219, %cst_92 [1] : vector<16x128xf32> to vector<16xf32>
    %225 = vector.shape_cast %224 : vector<16xf32> to vector<16x1xf32>
    %cst_93 = arith.constant 1.280000e+02 : f32
    %226 = vector.broadcast %cst_93 : f32 to vector<16x1xf32>
    %227 = arith.divf %225, %226 : vector<16x1xf32>
    %228 = vector.broadcast %227 : vector<16x1xf32> to vector<16x128xf32>
    %229 = arith.subf %219, %228 : vector<16x128xf32>
    %230 = arith.mulf %229, %229 : vector<16x128xf32>
    %cst_94 = arith.constant dense<0.000000e+00> : vector<16xf32>
    %231 = vector.multi_reduction <add>, %230, %cst_94 [1] : vector<16x128xf32> to vector<16xf32>
    %232 = vector.shape_cast %231 : vector<16xf32> to vector<16x1xf32>
    %cst_95 = arith.constant 1.280000e+02 : f32
    %233 = vector.broadcast %cst_95 : f32 to vector<16x1xf32>
    %234 = arith.divf %232, %233 : vector<16x1xf32>
    %235 = vector.broadcast %227 : vector<16x1xf32> to vector<16x128xf32>
    %236 = arith.subf %219, %235 : vector<16x128xf32>
    %cst_96 = arith.constant 9.99999996E-13 : f32
    %237 = vector.broadcast %cst_96 : f32 to vector<16x1xf32>
    %238 = arith.addf %234, %237 : vector<16x1xf32>
    %239 = math.rsqrt %238 : vector<16x1xf32>
    %240 = vector.broadcast %239 : vector<16x1xf32> to vector<16x128xf32>
    %241 = arith.mulf %236, %240 : vector<16x128xf32>
    %242 = vector.broadcast %221 : vector<1x128xf32> to vector<16x128xf32>
    %243 = arith.mulf %241, %242 : vector<16x128xf32>
    %244 = vector.broadcast %223 : vector<1x128xf32> to vector<16x128xf32>
    %245 = arith.addf %243, %244 : vector<16x128xf32>
    %246 = arith.truncf %245 : vector<16x128xf32> to vector<16x128xbf16>
    %c1_97 = arith.constant 1 : index
    %c0_98 = arith.constant 0 : index
    %c0_99 = arith.constant 0 : index
    %247 = vector.load %arg10[%c1_97, %c0_98, %c0_99] : memref<2x128x512xbf16, #tpu.memory_space<vmem>>, vector<1x128x512xbf16>
    %248 = vector.shape_cast %247 : vector<1x128x512xbf16> to vector<128x512xbf16>
    %cst_100 = arith.constant dense<0.000000e+00> : vector<16x512xf32>
    %249 = tpu.matmul %246, %248, %cst_100 {dimension_numbers = #tpu.dot_dimension_numbers<[1], [0], [0], [1], [0, 0, 1, 1], [], []>} : vector<16x128xbf16>, vector<128x512xbf16>, vector<16x512xf32> -> vector<16x512xf32>
    %c1_101 = arith.constant 1 : index
    %c0_102 = arith.constant 0 : index
    %c0_103 = arith.constant 0 : index
    %250 = vector.load %arg11[%c1_101, %c0_102, %c0_103] : memref<2x1x512xf32, #tpu.memory_space<vmem>>, vector<1x1x512xf32>
    %251 = vector.shape_cast %250 : vector<1x1x512xf32> to vector<1x512xf32>
    %252 = vector.broadcast %251 : vector<1x512xf32> to vector<16x512xf32>
    %253 = arith.addf %249, %252 : vector<16x512xf32>
    %cst_104 = arith.constant 5.000000e-01 : f32
    %254 = vector.broadcast %cst_104 : f32 to vector<16x512xf32>
    %255 = arith.mulf %254, %253 : vector<16x512xf32>
    %cst_105 = arith.constant 4.471500e-02 : f32
    %256 = vector.broadcast %cst_105 : f32 to vector<16x512xf32>
    %257 = arith.mulf %256, %253 : vector<16x512xf32>
    %258 = arith.mulf %257, %253 : vector<16x512xf32>
    %259 = arith.mulf %258, %253 : vector<16x512xf32>
    %260 = arith.addf %253, %259 : vector<16x512xf32>
    %cst_106 = arith.constant 0.797884583 : f32
    %261 = vector.broadcast %cst_106 : f32 to vector<16x512xf32>
    %262 = arith.mulf %261, %260 : vector<16x512xf32>
    %263 = math.tanh %262 : vector<16x512xf32>
    %cst_107 = arith.constant 1.000000e+00 : f32
    %264 = vector.broadcast %cst_107 : f32 to vector<16x512xf32>
    %265 = arith.addf %264, %263 : vector<16x512xf32>
    %266 = arith.mulf %255, %265 : vector<16x512xf32>
    %267 = arith.truncf %266 : vector<16x512xf32> to vector<16x512xbf16>
    %c1_108 = arith.constant 1 : index
    %c0_109 = arith.constant 0 : index
    %c0_110 = arith.constant 0 : index
    %268 = vector.load %arg12[%c1_108, %c0_109, %c0_110] : memref<2x512x128xbf16, #tpu.memory_space<vmem>>, vector<1x512x128xbf16>
    %269 = vector.shape_cast %268 : vector<1x512x128xbf16> to vector<512x128xbf16>
    %cst_111 = arith.constant dense<0.000000e+00> : vector<16x128xf32>
    %270 = tpu.matmul %267, %269, %cst_111 {dimension_numbers = #tpu.dot_dimension_numbers<[1], [0], [0], [1], [0, 0, 1, 1], [], []>} : vector<16x512xbf16>, vector<512x128xbf16>, vector<16x128xf32> -> vector<16x128xf32>
    %c1_112 = arith.constant 1 : index
    %c0_113 = arith.constant 0 : index
    %c0_114 = arith.constant 0 : index
    %271 = vector.load %arg13[%c1_112, %c0_113, %c0_114] : memref<2x1x128xf32, #tpu.memory_space<vmem>>, vector<1x1x128xf32>
    %272 = vector.shape_cast %271 : vector<1x1x128xf32> to vector<1x128xf32>
    %273 = vector.broadcast %272 : vector<1x128xf32> to vector<16x128xf32>
    %274 = arith.addf %270, %273 : vector<16x128xf32>
    %275 = arith.addf %274, %245 : vector<16x128xf32>
    %c1_115 = arith.constant 1 : index
    %c0_116 = arith.constant 0 : index
    %c0_117 = arith.constant 0 : index
    %276 = vector.load %arg14[%c1_115, %c0_116, %c0_117] : memref<2x1x128xf32, #tpu.memory_space<vmem>>, vector<1x1x128xf32>
    %277 = vector.shape_cast %276 : vector<1x1x128xf32> to vector<1x128xf32>
    %c1_118 = arith.constant 1 : index
    %c0_119 = arith.constant 0 : index
    %c0_120 = arith.constant 0 : index
    %278 = vector.load %arg15[%c1_118, %c0_119, %c0_120] : memref<2x1x128xf32, #tpu.memory_space<vmem>>, vector<1x1x128xf32>
    %279 = vector.shape_cast %278 : vector<1x1x128xf32> to vector<1x128xf32>
    %cst_121 = arith.constant dense<0.000000e+00> : vector<16xf32>
    %280 = vector.multi_reduction <add>, %275, %cst_121 [1] : vector<16x128xf32> to vector<16xf32>
    %281 = vector.shape_cast %280 : vector<16xf32> to vector<16x1xf32>
    %cst_122 = arith.constant 1.280000e+02 : f32
    %282 = vector.broadcast %cst_122 : f32 to vector<16x1xf32>
    %283 = arith.divf %281, %282 : vector<16x1xf32>
    %284 = vector.broadcast %283 : vector<16x1xf32> to vector<16x128xf32>
    %285 = arith.subf %275, %284 : vector<16x128xf32>
    %286 = arith.mulf %285, %285 : vector<16x128xf32>
    %cst_123 = arith.constant dense<0.000000e+00> : vector<16xf32>
    %287 = vector.multi_reduction <add>, %286, %cst_123 [1] : vector<16x128xf32> to vector<16xf32>
    %288 = vector.shape_cast %287 : vector<16xf32> to vector<16x1xf32>
    %cst_124 = arith.constant 1.280000e+02 : f32
    %289 = vector.broadcast %cst_124 : f32 to vector<16x1xf32>
    %290 = arith.divf %288, %289 : vector<16x1xf32>
    %291 = vector.broadcast %283 : vector<16x1xf32> to vector<16x128xf32>
    %292 = arith.subf %275, %291 : vector<16x128xf32>
    %cst_125 = arith.constant 9.99999996E-13 : f32
    %293 = vector.broadcast %cst_125 : f32 to vector<16x1xf32>
    %294 = arith.addf %290, %293 : vector<16x1xf32>
    %295 = math.rsqrt %294 : vector<16x1xf32>
    %296 = vector.broadcast %295 : vector<16x1xf32> to vector<16x128xf32>
    %297 = arith.mulf %292, %296 : vector<16x128xf32>
    %298 = vector.broadcast %277 : vector<1x128xf32> to vector<16x128xf32>
    %299 = arith.mulf %297, %298 : vector<16x128xf32>
    %300 = vector.broadcast %279 : vector<1x128xf32> to vector<16x128xf32>
    %301 = arith.addf %299, %300 : vector<16x128xf32>
    %302 = arith.truncf %301 : vector<16x128xf32> to vector<16x128xbf16>
    %c0_126 = arith.constant 0 : index
    %c0_127 = arith.constant 0 : index
    %303 = vector.load %arg16[%c0_126, %c0_127] : memref<128x128xbf16, #tpu.memory_space<vmem>>, vector<128x128xbf16>
    %cst_128 = arith.constant dense<0.000000e+00> : vector<16x128xf32>
    %304 = tpu.matmul %302, %303, %cst_128 {dimension_numbers = #tpu.dot_dimension_numbers<[1], [0], [0], [1], [0, 0, 1, 1], [], []>} : vector<16x128xbf16>, vector<128x128xbf16>, vector<16x128xf32> -> vector<16x128xf32>
    %c0_129 = arith.constant 0 : index
    %c0_130 = arith.constant 0 : index
    %305 = vector.load %arg17[%c0_129, %c0_130] : memref<1x128xf32, #tpu.memory_space<vmem>>, vector<1x128xf32>
    %306 = vector.broadcast %305 : vector<1x128xf32> to vector<16x128xf32>
    %307 = arith.addf %304, %306 : vector<16x128xf32>
    %308 = math.tanh %307 : vector<16x128xf32>
    %c0_131 = arith.constant 0 : index
    %c0_132 = arith.constant 0 : index
    %309 = vector.load %arg18[%c0_131, %c0_132] : memref<1x128xf32, #tpu.memory_space<vmem>>, vector<1x128xf32>
    %310 = vector.broadcast %309 : vector<1x128xf32> to vector<16x128xf32>
    %311 = arith.mulf %308, %310 : vector<16x128xf32>
    %cst_133 = arith.constant dense<0.000000e+00> : vector<16xf32>
    %312 = vector.multi_reduction <add>, %311, %cst_133 [1] : vector<16x128xf32> to vector<16xf32>
    %313 = vector.shape_cast %312 : vector<16xf32> to vector<16x1xf32>
    %c0_134 = arith.constant 0 : index
    %c0_135 = arith.constant 0 : index
    %314 = vector.load %arg19[%c0_134, %c0_135] : memref<1x1xf32, #tpu.memory_space<vmem>>, vector<1x1xf32>
    %315 = vector.broadcast %314 : vector<1x1xf32> to vector<16x1xf32>
    %316 = arith.addf %313, %315 : vector<16x1xf32>
    %317 = vector.shape_cast %316 : vector<16x1xf32> to vector<16x1xf32>
    %318 = vector.broadcast %317 : vector<16x1xf32> to vector<16x128xf32>
    %c0_136 = arith.constant 0 : index
    %c0_137 = arith.constant 0 : index
    %319 = vector.load %arg20[%c0_136, %c0_137] : memref<16x128xf32, #tpu.memory_space<vmem>>, vector<16x128xf32>
    tpu.vector_store %arg20[%c0_136, %c0_137], %318 {strides = array<i32>} : memref<16x128xf32, #tpu.memory_space<vmem>>, vector<16x128xf32>,
    return
  }
}

</mosaic_0001>

<llo_original>
// kernel: mul.22
$region0: #{mul.22}
  %s0 = inlined_call_operand.vmem [shape: f32[2,2,8], index: 0, kind: input, shape index: {}]
  %s1 = inlined_call_operand.vmem [shape: f32[32], index: 1, kind: output, shape index: {}]
  $region1: #{mul.22} parent=0
    #allocation0 [shape = 'u8[4096]{0}', space=vmem, size = 0x1000, scoped, tag = 'scoped mem for output reshape']
    #allocation1 [shape = 'u8[8192]{0}', space=vmem, size = 0x2000, scoped, tag = 'scoped mem for input reshape']
    %s3 = sshllo.u32 0, 2
    %s4 = scalar_lea.vmem %s0, 2
    %v5 = vld [vmem:[%s4] sm:%s3]
    %s6 = scalar_lea.vmem [#allocation1], 8
    %7 = vst [vmem:[%s6] sm:%s3] %v5
    %v8 = vld [vmem:[%s0] sm:%s3]
    %9 = vst [vmem:[#allocation1] sm:%s3] %v8
    %v10 = vld [vmem:[#allocation1] sm:$0x1]
    %vm11 = vcmask 64512
    %12 = vst.msk [vmem:[#allocation0] sm:$0x1] %vm11, %v10
    %s13 = scalar_lea.vmem [#allocation1], 9
    %v14 = vld [vmem:[%s13] sm:$0x1]
    %15 = vrot.lane.b32.xlu0 %v14, 24
    %v16 = vpop.permute.xlu0 %15
    %vm17 = vcmask 261312
    %18 = vst.msk [vmem:[#allocation0] sm:$0x1] %vm17, %v16
    %s19 = scalar_lea.vmem [#allocation1], 8
    %v20 = vld [vmem:[%s19] sm:$0x1]
    %21 = vrot.lane.b32.xlu0 %v20, 16
    %v22 = vpop.permute.xlu0 %21
    %vm23 = vcmask 195712
    %24 = vst.msk [vmem:[#allocation0] sm:$0x1] %vm23, %v22
    %s25 = scalar_lea.vmem [#allocation1], 1
    %v26 = vld [vmem:[%s25] sm:$0x1]
    %27 = vrot.lane.b32.xlu0 %v26, 8
    %v28 = vpop.permute.xlu0 %27
    %vm29 = vcmask 130112
    %30 = vst.msk [vmem:[#allocation0] sm:$0x1] %vm29, %v28
    %s32 = sshllo.u32 0, 1
    %v34 = vld [vmem:[#allocation0] sm:%s32]
    %s35 = sshllo.u32 0, 1
    %36 = vst [vmem:[%s1] sm:%s35] %v34

// kernel: bert_forward.1
$region0: #{bert_forward.1}
  #allocation0 [shape = 'u32[]', space=smem, size = 0x4, offset = 0x4, fixed_abs, tag = 'smem constant byte address 0x4 - core index']
  #allocation1 [shape = 'u32[144,128]{1,0:T(1,128)}', space=vmem, size = 0x12000, scoped, tag = 'internal scratch']
  #allocation2 [shape = 'f32[1,1]{1,0:T(1,128)S(1)}', space=vmem, size = 0x200, scoped, tag = 'scoped memory for bert_forward.1']
  %s0 = inlined_call_operand.vmem [shape: f32[16,128], index: 0, kind: input, shape index: {}]
  %s1 = inlined_call_operand.vmem [shape: f32[32,32], index: 1, kind: input, shape index: {}]
  %s2 = inlined_call_operand.vmem [shape: f32[1,128], index: 2, kind: input, shape index: {}]
  %s3 = inlined_call_operand.vmem [shape: f32[1,128], index: 3, kind: input, shape index: {}]
  %s4 = inlined_call_operand.hbm [shape: bf16[2,128,768], index: 4, kind: input, shape index: {}]
  %s5 = inlined_call_operand.vmem [shape: f32[2,1,768], index: 5, kind: input, shape index: {}]
  %s6 = inlined_call_operand.hbm [shape: bf16[2,256,128], index: 6, kind: input, shape index: {}]
  %s7 = inlined_call_operand.vmem [shape: f32[2,1,128], index: 7, kind: input, shape index: {}]
  %s8 = inlined_call_operand.vmem [shape: f32[2,1,128], index: 8, kind: input, shape index: {}]
  %s9 = inlined_call_operand.vmem [shape: f32[2,1,128], index: 9, kind: input, shape index: {}]
  %s10 = inlined_call_operand.vmem [shape: bf16[2,128,512], index: 10, kind: input, shape index: {}]
  %s11 = inlined_call_operand.vmem [shape: f32[2,1,512], index: 11, kind: input, shape index: {}]
  %s12 = inlined_call_operand.hbm [shape: bf16[2,512,128], index: 12, kind: input, shape index: {}]
  %s13 = inlined_call_operand.vmem [shape: f32[2,1,128], index: 13, kind: input, shape index: {}]
  %s14 = inlined_call_operand.vmem [shape: f32[2,1,128], index: 14, kind: input, shape index: {}]
  %s15 = inlined_call_operand.vmem [shape: f32[2,1,128], index: 15, kind: input, shape index: {}]
  %s16 = inlined_call_operand.vmem [shape: bf16[128,128], index: 16, kind: input, shape index: {}]
  %s17 = inlined_call_operand.vmem [shape: f32[1,128], index: 17, kind: input, shape index: {}]
  %s18 = inlined_call_operand.vmem [shape: f32[1,128], index: 18, kind: input, shape index: {}]
  %s19 = inlined_call_operand.<no memory space> [shape: f32[1,1], index: 19, kind: input, shape index: {}]
  %s20 = inlined_call_operand.vmem [shape: f32[16,128], index: 20, kind: output, shape index: {}]
  %s21 = sld [smem:[#allocation0]]
  $region102: #{bert_forward.1} parent=0
    _
  %s23 = ssub.s32 1, %s21
  %s24 = scalar_select 0, %s23, %s21
  %v25 = vstv %s19
  %26 = vst [vmem:[#allocation2] sm:$0x1] %v25
  $region1: #{bert_forward.1} parent=0
    #allocation3 [shape = 'u8[393216]{0}', space=vmem, size = 0x60000, scoped, tag = 'input window, operand 4, single buffered']
    #allocation4 [shape = 's32[1]{0}', space=sflag, size = 0x4, scoped, tag = 'scoped memory for bert_forward.1']
    #allocation5 [shape = 'u8[131072]{0}', space=vmem, size = 0x20000, scoped, tag = 'input window, operand 6, single buffered']
    #allocation6 [shape = 's32[1]{0}', space=sflag, size = 0x4, scoped, tag = 'scoped memory for bert_forward.1']
    #allocation7 [shape = 'u8[262144]{0}', space=vmem, size = 0x40000, scoped, tag = 'input window, operand 12, single buffered']
    %27 = vsyncpa [#allocation4], 0
    %28 = vsyncpa [#allocation6], 0
    // Predicated region
    $region2: #{bert_forward.1} parent=1 // pred_check
      _
    $region3: #{bert_forward.1} parent=1 // pred_check_branch
      %30 = sbr.rel (0) target = $region5
    $region4: #{bert_forward.1} parent=1 // pred_region
      _
    $region5: #{bert_forward.1} parent=1 // pred_fallthru
      _
    // Predicated region
    $region6: #{bert_forward.1} parent=1 // pred_check
      _
    $region7: #{bert_forward.1} parent=1 // pred_check_branch
      %32 = sbr.rel (0) target = $region9
    $region8: #{bert_forward.1} parent=1 // pred_region
      _
    $region9: #{bert_forward.1} parent=1 // pred_fallthru
      _
    // Predicated region
    $region10: #{bert_forward.1} parent=1 // pred_check
      _
    $region11: #{bert_forward.1} parent=1 // pred_check_branch
      %34 = sbr.rel (0) target = $region13
    $region12: #{bert_forward.1} parent=1 // pred_region
      _
    $region13: #{bert_forward.1} parent=1 // pred_fallthru
      _
    // Predicated region
    $region14: #{bert_forward.1} parent=1 // pred_check
      _
    $region15: #{bert_forward.1} parent=1 // pred_check_branch
      %36 = sbr.rel (0) target = $region17
    $region16: #{bert_forward.1} parent=1 // pred_region
      _
    $region17: #{bert_forward.1} parent=1 // pred_fallthru
      _
    // Predicated region
    $region18: #{bert_forward.1} parent=1 // pred_check
      _
    $region19: #{bert_forward.1} parent=1 // pred_check_branch
      %38 = sbr.rel (0) target = $region21
    $region20: #{bert_forward.1} parent=1 // pred_region
      %s40 = ssub.s32 12288, 12288
      %41 = vsyncadd [#allocation4], %s40
      %s42 = sshll.u32 [#allocation3], 4
      %s43 = int_to_ptr.vmem [resolvable:$true] %s42
      %48 = dma.hbm_to_vmem [thread:$0]  %s4, 12288, %s43, [#allocation4], 384, 384, 24
    $region21: #{bert_forward.1} parent=1 // pred_fallthru
      _
    // Predicated region
    $region22: #{bert_forward.1} parent=1 // pred_check
      _
    $region23: #{bert_forward.1} parent=1 // pred_check_branch
      %50 = sbr.rel (0) target = $region25
    $region24: #{bert_forward.1} parent=1 // pred_region
      _
    $region25: #{bert_forward.1} parent=1 // pred_fallthru
      _
    // Predicated region
    $region26: #{bert_forward.1} parent=1 // pred_check
      _
    $region27: #{bert_forward.1} parent=1 // pred_check_branch
      %52 = sbr.rel (0) target = $region29
    $region28: #{bert_forward.1} parent=1 // pred_region
      %s54 = ssub.s32 4096, 4096
      %55 = vsyncadd [#allocation6], %s54
      %s56 = sshll.u32 [#allocation5], 4
      %s57 = int_to_ptr.vmem [resolvable:$true] %s56
      %62 = dma.hbm_to_vmem [thread:$0]  %s6, 4096, %s57, [#allocation6], 64, 64, 4
    $region29: #{bert_forward.1} parent=1 // pred_fallthru
      _
    // Predicated region
    $region30: #{bert_forward.1} parent=1 // pred_check
      _
    $region31: #{bert_forward.1} parent=1 // pred_check_branch
      %64 = sbr.rel (0) target = $region33
    $region32: #{bert_forward.1} parent=1 // pred_region
      _
    $region33: #{bert_forward.1} parent=1 // pred_fallthru
      _
    // Predicated region
    $region34: #{bert_forward.1} parent=1 // pred_check
      _
    $region35: #{bert_forward.1} parent=1 // pred_check_branch
      %66 = sbr.rel (0) target = $region37
    $region36: #{bert_forward.1} parent=1 // pred_region
      _
    $region37: #{bert_forward.1} parent=1 // pred_fallthru
      _
    // Predicated region
    $region38: #{bert_forward.1} parent=1 // pred_check
      _
    $region39: #{bert_forward.1} parent=1 // pred_check_branch
      %68 = sbr.rel (0) target = $region41
    $region40: #{bert_forward.1} parent=1 // pred_region
      _
    $region41: #{bert_forward.1} parent=1 // pred_fallthru
      _
    // Predicated region
    $region42: #{bert_forward.1} parent=1 // pred_check
      _
    $region43: #{bert_forward.1} parent=1 // pred_check_branch
      %70 = sbr.rel (0) target = $region45
    $region44: #{bert_forward.1} parent=1 // pred_region
      _
    $region45: #{bert_forward.1} parent=1 // pred_fallthru
      _
    // Predicated region
    $region46: #{bert_forward.1} parent=1 // pred_check
      _
    $region47: #{bert_forward.1} parent=1 // pred_check_branch
      %72 = sbr.rel (0) target = $region49
    $region48: #{bert_forward.1} parent=1 // pred_region
      _
    $region49: #{bert_forward.1} parent=1 // pred_fallthru
      _
    // Predicated region
    $region50: #{bert_forward.1} parent=1 // pred_check
      _
    $region51: #{bert_forward.1} parent=1 // pred_check_branch
      %74 = sbr.rel (0) target = $region53
    $region52: #{bert_forward.1} parent=1 // pred_region
      %s76 = ssub.s32 8192, 8192
      %77 = vsyncadd [#allocation6], %s76
      %s78 = sshll.u32 [#allocation7], 4
      %s79 = int_to_ptr.vmem [resolvable:$true] %s78
      %84 = dma.hbm_to_vmem [thread:$0]  %s12, 8192, %s79, [#allocation6], 64, 64, 4
    $region53: #{bert_forward.1} parent=1 // pred_fallthru
      _
    // Predicated region
    $region54: #{bert_forward.1} parent=1 // pred_check
      _
    $region55: #{bert_forward.1} parent=1 // pred_check_branch
      %86 = sbr.rel (0) target = $region57
    $region56: #{bert_forward.1} parent=1 // pred_region
      _
    $region57: #{bert_forward.1} parent=1 // pred_fallthru
      _
    // Predicated region
    $region58: #{bert_forward.1} parent=1 // pred_check
      _
    $region59: #{bert_forward.1} parent=1 // pred_check_branch
      %88 = sbr.rel (0) target = $region61
    $region60: #{bert_forward.1} parent=1 // pred_region
      _
    $region61: #{bert_forward.1} parent=1 // pred_fallthru
      _
    // Predicated region
    $region62: #{bert_forward.1} parent=1 // pred_check
      _
    $region63: #{bert_forward.1} parent=1 // pred_check_branch
      %90 = sbr.rel (0) target = $region65
    $region64: #{bert_forward.1} parent=1 // pred_region
      _
    $region65: #{bert_forward.1} parent=1 // pred_fallthru
      _
    // Predicated region
    $region66: #{bert_forward.1} parent=1 // pred_check
      _
    $region67: #{bert_forward.1} parent=1 // pred_check_branch
      %92 = sbr.rel (0) target = $region69
    $region68: #{bert_forward.1} parent=1 // pred_region
      _
    $region69: #{bert_forward.1} parent=1 // pred_fallthru
      _
    // Predicated region
    $region70: #{bert_forward.1} parent=1 // pred_check
      _
    $region71: #{bert_forward.1} parent=1 // pred_check_branch
      %94 = sbr.rel (0) target = $region73
    $region72: #{bert_forward.1} parent=1 // pred_region
      _
    $region73: #{bert_forward.1} parent=1 // pred_fallthru
      _
    // Predicated region
    $region74: #{bert_forward.1} parent=1 // pred_check
      _
    $region75: #{bert_forward.1} parent=1 // pred_check_branch
      %96 = sbr.rel (0) target = $region77
    $region76: #{bert_forward.1} parent=1 // pred_region
      _
    $region77: #{bert_forward.1} parent=1 // pred_fallthru
      _
    // Predicated region
    $region78: #{bert_forward.1} parent=1 // pred_check
      _
    $region79: #{bert_forward.1} parent=1 // pred_check_branch
      %98 = sbr.rel (0) target = $region81
    $region80: #{bert_forward.1} parent=1 // pred_region
      _
    $region81: #{bert_forward.1} parent=1 // pred_fallthru
      _
    // Predicated region
    $region82: #{bert_forward.1} parent=1 // pred_check
      _
    $region83: #{bert_forward.1} parent=1 // pred_check_branch
      %100 = sbr.rel (0) target = $region85
    $region84: #{bert_forward.1} parent=1 // pred_region
      %101 = dma.done [#allocation4], 12288
    $region85: #{bert_forward.1} parent=1 // pred_fallthru
      _
    // Predicated region
    $region86: #{bert_forward.1} parent=1 // pred_check
      _
    $region87: #{bert_forward.1} parent=1 // pred_check_branch
      %103 = sbr.rel (0) target = $region89
    $region88: #{bert_forward.1} parent=1 // pred_region
      %104 = dma.done [#allocation6], 4096
    $region89: #{bert_forward.1} parent=1 // pred_fallthru
      _
    // Predicated region
    $region90: #{bert_forward.1} parent=1 // pred_check
      _
    $region91: #{bert_forward.1} parent=1 // pred_check_branch
      %106 = sbr.rel (0) target = $region93
    $region92: #{bert_forward.1} parent=1 // pred_region
      %107 = dma.done [#allocation6], 8192
    $region93: #{bert_forward.1} parent=1 // pred_fallthru
      _
    %v109 = vld [vmem:[%s0] sm:$0xff]
    %v110 = vld [vmem:[%s0 + $0x8] sm:$0xff]
    %v111 = vld [vmem:[%s2] sm:$0x1]
    %v112 = vld [vmem:[%s3] sm:$0x1]
    %113 = vadd.xlane.f32.xlu0 %v109
    %v114 = vpop.xlane.xlu0 %113
    %115 = vadd.xlane.f32.xlu0 %v110
    %v116 = vpop.xlane.xlu0 %115
    %v117 = vrcp.pop 128.0
    %v118 = vmul.f32 %v114, %v117
    %v119 = vmul.f32 %v116, %v117
    %v120 = vsub.f32 %v109, %v118
    %v121 = vsub.f32 %v110, %v119
    %v122 = vmul.f32 %v120, %v120
    %v123 = vmul.f32 %v121, %v121
    %124 = vadd.xlane.f32.xlu0 %v122
    %v125 = vpop.xlane.xlu0 %124
    %126 = vadd.xlane.f32.xlu0 %v123
    %v127 = vpop.xlane.xlu0 %126
    %v128 = vmul.f32 %v125, %v117
    %v129 = vmul.f32 %v127, %v117
    %v130 = vadd.f32 %v128, 1e-12
    %v131 = vadd.f32 %v129, 1e-12
    %v132 = vrsqrt.pop %v130
    %v133 = vrsqrt.pop %v131
    %v134 = vmul.f32 %v120, %v132
    %v135 = vmul.f32 %v121, %v133
    %v137 = vlaneseq
    %v138 = vshrl.u32 %v137, 7
    %v139 = vsub.s32 0, %v138
    %v140 = vrot.slane %v111, %v139
    %v142 = vmul.f32 %v134, %v140
    %v143 = vmul.f32 %v135, %v140
    %v145 = vlaneseq
    %v146 = vshrl.u32 %v145, 7
    %v147 = vsub.s32 0, %v146
    %v148 = vrot.slane %v112, %v147
    %v150 = vadd.f32 %v142, %v148
    %v151 = vadd.f32 %v143, %v148
    %v152 = vld [vmem:[%s1] sm:$0xff]
    %v153 = vld [vmem:[%s1 + $0x8] sm:$0xff]
    %v154 = vld [vmem:[%s1 + $0x10] sm:$0xff]
    %v155 = vld [vmem:[%s1 + $0x18] sm:$0xff]
    %v156 = vpack.c.bf16 %v151, %v150
    %v157 = vld [vmem:[#allocation3] sm:$0xff]
    %v158 = vld [vmem:[#allocation3 + $0x8] sm:$0xff]
    %v159 = vld [vmem:[#allocation3 + $0x10] sm:$0xff]
    %v160 = vld [vmem:[#allocation3 + $0x18] sm:$0xff]
    %v161 = vld [vmem:[#allocation3 + $0x20] sm:$0xff]
    %v162 = vld [vmem:[#allocation3 + $0x28] sm:$0xff]
    %v163 = vld [vmem:[#allocation3 + $0x30] sm:$0xff]
    %v164 = vld [vmem:[#allocation3 + $0x38] sm:$0xff]
    %v165 = vld [vmem:[#allocation3 + $0x40] sm:$0xff]
    %v166 = vld [vmem:[#allocation3 + $0x48] sm:$0xff]
    %v167 = vld [vmem:[#allocation3 + $0x50] sm:$0xff]
    %v168 = vld [vmem:[#allocation3 + $0x58] sm:$0xff]
    %v169 = vld [vmem:[#allocation3 + $0x60] sm:$0xff]
    %v170 = vld [vmem:[#allocation3 + $0x68] sm:$0xff]
    %v171 = vld [vmem:[#allocation3 + $0x70] sm:$0xff]
    %v172 = vld [vmem:[#allocation3 + $0x78] sm:$0xff]
    %v173 = vld [vmem:[#allocation3 + $0x80] sm:$0xff]
    %v174 = vld [vmem:[#allocation3 + $0x88] sm:$0xff]
    %v175 = vld [vmem:[#allocation3 + $0x90] sm:$0xff]
    %v176 = vld [vmem:[#allocation3 + $0x98] sm:$0xff]
    %v177 = vld [vmem:[#allocation3 + $0xa0] sm:$0xff]
    %v178 = vld [vmem:[#allocation3 + $0xa8] sm:$0xff]
    %v179 = vld [vmem:[#allocation3 + $0xb0] sm:$0xff]
    %v180 = vld [vmem:[#allocation3 + $0xb8] sm:$0xff]
    %v181 = vld [vmem:[#allocation3 + $0xc0] sm:$0xff]
    %v182 = vld [vmem:[#allocation3 + $0xc8] sm:$0xff]
    %v183 = vld [vmem:[#allocation3 + $0xd0] sm:$0xff]
    %v184 = vld [vmem:[#allocation3 + $0xd8] sm:$0xff]
    %v185 = vld [vmem:[#allocation3 + $0xe0] sm:$0xff]
    %v186 = vld [vmem:[#allocation3 + $0xe8] sm:$0xff]
    %v187 = vld [vmem:[#allocation3 + $0xf0] sm:$0xff]
    %v188 = vld [vmem:[#allocation3 + $0xf8] sm:$0xff]
    %v189 = vld [vmem:[#allocation3 + $0x100] sm:$0xff]
    %v190 = vld [vmem:[#allocation3 + $0x108] sm:$0xff]
    %v191 = vld [vmem:[#allocation3 + $0x110] sm:$0xff]
    %v192 = vld [vmem:[#allocation3 + $0x118] sm:$0xff]
    %v193 = vld [vmem:[#allocation3 + $0x120] sm:$0xff]
    %v194 = vld [vmem:[#allocation3 + $0x128] sm:$0xff]
    %v195 = vld [vmem:[#allocation3 + $0x130] sm:$0xff]
    %v196 = vld [vmem:[#allocation3 + $0x138] sm:$0xff]
    %v197 = vld [vmem:[#allocation3 + $0x140] sm:$0xff]
    %v198 = vld [vmem:[#allocation3 + $0x148] sm:$0xff]
    %v199 = vld [vmem:[#allocation3 + $0x150] sm:$0xff]
    %v200 = vld [vmem:[#allocation3 + $0x158] sm:$0xff]
    %v201 = vld [vmem:[#allocation3 + $0x160] sm:$0xff]
    %v202 = vld [vmem:[#allocation3 + $0x168] sm:$0xff]
    %v203 = vld [vmem:[#allocation3 + $0x170] sm:$0xff]
    %v204 = vld [vmem:[#allocation3 + $0x178] sm:$0xff]
    %v205 = vld [vmem:[%s5] sm:$0x3f]
    %v207 = vlaneseq
    %v208 = vshrl.u32 %v207, 7
    %v209 = vsub.s32 0, %v208
    %v210 = vrot.slane %v205, %v209
    %v211 = vlaneseq
    %v212 = vshrl.u32 %v211, 7
    %v213 = vsub.s32 1, %v212
    %v214 = vrot.slane %v205, %v213
    %v215 = vlaneseq
    %v216 = vshrl.u32 %v215, 7
    %v217 = vsub.s32 2, %v216
    %v218 = vrot.slane %v205, %v217
    %v219 = vlaneseq
    %v220 = vshrl.u32 %v219, 7
    %v221 = vsub.s32 3, %v220
    %v222 = vrot.slane %v205, %v221
    %v223 = vlaneseq
    %v224 = vshrl.u32 %v223, 7
    %v225 = vsub.s32 4, %v224
    %v226 = vrot.slane %v205, %v225
    %v227 = vlaneseq
    %v228 = vshrl.u32 %v227, 7
    %v229 = vsub.s32 5, %v228
    %v230 = vrot.slane %v205, %v229
    %v285 = vunpack.c.l.b16 %v157
    %v286 = vunpack.c.h.b16 %v157
    %v287 = vunpack.c.l.b16 %v158
    %v288 = vunpack.c.h.b16 %v158
    %v289 = vunpack.c.l.b16 %v159
    %v290 = vunpack.c.h.b16 %v159
    %v291 = vunpack.c.l.b16 %v160
    %v292 = vunpack.c.h.b16 %v160
    %v293 = vunpack.c.l.b16 %v161
    %v294 = vunpack.c.h.b16 %v161
    %v295 = vunpack.c.l.b16 %v162
    %v296 = vunpack.c.h.b16 %v162
    %v297 = vunpack.c.l.b16 %v163
    %v298 = vunpack.c.h.b16 %v163
    %v299 = vunpack.c.l.b16 %v164
    %v300 = vunpack.c.h.b16 %v164
    %v301 = vunpack.c.l.b16 %v165
    %v302 = vunpack.c.h.b16 %v165
    %v303 = vunpack.c.l.b16 %v166
    %v304 = vunpack.c.h.b16 %v166
    %v305 = vunpack.c.l.b16 %v167
    %v306 = vunpack.c.h.b16 %v167
    %v307 = vunpack.c.l.b16 %v168
    %v308 = vunpack.c.h.b16 %v168
    %v309 = vunpack.c.l.b16 %v169
    %v310 = vunpack.c.h.b16 %v169
    %v311 = vunpack.c.l.b16 %v170
    %v312 = vunpack.c.h.b16 %v170
    %v313 = vunpack.c.l.b16 %v171
    %v314 = vunpack.c.h.b16 %v171
    %v315 = vunpack.c.l.b16 %v172
    %v316 = vunpack.c.h.b16 %v172
    %v317 = vunpack.c.l.b16 %v173
    %v318 = vunpack.c.h.b16 %v173
    %v319 = vunpack.c.l.b16 %v174
    %v320 = vunpack.c.h.b16 %v174
    %v321 = vunpack.c.l.b16 %v175
    %v322 = vunpack.c.h.b16 %v175
    %v323 = vunpack.c.l.b16 %v176
    %v324 = vunpack.c.h.b16 %v176
    %v325 = vunpack.c.l.b16 %v177
    %v326 = vunpack.c.h.b16 %v177
    %v327 = vunpack.c.l.b16 %v178
    %v328 = vunpack.c.h.b16 %v178
    %v329 = vunpack.c.l.b16 %v179
    %v330 = vunpack.c.h.b16 %v179
    %v331 = vunpack.c.l.b16 %v180
    %v332 = vunpack.c.h.b16 %v180
    %v333 = vunpack.c.l.b16 %v181
    %v334 = vunpack.c.h.b16 %v181
    %v335 = vunpack.c.l.b16 %v182
    %v336 = vunpack.c.h.b16 %v182
    %v337 = vunpack.c.l.b16 %v183
    %v338 = vunpack.c.h.b16 %v183
    %v339 = vunpack.c.l.b16 %v184
    %v340 = vunpack.c.h.b16 %v184
    %v341 = vunpack.c.l.b16 %v185
    %v342 = vunpack.c.h.b16 %v185
    %v343 = vunpack.c.l.b16 %v186
    %v344 = vunpack.c.h.b16 %v186
    %v345 = vunpack.c.l.b16 %v187
    %v346 = vunpack.c.h.b16 %v187
    %v347 = vunpack.c.l.b16 %v188
    %v348 = vunpack.c.h.b16 %v188
    %v349 = vunpack.c.l.b16 %v189
    %v350 = vunpack.c.h.b16 %v189
    %v351 = vunpack.c.l.b16 %v190
    %v352 = vunpack.c.h.b16 %v190
    %v353 = vunpack.c.l.b16 %v191
    %v354 = vunpack.c.h.b16 %v191
    %v355 = vunpack.c.l.b16 %v192
    %v356 = vunpack.c.h.b16 %v192
    %v357 = vunpack.c.l.b16 %v193
    %v358 = vunpack.c.h.b16 %v193
    %v359 = vunpack.c.l.b16 %v194
    %v360 = vunpack.c.h.b16 %v194
    %v361 = vunpack.c.l.b16 %v195
    %v362 = vunpack.c.h.b16 %v195
    %v363 = vunpack.c.l.b16 %v196
    %v364 = vunpack.c.h.b16 %v196
    %v365 = vunpack.c.l.b16 %v197
    %v366 = vunpack.c.h.b16 %v197
    %v367 = vunpack.c.l.b16 %v198
    %v368 = vunpack.c.h.b16 %v198
    %v369 = vunpack.c.l.b16 %v199
    %v370 = vunpack.c.h.b16 %v199
    %v371 = vunpack.c.l.b16 %v200
    %v372 = vunpack.c.h.b16 %v200
    %v373 = vunpack.c.l.b16 %v201
    %v374 = vunpack.c.h.b16 %v201
    %v375 = vunpack.c.l.b16 %v202
    %v376 = vunpack.c.h.b16 %v202
    %v377 = vunpack.c.l.b16 %v203
    %v378 = vunpack.c.h.b16 %v203
    %v379 = vunpack.c.l.b16 %v204
    %v380 = vunpack.c.h.b16 %v204
    %v381 = vpack.c.b16 %v291, %v285
    %v382 = vpack.c.b16 %v292, %v286
    %v383 = vpack.c.b16 %v293, %v287
    %v384 = vpack.c.b16 %v294, %v288
    %v385 = vpack.c.b16 %v295, %v289
    %v386 = vpack.c.b16 %v296, %v290
    %v387 = vpack.c.b16 %v303, %v297
    %v388 = vpack.c.b16 %v304, %v298
    %v389 = vpack.c.b16 %v305, %v299
    %v390 = vpack.c.b16 %v306, %v300
    %v391 = vpack.c.b16 %v307, %v301
    %v392 = vpack.c.b16 %v308, %v302
    %v393 = vpack.c.b16 %v315, %v309
    %v394 = vpack.c.b16 %v316, %v310
    %v395 = vpack.c.b16 %v317, %v311
    %v396 = vpack.c.b16 %v318, %v312
    %v397 = vpack.c.b16 %v319, %v313
    %v398 = vpack.c.b16 %v320, %v314
    %v399 = vpack.c.b16 %v327, %v321
    %v400 = vpack.c.b16 %v328, %v322
    %v401 = vpack.c.b16 %v329, %v323
    %v402 = vpack.c.b16 %v330, %v324
    %v403 = vpack.c.b16 %v331, %v325
    %v404 = vpack.c.b16 %v332, %v326
    %v405 = vpack.c.b16 %v339, %v333
    %v406 = vpack.c.b16 %v340, %v334
    %v407 = vpack.c.b16 %v341, %v335
    %v408 = vpack.c.b16 %v342, %v336
    %v409 = vpack.c.b16 %v343, %v337
    %v410 = vpack.c.b16 %v344, %v338
    %v411 = vpack.c.b16 %v351, %v345
    %v412 = vpack.c.b16 %v352, %v346
    %v413 = vpack.c.b16 %v353, %v347
    %v414 = vpack.c.b16 %v354, %v348
    %v415 = vpack.c.b16 %v355, %v349
    %v416 = vpack.c.b16 %v356, %v350
    %v417 = vpack.c.b16 %v363, %v357
    %v418 = vpack.c.b16 %v364, %v358
    %v419 = vpack.c.b16 %v365, %v359
    %v420 = vpack.c.b16 %v366, %v360
    %v421 = vpack.c.b16 %v367, %v361
    %v422 = vpack.c.b16 %v368, %v362
    %v423 = vpack.c.b16 %v375, %v369
    %v424 = vpack.c.b16 %v376, %v370
    %v425 = vpack.c.b16 %v377, %v371
    %v426 = vpack.c.b16 %v378, %v372
    %v427 = vpack.c.b16 %v379, %v373
    %v428 = vpack.c.b16 %v380, %v374
    %477 = vmatprep.subr.bf16.mxu0 %v382
    %478 = vmatpush1.bf16.msra.mxu0 %v381
    %479 = vmatprep.subr.bf16.mxu0 %v388
    %480 = vmatpush1.bf16.msra.mxu0 %v387
    %481 = vmatprep.subr.bf16.mxu0 %v394
    %482 = vmatpush1.bf16.msra.mxu0 %v393
    %483 = vmatprep.subr.bf16.mxu0 %v400
    %484 = vmatpush1.bf16.msra.mxu0 %v399
    %485 = vmatprep.subr.bf16.mxu0 %v406
    %486 = vmatpush1.bf16.msra.mxu0 %v405
    %487 = vmatprep.subr.bf16.mxu0 %v412
    %488 = vmatpush1.bf16.msra.mxu0 %v411
    %489 = vmatprep.subr.bf16.mxu0 %v418
    %490 = vmatpush1.bf16.msra.mxu0 %v417
    %491 = vmatprep.subr.bf16.mxu0 %v424
    %492 = vmatpush1.bf16.msra.mxu0 %v423
    %493 = vmatprep.subr.bf16.mxu0 0
    %494 = vmatpush1.bf16.msra.mxu0 0
    %495 = vmatprep.subr.bf16.mxu0 0
    %496 = vmatpush1.bf16.msra.mxu0 0
    %497 = vmatprep.subr.bf16.mxu0 0
    %498 = vmatpush1.bf16.msra.mxu0 0
    %499 = vmatprep.subr.bf16.mxu0 0
    %500 = vmatpush1.bf16.msra.mxu0 0
    %501 = vmatprep.subr.bf16.mxu0 0
    %502 = vmatpush1.bf16.msra.mxu0 0
    %503 = vmatprep.subr.bf16.mxu0 0
    %504 = vmatpush1.bf16.msra.mxu0 0
    %505 = vmatprep.subr.bf16.mxu0 0
    %506 = vmatpush1.bf16.msra.mxu0 0
    %507 = vmatprep.subr.bf16.mxu0 0
    %508 = vmatpush1.bf16.msra.mxu0 0
    %509 = vmatprep.mubr.bf16.mxu0 0
    %510 = vmatmul.mubr.bf16.gmra.mrb[0].mxu0 %v156
    %v511 = vpop.f32.mrb[0].mxu0
    %v512 = vadd.f32 %v210, %v511
    %v513 = vpop.f32.mrb[0].mxu0
    %v514 = vadd.f32 %v214, %v513
    %v515 = vpop.f32.mrb[0].mxu0
    %v516 = vadd.f32 %v210, %v515
    %v517 = vpop.f32.mrb[0].mxu0
    %v518 = vadd.f32 %v214, %v517
    %519 = vdwg.mxu0
    %520 = vmatprep.subr.bf16.mxu0 %v384
    %521 = vmatpush1.bf16.msra.mxu0 %v383
    %522 = vmatprep.subr.bf16.mxu0 %v390
    %523 = vmatpush1.bf16.msra.mxu0 %v389
    %524 = vmatprep.subr.bf16.mxu0 %v396
    %525 = vmatpush1.bf16.msra.mxu0 %v395
    %526 = vmatprep.subr.bf16.mxu0 %v402
    %527 = vmatpush1.bf16.msra.mxu0 %v401
    %528 = vmatprep.subr.bf16.mxu0 %v408
    %529 = vmatpush1.bf16.msra.mxu0 %v407
    %530 = vmatprep.subr.bf16.mxu0 %v414
    %531 = vmatpush1.bf16.msra.mxu0 %v413
    %532 = vmatprep.subr.bf16.mxu0 %v420
    %533 = vmatpush1.bf16.msra.mxu0 %v419
    %534 = vmatprep.subr.bf16.mxu0 %v426
    %535 = vmatpush1.bf16.msra.mxu0 %v425
    %536 = vmatprep.subr.bf16.mxu0 0
    %537 = vmatpush1.bf16.msra.mxu0 0
    %538 = vmatprep.subr.bf16.mxu0 0
    %539 = vmatpush1.bf16.msra.mxu0 0
    %540 = vmatprep.subr.bf16.mxu0 0
    %541 = vmatpush1.bf16.msra.mxu0 0
    %542 = vmatprep.subr.bf16.mxu0 0
    %543 = vmatpush1.bf16.msra.mxu0 0
    %544 = vmatprep.subr.bf16.mxu0 0
    %545 = vmatpush1.bf16.msra.mxu0 0
    %546 = vmatprep.subr.bf16.mxu0 0
    %547 = vmatpush1.bf16.msra.mxu0 0
    %548 = vmatprep.subr.bf16.mxu0 0
    %549 = vmatpush1.bf16.msra.mxu0 0
    %550 = vmatprep.subr.bf16.mxu0 0
    %551 = vmatpush1.bf16.msra.mxu0 0
    %552 = vmatprep.mubr.bf16.mxu0 0
    %553 = vmatmul.mubr.bf16.gmra.mrb[0].mxu0 %v156
    %v554 = vpop.f32.mrb[0].mxu0
    %v555 = vadd.f32 %v218, %v554
    %v556 = vpop.f32.mrb[0].mxu0
    %v557 = vadd.f32 %v222, %v556
    %v558 = vpop.f32.mrb[0].mxu0
    %v559 = vadd.f32 %v218, %v558
    %v560 = vpop.f32.mrb[0].mxu0
    %v561 = vadd.f32 %v222, %v560
    %562 = vdwg.mxu0
    %563 = vmatprep.subr.bf16.mxu0 %v386
    %564 = vmatpush1.bf16.msra.mxu0 %v385
    %565 = vmatprep.subr.bf16.mxu0 %v392
    %566 = vmatpush1.bf16.msra.mxu0 %v391
    %567 = vmatprep.subr.bf16.mxu0 %v398
    %568 = vmatpush1.bf16.msra.mxu0 %v397
    %569 = vmatprep.subr.bf16.mxu0 %v404
    %570 = vmatpush1.bf16.msra.mxu0 %v403
    %571 = vmatprep.subr.bf16.mxu0 %v410
    %572 = vmatpush1.bf16.msra.mxu0 %v409
    %573 = vmatprep.subr.bf16.mxu0 %v416
    %574 = vmatpush1.bf16.msra.mxu0 %v415
    %575 = vmatprep.subr.bf16.mxu0 %v422
    %576 = vmatpush1.bf16.msra.mxu0 %v421
    %577 = vmatprep.subr.bf16.mxu0 %v428
    %578 = vmatpush1.bf16.msra.mxu0 %v427
    %579 = vmatprep.subr.bf16.mxu0 0
    %580 = vmatpush1.bf16.msra.mxu0 0
    %581 = vmatprep.subr.bf16.mxu0 0
    %582 = vmatpush1.bf16.msra.mxu0 0
    %583 = vmatprep.subr.bf16.mxu0 0
    %584 = vmatpush1.bf16.msra.mxu0 0
    %585 = vmatprep.subr.bf16.mxu0 0
    %586 = vmatpush1.bf16.msra.mxu0 0
    %587 = vmatprep.subr.bf16.mxu0 0
    %588 = vmatpush1.bf16.msra.mxu0 0
    %589 = vmatprep.subr.bf16.mxu0 0
    %590 = vmatpush1.bf16.msra.mxu0 0
    %591 = vmatprep.subr.bf16.mxu0 0
    %592 = vmatpush1.bf16.msra.mxu0 0
    %593 = vmatprep.subr.bf16.mxu0 0
    %594 = vmatpush1.bf16.msra.mxu0 0
    %595 = vmatprep.mubr.bf16.mxu0 0
    %596 = vmatmul.mubr.bf16.gmra.mrb[0].mxu0 %v156
    %v597 = vpop.f32.mrb[0].mxu0
    %v598 = vadd.f32 %v226, %v597
    %v599 = vpop.f32.mrb[0].mxu0
    %v600 = vadd.f32 %v230, %v599
    %v601 = vpop.f32.mrb[0].mxu0
    %v602 = vadd.f32 %v226, %v601
    %v603 = vpop.f32.mrb[0].mxu0
    %v604 = vadd.f32 %v230, %v603
    %605 = vdwg.mxu0
    %v606 = vpack.c.bf16 %v514, %v512
    %v607 = vpack.c.bf16 %v518, %v516
    %v608 = vpack.c.bf16 %v557, %v555
    %v609 = vpack.c.bf16 %v561, %v559
    %v610 = vpack.c.bf16 %v600, %v598
    %v611 = vpack.c.bf16 %v604, %v602
    %612 = vmatprep.subr.bf16.mxu0 0
    %613 = vmatpush1.bf16.xpose.msra.mxu0 %v608
    %614 = vmatprep.subr.bf16.mxu0 0
    %615 = vmatpush1.bf16.xpose.msra.mxu0 %v609
    %616 = vmatprep.subr.bf16.mxu0 0
    %617 = vmatpush1.bf16.xpose.msra.mxu0 0
    %618 = vmatprep.subr.bf16.mxu0 0
    %619 = vmatpush1.bf16.xpose.msra.mxu0 0
    %620 = vmatprep.subr.bf16.mxu0 0
    %621 = vmatpush1.bf16.xpose.msra.mxu0 0
    %622 = vmatprep.subr.bf16.mxu0 0
    %623 = vmatpush1.bf16.xpose.msra.mxu0 0
    %624 = vmatprep.subr.bf16.mxu0 0
    %625 = vmatpush1.bf16.xpose.msra.mxu0 0
    %626 = vmatprep.subr.bf16.mxu0 0
    %627 = vmatpush1.bf16.xpose.msra.mxu0 0
    %628 = vmatprep.subr.bf16.mxu0 0
    %629 = vmatpush1.bf16.xpose.msra.mxu0 0
    %630 = vmatprep.subr.bf16.mxu0 0
    %631 = vmatpush1.bf16.xpose.msra.mxu0 0
    %632 = vmatprep.subr.bf16.mxu0 0
    %633 = vmatpush1.bf16.xpose.msra.mxu0 0
    %634 = vmatprep.subr.bf16.mxu0 0
    %635 = vmatpush1.bf16.xpose.msra.mxu0 0
    %636 = vmatprep.subr.bf16.mxu0 0
    %637 = vmatpush1.bf16.xpose.msra.mxu0 0
    %638 = vmatprep.subr.bf16.mxu0 0
    %639 = vmatpush1.bf16.xpose.msra.mxu0 0
    %640 = vmatprep.subr.bf16.mxu0 0
    %641 = vmatpush1.bf16.xpose.msra.mxu0 0
    %642 = vmatprep.subr.bf16.mxu0 0
    %643 = vmatpush1.bf16.xpose.msra.mxu0 0
    %644 = vmatprep.mubr.bf16.mxu0 0
    %645 = vmatmul.mubr.bf16.gmra.mrb[0].mxu0 %v606
    %v646 = vpop.f32.mrb[0].mxu0
    %v647 = vadd.f32 %v152, %v646
    %v648 = vpop.f32.mrb[0].mxu0
    %v649 = vpop.f32.mrb[0].mxu0
    %v650 = vadd.f32 %v153, %v649
    %v651 = vpop.f32.mrb[0].mxu0
    %652 = vmatprep.mubr.bf16.mxu0 0
    %653 = vmatmul.mubr.bf16.gmra.mrb[0].mxu0 %v607
    %v654 = vpop.f32.mrb[0].mxu0
    %v655 = vadd.f32 %v154, %v654
    %v656 = vpop.f32.mrb[0].mxu0
    %v657 = vpop.f32.mrb[0].mxu0
    %v658 = vadd.f32 %v155, %v657
    %v659 = vpop.f32.mrb[0].mxu0
    %660 = vdwg.mxu0
    %vm661 = vcmask 261120
    %v662 = vsel %vm661, %v647, -inf
    %663 = vmax.xlane.f32.xlu0 %v662
    %v664 = vpop.xlane.xlu0 %663
    %v665 = vsel %vm661, %v650, -inf
    %666 = vmax.xlane.f32.xlu0 %v665
    %v667 = vpop.xlane.xlu0 %666
    %v668 = vsel %vm661, %v655, -inf
    %669 = vmax.xlane.f32.xlu0 %v668
    %v670 = vpop.xlane.xlu0 %669
    %v671 = vsel %vm661, %v658, -inf
    %672 = vmax.xlane.f32.xlu0 %v671
    %v673 = vpop.xlane.xlu0 %672
    %v674 = vsub.f32 %v647, %v664
    %v675 = vsub.f32 %v650, %v667
    %v676 = vsub.f32 %v655, %v670
    %v677 = vsub.f32 %v658, %v673
    %v678 = vmul.f32 %v674, 1.442695
    %v679 = vpow.pop %v678
    %v680 = vmul.f32 %v675, 1.442695
    %v681 = vpow.pop %v680
    %v682 = vmul.f32 %v676, 1.442695
    %v683 = vpow.pop %v682
    %v684 = vmul.f32 %v677, 1.442695
    %v685 = vpow.pop %v684
    %v686 = vsel %vm661, %v679, 0.0
    %687 = vadd.xlane.f32.xlu0 %v686
    %v688 = vpop.xlane.xlu0 %687
    %v689 = vsel %vm661, %v681, 0.0
    %690 = vadd.xlane.f32.xlu0 %v689
    %v691 = vpop.xlane.xlu0 %690
    %v692 = vsel %vm661, %v683, 0.0
    %693 = vadd.xlane.f32.xlu0 %v692
    %v694 = vpop.xlane.xlu0 %693
    %v695 = vsel %vm661, %v685, 0.0
    %696 = vadd.xlane.f32.xlu0 %v695
    %v697 = vpop.xlane.xlu0 %696
    %v698 = vrcp.pop %v688
    %v699 = vrcp.pop %v691
    %v700 = vrcp.pop %v694
    %v701 = vrcp.pop %v697
    %v702 = vmul.f32 %v679, %v698
    %v703 = vmul.f32 %v681, %v699
    %v704 = vmul.f32 %v683, %v700
    %v705 = vmul.f32 %v685, %v701
    %v706 = vpack.c.bf16 %v703, %v702
    %v707 = vpack.c.bf16 %v705, %v704
    %v709 = vsel %vm661, %v706, 0
    %v712 = vsel %vm661, %v707, 0
    %714 = vmatprep.subr.bf16.mxu0 0
    %715 = vmatpush1.bf16.msra.mxu0 %v610
    %716 = vmatprep.subr.bf16.mxu0 0
    %717 = vmatpush1.bf16.msra.mxu0 %v611
    %718 = vmatprep.subr.bf16.mxu0 0
    %719 = vmatpush1.bf16.msra.mxu0 0
    %720 = vmatprep.subr.bf16.mxu0 0
    %721 = vmatpush1.bf16.msra.mxu0 0
    %722 = vmatprep.subr.bf16.mxu0 0
    %723 = vmatpush1.bf16.msra.mxu0 0
    %724 = vmatprep.subr.bf16.mxu0 0
    %725 = vmatpush1.bf16.msra.mxu0 0
    %726 = vmatprep.subr.bf16.mxu0 0
    %727 = vmatpush1.bf16.msra.mxu0 0
    %728 = vmatprep.subr.bf16.mxu0 0
    %729 = vmatpush1.bf16.msra.mxu0 0
    %730 = vmatprep.subr.bf16.mxu0 0
    %731 = vmatpush1.bf16.msra.mxu0 0
    %732 = vmatprep.subr.bf16.mxu0 0
    %733 = vmatpush1.bf16.msra.mxu0 0
    %734 = vmatprep.subr.bf16.mxu0 0
    %735 = vmatpush1.bf16.msra.mxu0 0
    %736 = vmatprep.subr.bf16.mxu0 0
    %737 = vmatpush1.bf16.msra.mxu0 0
    %738 = vmatprep.subr.bf16.mxu0 0
    %739 = vmatpush1.bf16.msra.mxu0 0
    %740 = vmatprep.subr.bf16.mxu0 0
    %741 = vmatpush1.bf16.msra.mxu0 0
    %742 = vmatprep.subr.bf16.mxu0 0
    %743 = vmatpush1.bf16.msra.mxu0 0
    %744 = vmatprep.subr.bf16.mxu0 0
    %745 = vmatpush1.bf16.msra.mxu0 0
    %746 = vmatprep.mubr.bf16.mxu0 0
    %747 = vmatmul.mubr.bf16.gmra.mrb[0].mxu0 %v709
    %v748 = vpop.f32.mrb[0].mxu0
    %v749 = vadd.f32 0.0, %v748
    %v750 = vpop.f32.mrb[0].mxu0
    %v751 = vpop.f32.mrb[0].mxu0
    %v752 = vadd.f32 0.0, %v751
    %v753 = vpop.f32.mrb[0].mxu0
    %754 = vmatprep.mubr.bf16.mxu0 0
    %755 = vmatmul.mubr.bf16.gmra.mrb[0].mxu0 %v712
    %v756 = vpop.f32.mrb[0].mxu0
    %v757 = vadd.f32 0.0, %v756
    %v758 = vpop.f32.mrb[0].mxu0
    %v759 = vpop.f32.mrb[0].mxu0
    %v760 = vadd.f32 0.0, %v759
    %v761 = vpop.f32.mrb[0].mxu0
    %762 = vdwg.mxu0
    %v763 = vpack.c.bf16 %v757, %v749
    %v764 = vpack.c.bf16 %v760, %v752
    %v765 = vld [vmem:[#allocation5] sm:$0xf]
    %v766 = vld [vmem:[#allocation5 + $0x4] sm:$0xf]
    %v767 = vld [vmem:[#allocation5 + $0x8] sm:$0xf]
    %v768 = vld [vmem:[#allocation5 + $0xc] sm:$0xf]
    %v769 = vld [vmem:[#allocation5 + $0x10] sm:$0xf]
    %v770 = vld [vmem:[#allocation5 + $0x14] sm:$0xf]
    %v771 = vld [vmem:[#allocation5 + $0x18] sm:$0xf]
    %v772 = vld [vmem:[#allocation5 + $0x1c] sm:$0xf]
    %v773 = vld [vmem:[#allocation5 + $0x20] sm:$0xf]
    %v774 = vld [vmem:[#allocation5 + $0x24] sm:$0xf]
    %v775 = vld [vmem:[#allocation5 + $0x28] sm:$0xf]
    %v776 = vld [vmem:[#allocation5 + $0x2c] sm:$0xf]
    %v777 = vld [vmem:[#allocation5 + $0x30] sm:$0xf]
    %v778 = vld [vmem:[#allocation5 + $0x34] sm:$0xf]
    %v779 = vld [vmem:[#allocation5 + $0x38] sm:$0xf]
    %v780 = vld [vmem:[#allocation5 + $0x3c] sm:$0xf]
    %v781 = vld [vmem:[#allocation5 + $0x40] sm:$0xf]
    %v782 = vld [vmem:[#allocation5 + $0x44] sm:$0xf]
    %v783 = vld [vmem:[#allocation5 + $0x48] sm:$0xf]
    %v784 = vld [vmem:[#allocation5 + $0x4c] sm:$0xf]
    %v785 = vld [vmem:[#allocation5 + $0x50] sm:$0xf]
    %v786 = vld [vmem:[#allocation5 + $0x54] sm:$0xf]
    %v787 = vld [vmem:[#allocation5 + $0x58] sm:$0xf]
    %v788 = vld [vmem:[#allocation5 + $0x5c] sm:$0xf]
    %v789 = vld [vmem:[#allocation5 + $0x60] sm:$0xf]
    %v790 = vld [vmem:[#allocation5 + $0x64] sm:$0xf]
    %v791 = vld [vmem:[#allocation5 + $0x68] sm:$0xf]
    %v792 = vld [vmem:[#allocation5 + $0x6c] sm:$0xf]
    %v793 = vld [vmem:[#allocation5 + $0x70] sm:$0xf]
    %v794 = vld [vmem:[#allocation5 + $0x74] sm:$0xf]
    %v795 = vld [vmem:[#allocation5 + $0x78] sm:$0xf]
    %v796 = vld [vmem:[#allocation5 + $0x7c] sm:$0xf]
    %v797 = vld [vmem:[%s7] sm:$0x1]
    %v799 = vlaneseq
    %v800 = vshrl.u32 %v799, 7
    %v801 = vsub.s32 0, %v800
    %v802 = vrot.slane %v797, %v801
    %v836 = vunpack.c.l.b16 %v765
    %v837 = vunpack.c.l.b16 %v766
    %v838 = vunpack.c.l.b16 %v767
    %v839 = vunpack.c.l.b16 %v768
    %v840 = vunpack.c.l.b16 %v769
    %v841 = vunpack.c.l.b16 %v770
    %v842 = vunpack.c.l.b16 %v771
    %v843 = vunpack.c.l.b16 %v772
    %v844 = vunpack.c.l.b16 %v773
    %v845 = vunpack.c.l.b16 %v774
    %v846 = vunpack.c.l.b16 %v775
    %v847 = vunpack.c.l.b16 %v776
    %v848 = vunpack.c.l.b16 %v777
    %v849 = vunpack.c.l.b16 %v778
    %v850 = vunpack.c.l.b16 %v779
    %v851 = vunpack.c.l.b16 %v780
    %v852 = vunpack.c.l.b16 %v781
    %v853 = vunpack.c.l.b16 %v782
    %v854 = vunpack.c.l.b16 %v783
    %v855 = vunpack.c.l.b16 %v784
    %v856 = vunpack.c.l.b16 %v785
    %v857 = vunpack.c.l.b16 %v786
    %v858 = vunpack.c.l.b16 %v787
    %v859 = vunpack.c.l.b16 %v788
    %v860 = vunpack.c.l.b16 %v789
    %v861 = vunpack.c.l.b16 %v790
    %v862 = vunpack.c.l.b16 %v791
    %v863 = vunpack.c.l.b16 %v792
    %v864 = vunpack.c.l.b16 %v793
    %v865 = vunpack.c.l.b16 %v794
    %v866 = vunpack.c.l.b16 %v795
    %v867 = vunpack.c.l.b16 %v796
    %v868 = vpack.c.b16 %v837, %v836
    %v869 = vpack.c.b16 %v839, %v838
    %v870 = vpack.c.b16 %v841, %v840
    %v871 = vpack.c.b16 %v843, %v842
    %v872 = vpack.c.b16 %v845, %v844
    %v873 = vpack.c.b16 %v847, %v846
    %v874 = vpack.c.b16 %v849, %v848
    %v875 = vpack.c.b16 %v851, %v850
    %v876 = vpack.c.b16 %v853, %v852
    %v877 = vpack.c.b16 %v855, %v854
    %v878 = vpack.c.b16 %v857, %v856
    %v879 = vpack.c.b16 %v859, %v858
    %v880 = vpack.c.b16 %v861, %v860
    %v881 = vpack.c.b16 %v863, %v862
    %v882 = vpack.c.b16 %v865, %v864
    %v883 = vpack.c.b16 %v867, %v866
    %900 = vmatprep.subr.bf16.mxu0 0
    %901 = vmatpush1.bf16.msra.mxu0 %v868
    %902 = vmatprep.subr.bf16.mxu0 0
    %903 = vmatpush1.bf16.msra.mxu0 %v869
    %904 = vmatprep.subr.bf16.mxu0 0
    %905 = vmatpush1.bf16.msra.mxu0 %v870
    %906 = vmatprep.subr.bf16.mxu0 0
    %907 = vmatpush1.bf16.msra.mxu0 %v871
    %908 = vmatprep.subr.bf16.mxu0 0
    %909 = vmatpush1.bf16.msra.mxu0 %v872
    %910 = vmatprep.subr.bf16.mxu0 0
    %911 = vmatpush1.bf16.msra.mxu0 %v873
    %912 = vmatprep.subr.bf16.mxu0 0
    %913 = vmatpush1.bf16.msra.mxu0 %v874
    %914 = vmatprep.subr.bf16.mxu0 0
    %915 = vmatpush1.bf16.msra.mxu0 %v875
    %916 = vmatprep.subr.bf16.mxu0 0
    %917 = vmatpush1.bf16.msra.mxu0 %v876
    %918 = vmatprep.subr.bf16.mxu0 0
    %919 = vmatpush1.bf16.msra.mxu0 %v877
    %920 = vmatprep.subr.bf16.mxu0 0
    %921 = vmatpush1.bf16.msra.mxu0 %v878
    %922 = vmatprep.subr.bf16.mxu0 0
    %923 = vmatpush1.bf16.msra.mxu0 %v879
    %924 = vmatprep.subr.bf16.mxu0 0
    %925 = vmatpush1.bf16.msra.mxu0 %v880
    %926 = vmatprep.subr.bf16.mxu0 0
    %927 = vmatpush1.bf16.msra.mxu0 %v881
    %928 = vmatprep.subr.bf16.mxu0 0
    %929 = vmatpush1.bf16.msra.mxu0 %v882
    %930 = vmatprep.subr.bf16.mxu0 0
    %931 = vmatpush1.bf16.msra.mxu0 %v883
    %932 = vmatprep.mubr.bf16.mxu0 %v764
    %933 = vmatmul.mubr.bf16.gmra.mrb[0].mxu0 %v763
    %v934 = vpop.f32.mrb[0].mxu0
    %v935 = vadd.f32 %v802, %v934
    %v936 = vpop.f32.mrb[0].mxu0
    %v937 = vpop.f32.mrb[0].mxu0
    %v938 = vadd.f32 %v802, %v937
    %v939 = vpop.f32.mrb[0].mxu0
    %940 = vdwg.mxu0
    %v941 = vadd.f32 %v935, %v150
    %v942 = vadd.f32 %v938, %v151
    %v943 = vld [vmem:[%s8] sm:$0x1]
    %v944 = vld [vmem:[%s9] sm:$0x1]
    %945 = vadd.xlane.f32.xlu0 %v941
    %v946 = vpop.xlane.xlu0 %945
    %947 = vadd.xlane.f32.xlu0 %v942
    %v948 = vpop.xlane.xlu0 %947
    %v949 = vmul.f32 %v946, %v117
    %v950 = vmul.f32 %v948, %v117
    %v951 = vsub.f32 %v941, %v949
    %v952 = vsub.f32 %v942, %v950
    %v953 = vmul.f32 %v951, %v951
    %v954 = vmul.f32 %v952, %v952
    %955 = vadd.xlane.f32.xlu0 %v953
    %v956 = vpop.xlane.xlu0 %955
    %957 = vadd.xlane.f32.xlu0 %v954
    %v958 = vpop.xlane.xlu0 %957
    %v959 = vmul.f32 %v956, %v117
    %v960 = vmul.f32 %v958, %v117
    %v961 = vadd.f32 %v959, 1e-12
    %v962 = vadd.f32 %v960, 1e-12
    %v963 = vrsqrt.pop %v961
    %v964 = vrsqrt.pop %v962
    %v965 = vmul.f32 %v951, %v963
    %v966 = vmul.f32 %v952, %v964
    %v968 = vlaneseq
    %v969 = vshrl.u32 %v968, 7
    %v970 = vsub.s32 0, %v969
    %v971 = vrot.slane %v943, %v970
    %v973 = vmul.f32 %v965, %v971
    %v974 = vmul.f32 %v966, %v971
    %v976 = vlaneseq
    %v977 = vshrl.u32 %v976, 7
    %v978 = vsub.s32 0, %v977
    %v979 = vrot.slane %v944, %v978
    %v981 = vadd.f32 %v973, %v979
    %v982 = vadd.f32 %v974, %v979
    %v983 = vpack.c.bf16 %v982, %v981
    %v984 = vld [vmem:[%s10] sm:$0xff]
    %v985 = vld [vmem:[%s10 + $0x8] sm:$0xff]
    %v986 = vld [vmem:[%s10 + $0x10] sm:$0xff]
    %v987 = vld [vmem:[%s10 + $0x18] sm:$0xff]
    %v988 = vld [vmem:[%s10 + $0x20] sm:$0xff]
    %v989 = vld [vmem:[%s10 + $0x28] sm:$0xff]
    %v990 = vld [vmem:[%s10 + $0x30] sm:$0xff]
    %v991 = vld [vmem:[%s10 + $0x38] sm:$0xff]
    %v992 = vld [vmem:[%s10 + $0x40] sm:$0xff]
    %v993 = vld [vmem:[%s10 + $0x48] sm:$0xff]
    %v994 = vld [vmem:[%s10 + $0x50] sm:$0xff]
    %v995 = vld [vmem:[%s10 + $0x58] sm:$0xff]
    %v996 = vld [vmem:[%s10 + $0x60] sm:$0xff]
    %v997 = vld [vmem:[%s10 + $0x68] sm:$0xff]
    %v998 = vld [vmem:[%s10 + $0x70] sm:$0xff]
    %v999 = vld [vmem:[%s10 + $0x78] sm:$0xff]
    %v1000 = vld [vmem:[%s10 + $0x80] sm:$0xff]
    %v1001 = vld [vmem:[%s10 + $0x88] sm:$0xff]
    %v1002 = vld [vmem:[%s10 + $0x90] sm:$0xff]
    %v1003 = vld [vmem:[%s10 + $0x98] sm:$0xff]
    %v1004 = vld [vmem:[%s10 + $0xa0] sm:$0xff]
    %v1005 = vld [vmem:[%s10 + $0xa8] sm:$0xff]
    %v1006 = vld [vmem:[%s10 + $0xb0] sm:$0xff]
    %v1007 = vld [vmem:[%s10 + $0xb8] sm:$0xff]
    %v1008 = vld [vmem:[%s10 + $0xc0] sm:$0xff]
    %v1009 = vld [vmem:[%s10 + $0xc8] sm:$0xff]
    %v1010 = vld [vmem:[%s10 + $0xd0] sm:$0xff]
    %v1011 = vld [vmem:[%s10 + $0xd8] sm:$0xff]
    %v1012 = vld [vmem:[%s10 + $0xe0] sm:$0xff]
    %v1013 = vld [vmem:[%s10 + $0xe8] sm:$0xff]
    %v1014 = vld [vmem:[%s10 + $0xf0] sm:$0xff]
    %v1015 = vld [vmem:[%s10 + $0xf8] sm:$0xff]
    %v1016 = vld [vmem:[%s11] sm:$0xf]
    %v1018 = vlaneseq
    %v1019 = vshrl.u32 %v1018, 7
    %v1020 = vsub.s32 0, %v1019
    %v1021 = vrot.slane %v1016, %v1020
    %v1022 = vlaneseq
    %v1023 = vshrl.u32 %v1022, 7
    %v1024 = vsub.s32 1, %v1023
    %v1025 = vrot.slane %v1016, %v1024
    %v1026 = vlaneseq
    %v1027 = vshrl.u32 %v1026, 7
    %v1028 = vsub.s32 2, %v1027
    %v1029 = vrot.slane %v1016, %v1028
    %v1030 = vlaneseq
    %v1031 = vshrl.u32 %v1030, 7
    %v1032 = vsub.s32 3, %v1031
    %v1033 = vrot.slane %v1016, %v1032
    %v1070 = vunpack.c.l.b16 %v984
    %v1071 = vunpack.c.h.b16 %v984
    %v1072 = vunpack.c.l.b16 %v985
    %v1073 = vunpack.c.h.b16 %v985
    %v1074 = vunpack.c.l.b16 %v986
    %v1075 = vunpack.c.h.b16 %v986
    %v1076 = vunpack.c.l.b16 %v987
    %v1077 = vunpack.c.h.b16 %v987
    %v1078 = vunpack.c.l.b16 %v988
    %v1079 = vunpack.c.h.b16 %v988
    %v1080 = vunpack.c.l.b16 %v989
    %v1081 = vunpack.c.h.b16 %v989
    %v1082 = vunpack.c.l.b16 %v990
    %v1083 = vunpack.c.h.b16 %v990
    %v1084 = vunpack.c.l.b16 %v991
    %v1085 = vunpack.c.h.b16 %v991
    %v1086 = vunpack.c.l.b16 %v992
    %v1087 = vunpack.c.h.b16 %v992
    %v1088 = vunpack.c.l.b16 %v993
    %v1089 = vunpack.c.h.b16 %v993
    %v1090 = vunpack.c.l.b16 %v994
    %v1091 = vunpack.c.h.b16 %v994
    %v1092 = vunpack.c.l.b16 %v995
    %v1093 = vunpack.c.h.b16 %v995
    %v1094 = vunpack.c.l.b16 %v996
    %v1095 = vunpack.c.h.b16 %v996
    %v1096 = vunpack.c.l.b16 %v997
    %v1097 = vunpack.c.h.b16 %v997
    %v1098 = vunpack.c.l.b16 %v998
    %v1099 = vunpack.c.h.b16 %v998
    %v1100 = vunpack.c.l.b16 %v999
    %v1101 = vunpack.c.h.b16 %v999
    %v1102 = vunpack.c.l.b16 %v1000
    %v1103 = vunpack.c.h.b16 %v1000
    %v1104 = vunpack.c.l.b16 %v1001
    %v1105 = vunpack.c.h.b16 %v1001
    %v1106 = vunpack.c.l.b16 %v1002
    %v1107 = vunpack.c.h.b16 %v1002
    %v1108 = vunpack.c.l.b16 %v1003
    %v1109 = vunpack.c.h.b16 %v1003
    %v1110 = vunpack.c.l.b16 %v1004
    %v1111 = vunpack.c.h.b16 %v1004
    %v1112 = vunpack.c.l.b16 %v1005
    %v1113 = vunpack.c.h.b16 %v1005
    %v1114 = vunpack.c.l.b16 %v1006
    %v1115 = vunpack.c.h.b16 %v1006
    %v1116 = vunpack.c.l.b16 %v1007
    %v1117 = vunpack.c.h.b16 %v1007
    %v1118 = vunpack.c.l.b16 %v1008
    %v1119 = vunpack.c.h.b16 %v1008
    %v1120 = vunpack.c.l.b16 %v1009
    %v1121 = vunpack.c.h.b16 %v1009
    %v1122 = vunpack.c.l.b16 %v1010
    %v1123 = vunpack.c.h.b16 %v1010
    %v1124 = vunpack.c.l.b16 %v1011
    %v1125 = vunpack.c.h.b16 %v1011
    %v1126 = vunpack.c.l.b16 %v1012
    %v1127 = vunpack.c.h.b16 %v1012
    %v1128 = vunpack.c.l.b16 %v1013
    %v1129 = vunpack.c.h.b16 %v1013
    %v1130 = vunpack.c.l.b16 %v1014
    %v1131 = vunpack.c.h.b16 %v1014
    %v1132 = vunpack.c.l.b16 %v1015
    %v1133 = vunpack.c.h.b16 %v1015
    %v1134 = vpack.c.b16 %v1074, %v1070
    %v1135 = vpack.c.b16 %v1075, %v1071
    %v1136 = vpack.c.b16 %v1076, %v1072
    %v1137 = vpack.c.b16 %v1077, %v1073
    %v1138 = vpack.c.b16 %v1082, %v1078
    %v1139 = vpack.c.b16 %v1083, %v1079
    %v1140 = vpack.c.b16 %v1084, %v1080
    %v1141 = vpack.c.b16 %v1085, %v1081
    %v1142 = vpack.c.b16 %v1090, %v1086
    %v1143 = vpack.c.b16 %v1091, %v1087
    %v1144 = vpack.c.b16 %v1092, %v1088
    %v1145 = vpack.c.b16 %v1093, %v1089
    %v1146 = vpack.c.b16 %v1098, %v1094
    %v1147 = vpack.c.b16 %v1099, %v1095
    %v1148 = vpack.c.b16 %v1100, %v1096
    %v1149 = vpack.c.b16 %v1101, %v1097
    %v1150 = vpack.c.b16 %v1106, %v1102
    %v1151 = vpack.c.b16 %v1107, %v1103
    %v1152 = vpack.c.b16 %v1108, %v1104
    %v1153 = vpack.c.b16 %v1109, %v1105
    %v1154 = vpack.c.b16 %v1114, %v1110
    %v1155 = vpack.c.b16 %v1115, %v1111
    %v1156 = vpack.c.b16 %v1116, %v1112
    %v1157 = vpack.c.b16 %v1117, %v1113
    %v1158 = vpack.c.b16 %v1122, %v1118
    %v1159 = vpack.c.b16 %v1123, %v1119
    %v1160 = vpack.c.b16 %v1124, %v1120
    %v1161 = vpack.c.b16 %v1125, %v1121
    %v1162 = vpack.c.b16 %v1130, %v1126
    %v1163 = vpack.c.b16 %v1131, %v1127
    %v1164 = vpack.c.b16 %v1132, %v1128
    %v1165 = vpack.c.b16 %v1133, %v1129
    %1198 = vmatprep.subr.bf16.mxu0 %v1135
    %1199 = vmatpush1.bf16.msra.mxu0 %v1134
    %1200 = vmatprep.subr.bf16.mxu0 %v1139
    %1201 = vmatpush1.bf16.msra.mxu0 %v1138
    %1202 = vmatprep.subr.bf16.mxu0 %v1143
    %1203 = vmatpush1.bf16.msra.mxu0 %v1142
    %1204 = vmatprep.subr.bf16.mxu0 %v1147
    %1205 = vmatpush1.bf16.msra.mxu0 %v1146
    %1206 = vmatprep.subr.bf16.mxu0 %v1151
    %1207 = vmatpush1.bf16.msra.mxu0 %v1150
    %1208 = vmatprep.subr.bf16.mxu0 %v1155
    %1209 = vmatpush1.bf16.msra.mxu0 %v1154
    %1210 = vmatprep.subr.bf16.mxu0 %v1159
    %1211 = vmatpush1.bf16.msra.mxu0 %v1158
    %1212 = vmatprep.subr.bf16.mxu0 %v1163
    %1213 = vmatpush1.bf16.msra.mxu0 %v1162
    %1214 = vmatprep.subr.bf16.mxu0 0
    %1215 = vmatpush1.bf16.msra.mxu0 0
    %1216 = vmatprep.subr.bf16.mxu0 0
    %1217 = vmatpush1.bf16.msra.mxu0 0
    %1218 = vmatprep.subr.bf16.mxu0 0
    %1219 = vmatpush1.bf16.msra.mxu0 0
    %1220 = vmatprep.subr.bf16.mxu0 0
    %1221 = vmatpush1.bf16.msra.mxu0 0
    %1222 = vmatprep.subr.bf16.mxu0 0
    %1223 = vmatpush1.bf16.msra.mxu0 0
    %1224 = vmatprep.subr.bf16.mxu0 0
    %1225 = vmatpush1.bf16.msra.mxu0 0
    %1226 = vmatprep.subr.bf16.mxu0 0
    %1227 = vmatpush1.bf16.msra.mxu0 0
    %1228 = vmatprep.subr.bf16.mxu0 0
    %1229 = vmatpush1.bf16.msra.mxu0 0
    %1230 = vmatprep.mubr.bf16.mxu0 0
    %1231 = vmatmul.mubr.bf16.gmra.mrb[0].mxu0 %v983
    %v1232 = vpop.f32.mrb[0].mxu0
    %v1233 = vadd.f32 %v1021, %v1232
    %v1234 = vpop.f32.mrb[0].mxu0
    %v1235 = vadd.f32 %v1025, %v1234
    %v1236 = vpop.f32.mrb[0].mxu0
    %v1237 = vadd.f32 %v1021, %v1236
    %v1238 = vpop.f32.mrb[0].mxu0
    %v1239 = vadd.f32 %v1025, %v1238
    %1240 = vdwg.mxu0
    %1241 = vmatprep.subr.bf16.mxu0 %v1137
    %1242 = vmatpush1.bf16.msra.mxu0 %v1136
    %1243 = vmatprep.subr.bf16.mxu0 %v1141
    %1244 = vmatpush1.bf16.msra.mxu0 %v1140
    %1245 = vmatprep.subr.bf16.mxu0 %v1145
    %1246 = vmatpush1.bf16.msra.mxu0 %v1144
    %1247 = vmatprep.subr.bf16.mxu0 %v1149
    %1248 = vmatpush1.bf16.msra.mxu0 %v1148
    %1249 = vmatprep.subr.bf16.mxu0 %v1153
    %1250 = vmatpush1.bf16.msra.mxu0 %v1152
    %1251 = vmatprep.subr.bf16.mxu0 %v1157
    %1252 = vmatpush1.bf16.msra.mxu0 %v1156
    %1253 = vmatprep.subr.bf16.mxu0 %v1161
    %1254 = vmatpush1.bf16.msra.mxu0 %v1160
    %1255 = vmatprep.subr.bf16.mxu0 %v1165
    %1256 = vmatpush1.bf16.msra.mxu0 %v1164
    %1257 = vmatprep.subr.bf16.mxu0 0
    %1258 = vmatpush1.bf16.msra.mxu0 0
    %1259 = vmatprep.subr.bf16.mxu0 0
    %1260 = vmatpush1.bf16.msra.mxu0 0
    %1261 = vmatprep.subr.bf16.mxu0 0
    %1262 = vmatpush1.bf16.msra.mxu0 0
    %1263 = vmatprep.subr.bf16.mxu0 0
    %1264 = vmatpush1.bf16.msra.mxu0 0
    %1265 = vmatprep.subr.bf16.mxu0 0
    %1266 = vmatpush1.bf16.msra.mxu0 0
    %1267 = vmatprep.subr.bf16.mxu0 0
    %1268 = vmatpush1.bf16.msra.mxu0 0
    %1269 = vmatprep.subr.bf16.mxu0 0
    %1270 = vmatpush1.bf16.msra.mxu0 0
    %1271 = vmatprep.subr.bf16.mxu0 0
    %1272 = vmatpush1.bf16.msra.mxu0 0
    %1273 = vmatprep.mubr.bf16.mxu0 0
    %1274 = vmatmul.mubr.bf16.gmra.mrb[0].mxu0 %v983
    %v1275 = vpop.f32.mrb[0].mxu0
    %v1276 = vadd.f32 %v1029, %v1275
    %v1277 = vpop.f32.mrb[0].mxu0
    %v1278 = vadd.f32 %v1033, %v1277
    %v1279 = vpop.f32.mrb[0].mxu0
    %v1280 = vadd.f32 %v1029, %v1279
    %v1281 = vpop.f32.mrb[0].mxu0
    %v1282 = vadd.f32 %v1033, %v1281
    %1283 = vdwg.mxu0
    %v1284 = vmul.f32 %v1233, 0.5
    %v1285 = vmul.f32 %v1235, 0.5
    %v1286 = vmul.f32 %v1276, 0.5
    %v1287 = vmul.f32 %v1278, 0.5
    %v1288 = vmul.f32 %v1237, 0.5
    %v1289 = vmul.f32 %v1239, 0.5
    %v1290 = vmul.f32 %v1280, 0.5
    %v1291 = vmul.f32 %v1282, 0.5
    %v1292 = vmul.f32 %v1233, 0.044715
    %v1293 = vmul.f32 %v1235, 0.044715
    %v1294 = vmul.f32 %v1276, 0.044715
    %v1295 = vmul.f32 %v1278, 0.044715
    %v1296 = vmul.f32 %v1237, 0.044715
    %v1297 = vmul.f32 %v1239, 0.044715
    %v1298 = vmul.f32 %v1280, 0.044715
    %v1299 = vmul.f32 %v1282, 0.044715
    %v1300 = vmul.f32 %v1292, %v1233
    %v1301 = vmul.f32 %v1293, %v1235
    %v1302 = vmul.f32 %v1294, %v1276
    %v1303 = vmul.f32 %v1295, %v1278
    %v1304 = vmul.f32 %v1296, %v1237
    %v1305 = vmul.f32 %v1297, %v1239
    %v1306 = vmul.f32 %v1298, %v1280
    %v1307 = vmul.f32 %v1299, %v1282
    %v1308 = vmul.f32 %v1300, %v1233
    %v1309 = vmul.f32 %v1301, %v1235
    %v1310 = vmul.f32 %v1302, %v1276
    %v1311 = vmul.f32 %v1303, %v1278
    %v1312 = vmul.f32 %v1304, %v1237
    %v1313 = vmul.f32 %v1305, %v1239
    %v1314 = vmul.f32 %v1306, %v1280
    %v1315 = vmul.f32 %v1307, %v1282
    %v1316 = vadd.f32 %v1233, %v1308
    %v1317 = vadd.f32 %v1235, %v1309
    %v1318 = vadd.f32 %v1276, %v1310
    %v1319 = vadd.f32 %v1278, %v1311
    %v1320 = vadd.f32 %v1237, %v1312
    %v1321 = vadd.f32 %v1239, %v1313
    %v1322 = vadd.f32 %v1280, %v1314
    %v1323 = vadd.f32 %v1282, %v1315
    %v1324 = vmul.f32 %v1316, 0.7978846
    %v1325 = vmul.f32 %v1317, 0.7978846
    %v1326 = vmul.f32 %v1318, 0.7978846
    %v1327 = vmul.f32 %v1319, 0.7978846
    %v1328 = vmul.f32 %v1320, 0.7978846
    %v1329 = vmul.f32 %v1321, 0.7978846
    %v1330 = vmul.f32 %v1322, 0.7978846
    %v1331 = vmul.f32 %v1323, 0.7978846
    %v1332 = vtanh.pop %v1324
    %v1333 = vtanh.pop %v1325
    %v1334 = vtanh.pop %v1326
    %v1335 = vtanh.pop %v1327
    %v1336 = vtanh.pop %v1328
    %v1337 = vtanh.pop %v1329
    %v1338 = vtanh.pop %v1330
    %v1339 = vtanh.pop %v1331
    %v1340 = vadd.f32 %v1332, 1.0
    %v1341 = vadd.f32 %v1333, 1.0
    %v1342 = vadd.f32 %v1334, 1.0
    %v1343 = vadd.f32 %v1335, 1.0
    %v1344 = vadd.f32 %v1336, 1.0
    %v1345 = vadd.f32 %v1337, 1.0
    %v1346 = vadd.f32 %v1338, 1.0
    %v1347 = vadd.f32 %v1339, 1.0
    %v1348 = vmul.f32 %v1284, %v1340
    %v1349 = vmul.f32 %v1285, %v1341
    %v1350 = vmul.f32 %v1286, %v1342
    %v1351 = vmul.f32 %v1287, %v1343
    %v1352 = vmul.f32 %v1288, %v1344
    %v1353 = vmul.f32 %v1289, %v1345
    %v1354 = vmul.f32 %v1290, %v1346
    %v1355 = vmul.f32 %v1291, %v1347
    %v1356 = vpack.c.bf16 %v1352, %v1348
    %v1357 = vpack.c.bf16 %v1353, %v1349
    %v1358 = vpack.c.bf16 %v1354, %v1350
    %v1359 = vpack.c.bf16 %v1355, %v1351
    %v1360 = vld [vmem:[#allocation7] sm:$0xf]
    %v1361 = vld [vmem:[#allocation7 + $0x4] sm:$0xf]
    %v1362 = vld [vmem:[#allocation7 + $0x8] sm:$0xf]
    %v1363 = vld [vmem:[#allocation7 + $0xc] sm:$0xf]
    %v1364 = vld [vmem:[#allocation7 + $0x10] sm:$0xf]
    %v1365 = vld [vmem:[#allocation7 + $0x14] sm:$0xf]
    %v1366 = vld [vmem:[#allocation7 + $0x18] sm:$0xf]
    %v1367 = vld [vmem:[#allocation7 + $0x1c] sm:$0xf]
    %v1368 = vld [vmem:[#allocation7 + $0x20] sm:$0xf]
    %v1369 = vld [vmem:[#allocation7 + $0x24] sm:$0xf]
    %v1370 = vld [vmem:[#allocation7 + $0x28] sm:$0xf]
    %v1371 = vld [vmem:[#allocation7 + $0x2c] sm:$0xf]
    %v1372 = vld [vmem:[#allocation7 + $0x30] sm:$0xf]
    %v1373 = vld [vmem:[#allocation7 + $0x34] sm:$0xf]
    %v1374 = vld [vmem:[#allocation7 + $0x38] sm:$0xf]
    %v1375 = vld [vmem:[#allocation7 + $0x3c] sm:$0xf]
    %v1376 = vld [vmem:[#allocation7 + $0x40] sm:$0xf]
    %v1377 = vld [vmem:[#allocation7 + $0x44] sm:$0xf]
    %v1378 = vld [vmem:[#allocation7 + $0x48] sm:$0xf]
    %v1379 = vld [vmem:[#allocation7 + $0x4c] sm:$0xf]
    %v1380 = vld [vmem:[#allocation7 + $0x50] sm:$0xf]
    %v1381 = vld [vmem:[#allocation7 + $0x54] sm:$0xf]
    %v1382 = vld [vmem:[#allocation7 + $0x58] sm:$0xf]
    %v1383 = vld [vmem:[#allocation7 + $0x5c] sm:$0xf]
    %v1384 = vld [vmem:[#allocation7 + $0x60] sm:$0xf]
    %v1385 = vld [vmem:[#allocation7 + $0x64] sm:$0xf]
    %v1386 = vld [vmem:[#allocation7 + $0x68] sm:$0xf]
    %v1387 = vld [vmem:[#allocation7 + $0x6c] sm:$0xf]
    %v1388 = vld [vmem:[#allocation7 + $0x70] sm:$0xf]
    %v1389 = vld [vmem:[#allocation7 + $0x74] sm:$0xf]
    %v1390 = vld [vmem:[#allocation7 + $0x78] sm:$0xf]
    %v1391 = vld [vmem:[#allocation7 + $0x7c] sm:$0xf]
    %v1392 = vld [vmem:[#allocation7 + $0x80] sm:$0xf]
    %v1393 = vld [vmem:[#allocation7 + $0x84] sm:$0xf]
    %v1394 = vld [vmem:[#allocation7 + $0x88] sm:$0xf]
    %v1395 = vld [vmem:[#allocation7 + $0x8c] sm:$0xf]
    %v1396 = vld [vmem:[#allocation7 + $0x90] sm:$0xf]
    %v1397 = vld [vmem:[#allocation7 + $0x94] sm:$0xf]
    %v1398 = vld [vmem:[#allocation7 + $0x98] sm:$0xf]
    %v1399 = vld [vmem:[#allocation7 + $0x9c] sm:$0xf]
    %v1400 = vld [vmem:[#allocation7 + $0xa0] sm:$0xf]
    %v1401 = vld [vmem:[#allocation7 + $0xa4] sm:$0xf]
    %v1402 = vld [vmem:[#allocation7 + $0xa8] sm:$0xf]
    %v1403 = vld [vmem:[#allocation7 + $0xac] sm:$0xf]
    %v1404 = vld [vmem:[#allocation7 + $0xb0] sm:$0xf]
    %v1405 = vld [vmem:[#allocation7 + $0xb4] sm:$0xf]
    %v1406 = vld [vmem:[#allocation7 + $0xb8] sm:$0xf]
    %v1407 = vld [vmem:[#allocation7 + $0xbc] sm:$0xf]
    %v1408 = vld [vmem:[#allocation7 + $0xc0] sm:$0xf]
    %v1409 = vld [vmem:[#allocation7 + $0xc4] sm:$0xf]
    %v1410 = vld [vmem:[#allocation7 + $0xc8] sm:$0xf]
    %v1411 = vld [vmem:[#allocation7 + $0xcc] sm:$0xf]
    %v1412 = vld [vmem:[#allocation7 + $0xd0] sm:$0xf]
    %v1413 = vld [vmem:[#allocation7 + $0xd4] sm:$0xf]
    %v1414 = vld [vmem:[#allocation7 + $0xd8] sm:$0xf]
    %v1415 = vld [vmem:[#allocation7 + $0xdc] sm:$0xf]
    %v1416 = vld [vmem:[#allocation7 + $0xe0] sm:$0xf]
    %v1417 = vld [vmem:[#allocation7 + $0xe4] sm:$0xf]
    %v1418 = vld [vmem:[#allocation7 + $0xe8] sm:$0xf]
    %v1419 = vld [vmem:[#allocation7 + $0xec] sm:$0xf]
    %v1420 = vld [vmem:[#allocation7 + $0xf0] sm:$0xf]
    %v1421 = vld [vmem:[#allocation7 + $0xf4] sm:$0xf]
    %v1422 = vld [vmem:[#allocation7 + $0xf8] sm:$0xf]
    %v1423 = vld [vmem:[#allocation7 + $0xfc] sm:$0xf]
    %v1424 = vld [vmem:[%s13] sm:$0x1]
    %v1426 = vlaneseq
    %v1427 = vshrl.u32 %v1426, 7
    %v1428 = vsub.s32 0, %v1427
    %v1429 = vrot.slane %v1424, %v1428
    %v1495 = vunpack.c.l.b16 %v1360
    %v1496 = vunpack.c.l.b16 %v1361
    %v1497 = vunpack.c.l.b16 %v1362
    %v1498 = vunpack.c.l.b16 %v1363
    %v1499 = vunpack.c.l.b16 %v1364
    %v1500 = vunpack.c.l.b16 %v1365
    %v1501 = vunpack.c.l.b16 %v1366
    %v1502 = vunpack.c.l.b16 %v1367
    %v1503 = vunpack.c.l.b16 %v1368
    %v1504 = vunpack.c.l.b16 %v1369
    %v1505 = vunpack.c.l.b16 %v1370
    %v1506 = vunpack.c.l.b16 %v1371
    %v1507 = vunpack.c.l.b16 %v1372
    %v1508 = vunpack.c.l.b16 %v1373
    %v1509 = vunpack.c.l.b16 %v1374
    %v1510 = vunpack.c.l.b16 %v1375
    %v1511 = vunpack.c.l.b16 %v1376
    %v1512 = vunpack.c.l.b16 %v1377
    %v1513 = vunpack.c.l.b16 %v1378
    %v1514 = vunpack.c.l.b16 %v1379
    %v1515 = vunpack.c.l.b16 %v1380
    %v1516 = vunpack.c.l.b16 %v1381
    %v1517 = vunpack.c.l.b16 %v1382
    %v1518 = vunpack.c.l.b16 %v1383
    %v1519 = vunpack.c.l.b16 %v1384
    %v1520 = vunpack.c.l.b16 %v1385
    %v1521 = vunpack.c.l.b16 %v1386
    %v1522 = vunpack.c.l.b16 %v1387
    %v1523 = vunpack.c.l.b16 %v1388
    %v1524 = vunpack.c.l.b16 %v1389
    %v1525 = vunpack.c.l.b16 %v1390
    %v1526 = vunpack.c.l.b16 %v1391
    %v1527 = vunpack.c.l.b16 %v1392
    %v1528 = vunpack.c.l.b16 %v1393
    %v1529 = vunpack.c.l.b16 %v1394
    %v1530 = vunpack.c.l.b16 %v1395
    %v1531 = vunpack.c.l.b16 %v1396
    %v1532 = vunpack.c.l.b16 %v1397
    %v1533 = vunpack.c.l.b16 %v1398
    %v1534 = vunpack.c.l.b16 %v1399
    %v1535 = vunpack.c.l.b16 %v1400
    %v1536 = vunpack.c.l.b16 %v1401
    %v1537 = vunpack.c.l.b16 %v1402
    %v1538 = vunpack.c.l.b16 %v1403
    %v1539 = vunpack.c.l.b16 %v1404
    %v1540 = vunpack.c.l.b16 %v1405
    %v1541 = vunpack.c.l.b16 %v1406
    %v1542 = vunpack.c.l.b16 %v1407
    %v1543 = vunpack.c.l.b16 %v1408
    %v1544 = vunpack.c.l.b16 %v1409
    %v1545 = vunpack.c.l.b16 %v1410
    %v1546 = vunpack.c.l.b16 %v1411
    %v1547 = vunpack.c.l.b16 %v1412
    %v1548 = vunpack.c.l.b16 %v1413
    %v1549 = vunpack.c.l.b16 %v1414
    %v1550 = vunpack.c.l.b16 %v1415
    %v1551 = vunpack.c.l.b16 %v1416
    %v1552 = vunpack.c.l.b16 %v1417
    %v1553 = vunpack.c.l.b16 %v1418
    %v1554 = vunpack.c.l.b16 %v1419
    %v1555 = vunpack.c.l.b16 %v1420
    %v1556 = vunpack.c.l.b16 %v1421
    %v1557 = vunpack.c.l.b16 %v1422
    %v1558 = vunpack.c.l.b16 %v1423
    %v1559 = vpack.c.b16 %v1496, %v1495
    %v1560 = vpack.c.b16 %v1498, %v1497
    %v1561 = vpack.c.b16 %v1500, %v1499
    %v1562 = vpack.c.b16 %v1502, %v1501
    %v1563 = vpack.c.b16 %v1504, %v1503
    %v1564 = vpack.c.b16 %v1506, %v1505
    %v1565 = vpack.c.b16 %v1508, %v1507
    %v1566 = vpack.c.b16 %v1510, %v1509
    %v1567 = vpack.c.b16 %v1512, %v1511
    %v1568 = vpack.c.b16 %v1514, %v1513
    %v1569 = vpack.c.b16 %v1516, %v1515
    %v1570 = vpack.c.b16 %v1518, %v1517
    %v1571 = vpack.c.b16 %v1520, %v1519
    %v1572 = vpack.c.b16 %v1522, %v1521
    %v1573 = vpack.c.b16 %v1524, %v1523
    %v1574 = vpack.c.b16 %v1526, %v1525
    %v1575 = vpack.c.b16 %v1528, %v1527
    %v1576 = vpack.c.b16 %v1530, %v1529
    %v1577 = vpack.c.b16 %v1532, %v1531
    %v1578 = vpack.c.b16 %v1534, %v1533
    %v1579 = vpack.c.b16 %v1536, %v1535
    %v1580 = vpack.c.b16 %v1538, %v1537
    %v1581 = vpack.c.b16 %v1540, %v1539
    %v1582 = vpack.c.b16 %v1542, %v1541
    %v1583 = vpack.c.b16 %v1544, %v1543
    %v1584 = vpack.c.b16 %v1546, %v1545
    %v1585 = vpack.c.b16 %v1548, %v1547
    %v1586 = vpack.c.b16 %v1550, %v1549
    %v1587 = vpack.c.b16 %v1552, %v1551
    %v1588 = vpack.c.b16 %v1554, %v1553
    %v1589 = vpack.c.b16 %v1556, %v1555
    %v1590 = vpack.c.b16 %v1558, %v1557
    %1623 = vmatprep.subr.bf16.mxu0 0
    %1624 = vmatpush1.bf16.msra.mxu0 %v1559
    %1625 = vmatprep.subr.bf16.mxu0 0
    %1626 = vmatpush1.bf16.msra.mxu0 %v1560
    %1627 = vmatprep.subr.bf16.mxu0 0
    %1628 = vmatpush1.bf16.msra.mxu0 %v1561
    %1629 = vmatprep.subr.bf16.mxu0 0
    %1630 = vmatpush1.bf16.msra.mxu0 %v1562
    %1631 = vmatprep.subr.bf16.mxu0 0
    %1632 = vmatpush1.bf16.msra.mxu0 %v1563
    %1633 = vmatprep.subr.bf16.mxu0 0
    %1634 = vmatpush1.bf16.msra.mxu0 %v1564
    %1635 = vmatprep.subr.bf16.mxu0 0
    %1636 = vmatpush1.bf16.msra.mxu0 %v1565
    %1637 = vmatprep.subr.bf16.mxu0 0
    %1638 = vmatpush1.bf16.msra.mxu0 %v1566
    %1639 = vmatprep.subr.bf16.mxu0 0
    %1640 = vmatpush1.bf16.msra.mxu0 %v1567
    %1641 = vmatprep.subr.bf16.mxu0 0
    %1642 = vmatpush1.bf16.msra.mxu0 %v1568
    %1643 = vmatprep.subr.bf16.mxu0 0
    %1644 = vmatpush1.bf16.msra.mxu0 %v1569
    %1645 = vmatprep.subr.bf16.mxu0 0
    %1646 = vmatpush1.bf16.msra.mxu0 %v1570
    %1647 = vmatprep.subr.bf16.mxu0 0
    %1648 = vmatpush1.bf16.msra.mxu0 %v1571
    %1649 = vmatprep.subr.bf16.mxu0 0
    %1650 = vmatpush1.bf16.msra.mxu0 %v1572
    %1651 = vmatprep.subr.bf16.mxu0 0
    %1652 = vmatpush1.bf16.msra.mxu0 %v1573
    %1653 = vmatprep.subr.bf16.mxu0 0
    %1654 = vmatpush1.bf16.msra.mxu0 %v1574
    %1655 = vmatprep.mubr.bf16.mxu0 %v1357
    %1656 = vmatmul.mubr.bf16.gmra.mrb[0].mxu0 %v1356
    %v1657 = vpop.f32.mrb[0].mxu0
    %v1658 = vadd.f32 %v1429, %v1657
    %v1659 = vpop.f32.mrb[0].mxu0
    %v1660 = vpop.f32.mrb[0].mxu0
    %v1661 = vadd.f32 %v1429, %v1660
    %v1662 = vpop.f32.mrb[0].mxu0
    %1663 = vdwg.mxu0
    %1664 = vmatprep.subr.bf16.mxu0 0
    %1665 = vmatpush1.bf16.msra.mxu0 %v1575
    %1666 = vmatprep.subr.bf16.mxu0 0
    %1667 = vmatpush1.bf16.msra.mxu0 %v1576
    %1668 = vmatprep.subr.bf16.mxu0 0
    %1669 = vmatpush1.bf16.msra.mxu0 %v1577
    %1670 = vmatprep.subr.bf16.mxu0 0
    %1671 = vmatpush1.bf16.msra.mxu0 %v1578
    %1672 = vmatprep.subr.bf16.mxu0 0
    %1673 = vmatpush1.bf16.msra.mxu0 %v1579
    %1674 = vmatprep.subr.bf16.mxu0 0
    %1675 = vmatpush1.bf16.msra.mxu0 %v1580
    %1676 = vmatprep.subr.bf16.mxu0 0
    %1677 = vmatpush1.bf16.msra.mxu0 %v1581
    %1678 = vmatprep.subr.bf16.mxu0 0
    %1679 = vmatpush1.bf16.msra.mxu0 %v1582
    %1680 = vmatprep.subr.bf16.mxu0 0
    %1681 = vmatpush1.bf16.msra.mxu0 %v1583
    %1682 = vmatprep.subr.bf16.mxu0 0
    %1683 = vmatpush1.bf16.msra.mxu0 %v1584
    %1684 = vmatprep.subr.bf16.mxu0 0
    %1685 = vmatpush1.bf16.msra.mxu0 %v1585
    %1686 = vmatprep.subr.bf16.mxu0 0
    %1687 = vmatpush1.bf16.msra.mxu0 %v1586
    %1688 = vmatprep.subr.bf16.mxu0 0
    %1689 = vmatpush1.bf16.msra.mxu0 %v1587
    %1690 = vmatprep.subr.bf16.mxu0 0
    %1691 = vmatpush1.bf16.msra.mxu0 %v1588
    %1692 = vmatprep.subr.bf16.mxu0 0
    %1693 = vmatpush1.bf16.msra.mxu0 %v1589
    %1694 = vmatprep.subr.bf16.mxu0 0
    %1695 = vmatpush1.bf16.msra.mxu0 %v1590
    %1696 = vmatprep.mubr.bf16.mxu0 %v1359
    %1697 = vmatmul.mubr.bf16.gmra.mrb[0].mxu0 %v1358
    %v1698 = vpop.f32.mrb[0].mxu0
    %v1699 = vadd.f32 %v1658, %v1698
    %v1700 = vpop.f32.mrb[0].mxu0
    %v1701 = vpop.f32.mrb[0].mxu0
    %v1702 = vadd.f32 %v1661, %v1701
    %v1703 = vpop.f32.mrb[0].mxu0
    %1704 = vdwg.mxu0
    %v1705 = vadd.f32 %v1699, %v981
    %v1706 = vadd.f32 %v1702, %v982
    %v1707 = vld [vmem:[%s14] sm:$0x1]
    %v1708 = vld [vmem:[%s15] sm:$0x1]
    %1709 = vadd.xlane.f32.xlu0 %v1705
    %v1710 = vpop.xlane.xlu0 %1709
    %1711 = vadd.xlane.f32.xlu0 %v1706
    %v1712 = vpop.xlane.xlu0 %1711
    %v1713 = vmul.f32 %v1710, %v117
    %v1714 = vmul.f32 %v1712, %v117
    %v1715 = vsub.f32 %v1705, %v1713
    %v1716 = vsub.f32 %v1706, %v1714
    %v1717 = vmul.f32 %v1715, %v1715
    %v1718 = vmul.f32 %v1716, %v1716
    %1719 = vadd.xlane.f32.xlu0 %v1717
    %v1720 = vpop.xlane.xlu0 %1719
    %1721 = vadd.xlane.f32.xlu0 %v1718
    %v1722 = vpop.xlane.xlu0 %1721
    %v1723 = vmul.f32 %v1720, %v117
    %v1724 = vmul.f32 %v1722, %v117
    %v1725 = vadd.f32 %v1723, 1e-12
    %v1726 = vadd.f32 %v1724, 1e-12
    %v1727 = vrsqrt.pop %v1725
    %v1728 = vrsqrt.pop %v1726
    %v1729 = vmul.f32 %v1715, %v1727
    %v1730 = vmul.f32 %v1716, %v1728
    %v1732 = vlaneseq
    %v1733 = vshrl.u32 %v1732, 7
    %v1734 = vsub.s32 0, %v1733
    %v1735 = vrot.slane %v1707, %v1734
    %v1737 = vmul.f32 %v1729, %v1735
    %v1738 = vmul.f32 %v1730, %v1735
    %v1740 = vlaneseq
    %v1741 = vshrl.u32 %v1740, 7
    %v1742 = vsub.s32 0, %v1741
    %v1743 = vrot.slane %v1708, %v1742
    %v1745 = vadd.f32 %v1737, %v1743
    %v1746 = vadd.f32 %v1738, %v1743
    %v1747 = vpack.c.bf16 %v1746, %v1745
    %s1748 = scalar_lea.vmem [#allocation3], 384
    %v1749 = vld [vmem:[%s1748] sm:$0xff]
    %v1750 = vld [vmem:[%s1748 + $0x8] sm:$0xff]
    %v1751 = vld [vmem:[%s1748 + $0x10] sm:$0xff]
    %v1752 = vld [vmem:[%s1748 + $0x18] sm:$0xff]
    %v1753 = vld [vmem:[%s1748 + $0x20] sm:$0xff]
    %v1754 = vld [vmem:[%s1748 + $0x28] sm:$0xff]
    %v1755 = vld [vmem:[%s1748 + $0x30] sm:$0xff]
    %v1756 = vld [vmem:[%s1748 + $0x38] sm:$0xff]
    %v1757 = vld [vmem:[%s1748 + $0x40] sm:$0xff]
    %v1758 = vld [vmem:[%s1748 + $0x48] sm:$0xff]
    %v1759 = vld [vmem:[%s1748 + $0x50] sm:$0xff]
    %v1760 = vld [vmem:[%s1748 + $0x58] sm:$0xff]
    %v1761 = vld [vmem:[%s1748 + $0x60] sm:$0xff]
    %v1762 = vld [vmem:[%s1748 + $0x68] sm:$0xff]
    %v1763 = vld [vmem:[%s1748 + $0x70] sm:$0xff]
    %v1764 = vld [vmem:[%s1748 + $0x78] sm:$0xff]
    %v1765 = vld [vmem:[%s1748 + $0x80] sm:$0xff]
    %v1766 = vld [vmem:[%s1748 + $0x88] sm:$0xff]
    %v1767 = vld [vmem:[%s1748 + $0x90] sm:$0xff]
    %v1768 = vld [vmem:[%s1748 + $0x98] sm:$0xff]
    %v1769 = vld [vmem:[%s1748 + $0xa0] sm:$0xff]
    %v1770 = vld [vmem:[%s1748 + $0xa8] sm:$0xff]
    %v1771 = vld [vmem:[%s1748 + $0xb0] sm:$0xff]
    %v1772 = vld [vmem:[%s1748 + $0xb8] sm:$0xff]
    %v1773 = vld [vmem:[%s1748 + $0xc0] sm:$0xff]
    %v1774 = vld [vmem:[%s1748 + $0xc8] sm:$0xff]
    %v1775 = vld [vmem:[%s1748 + $0xd0] sm:$0xff]
    %v1776 = vld [vmem:[%s1748 + $0xd8] sm:$0xff]
    %v1777 = vld [vmem:[%s1748 + $0xe0] sm:$0xff]
    %v1778 = vld [vmem:[%s1748 + $0xe8] sm:$0xff]
    %v1779 = vld [vmem:[%s1748 + $0xf0] sm:$0xff]
    %v1780 = vld [vmem:[%s1748 + $0xf8] sm:$0xff]
    %v1781 = vld [vmem:[%s1748 + $0x100] sm:$0xff]
    %v1782 = vld [vmem:[%s1748 + $0x108] sm:$0xff]
    %v1783 = vld [vmem:[%s1748 + $0x110] sm:$0xff]
    %v1784 = vld [vmem:[%s1748 + $0x118] sm:$0xff]
    %v1785 = vld [vmem:[%s1748 + $0x120] sm:$0xff]
    %v1786 = vld [vmem:[%s1748 + $0x128] sm:$0xff]
    %v1787 = vld [vmem:[%s1748 + $0x130] sm:$0xff]
    %v1788 = vld [vmem:[%s1748 + $0x138] sm:$0xff]
    %v1789 = vld [vmem:[%s1748 + $0x140] sm:$0xff]
    %v1790 = vld [vmem:[%s1748 + $0x148] sm:$0xff]
    %v1791 = vld [vmem:[%s1748 + $0x150] sm:$0xff]
    %v1792 = vld [vmem:[%s1748 + $0x158] sm:$0xff]
    %v1793 = vld [vmem:[%s1748 + $0x160] sm:$0xff]
    %v1794 = vld [vmem:[%s1748 + $0x168] sm:$0xff]
    %v1795 = vld [vmem:[%s1748 + $0x170] sm:$0xff]
    %v1796 = vld [vmem:[%s1748 + $0x178] sm:$0xff]
    %s1797 = scalar_lea.vmem %s5, 6
    %v1798 = vld [vmem:[%s1797] sm:$0x3f]
    %v1800 = vlaneseq
    %v1801 = vshrl.u32 %v1800, 7
    %v1802 = vsub.s32 0, %v1801
    %v1803 = vrot.slane %v1798, %v1802
    %v1804 = vlaneseq
    %v1805 = vshrl.u32 %v1804, 7
    %v1806 = vsub.s32 1, %v1805
    %v1807 = vrot.slane %v1798, %v1806
    %v1808 = vlaneseq
    %v1809 = vshrl.u32 %v1808, 7
    %v1810 = vsub.s32 2, %v1809
    %v1811 = vrot.slane %v1798, %v1810
    %v1812 = vlaneseq
    %v1813 = vshrl.u32 %v1812, 7
    %v1814 = vsub.s32 3, %v1813
    %v1815 = vrot.slane %v1798, %v1814
    %v1816 = vlaneseq
    %v1817 = vshrl.u32 %v1816, 7
    %v1818 = vsub.s32 4, %v1817
    %v1819 = vrot.slane %v1798, %v1818
    %v1820 = vlaneseq
    %v1821 = vshrl.u32 %v1820, 7
    %v1822 = vsub.s32 5, %v1821
    %v1823 = vrot.slane %v1798, %v1822
    %v1878 = vunpack.c.l.b16 %v1749
    %v1879 = vunpack.c.h.b16 %v1749
    %v1880 = vunpack.c.l.b16 %v1750
    %v1881 = vunpack.c.h.b16 %v1750
    %v1882 = vunpack.c.l.b16 %v1751
    %v1883 = vunpack.c.h.b16 %v1751
    %v1884 = vunpack.c.l.b16 %v1752
    %v1885 = vunpack.c.h.b16 %v1752
    %v1886 = vunpack.c.l.b16 %v1753
    %v1887 = vunpack.c.h.b16 %v1753
    %v1888 = vunpack.c.l.b16 %v1754
    %v1889 = vunpack.c.h.b16 %v1754
    %v1890 = vunpack.c.l.b16 %v1755
    %v1891 = vunpack.c.h.b16 %v1755
    %v1892 = vunpack.c.l.b16 %v1756
    %v1893 = vunpack.c.h.b16 %v1756
    %v1894 = vunpack.c.l.b16 %v1757
    %v1895 = vunpack.c.h.b16 %v1757
    %v1896 = vunpack.c.l.b16 %v1758
    %v1897 = vunpack.c.h.b16 %v1758
    %v1898 = vunpack.c.l.b16 %v1759
    %v1899 = vunpack.c.h.b16 %v1759
    %v1900 = vunpack.c.l.b16 %v1760
    %v1901 = vunpack.c.h.b16 %v1760
    %v1902 = vunpack.c.l.b16 %v1761
    %v1903 = vunpack.c.h.b16 %v1761
    %v1904 = vunpack.c.l.b16 %v1762
    %v1905 = vunpack.c.h.b16 %v1762
    %v1906 = vunpack.c.l.b16 %v1763
    %v1907 = vunpack.c.h.b16 %v1763
    %v1908 = vunpack.c.l.b16 %v1764
    %v1909 = vunpack.c.h.b16 %v1764
    %v1910 = vunpack.c.l.b16 %v1765
    %v1911 = vunpack.c.h.b16 %v1765
    %v1912 = vunpack.c.l.b16 %v1766
    %v1913 = vunpack.c.h.b16 %v1766
    %v1914 = vunpack.c.l.b16 %v1767
    %v1915 = vunpack.c.h.b16 %v1767
    %v1916 = vunpack.c.l.b16 %v1768
    %v1917 = vunpack.c.h.b16 %v1768
    %v1918 = vunpack.c.l.b16 %v1769
    %v1919 = vunpack.c.h.b16 %v1769
    %v1920 = vunpack.c.l.b16 %v1770
    %v1921 = vunpack.c.h.b16 %v1770
    %v1922 = vunpack.c.l.b16 %v1771
    %v1923 = vunpack.c.h.b16 %v1771
    %v1924 = vunpack.c.l.b16 %v1772
    %v1925 = vunpack.c.h.b16 %v1772
    %v1926 = vunpack.c.l.b16 %v1773
    %v1927 = vunpack.c.h.b16 %v1773
    %v1928 = vunpack.c.l.b16 %v1774
    %v1929 = vunpack.c.h.b16 %v1774
    %v1930 = vunpack.c.l.b16 %v1775
    %v1931 = vunpack.c.h.b16 %v1775
    %v1932 = vunpack.c.l.b16 %v1776
    %v1933 = vunpack.c.h.b16 %v1776
    %v1934 = vunpack.c.l.b16 %v1777
    %v1935 = vunpack.c.h.b16 %v1777
    %v1936 = vunpack.c.l.b16 %v1778
    %v1937 = vunpack.c.h.b16 %v1778
    %v1938 = vunpack.c.l.b16 %v1779
    %v1939 = vunpack.c.h.b16 %v1779
    %v1940 = vunpack.c.l.b16 %v1780
    %v1941 = vunpack.c.h.b16 %v1780
    %v1942 = vunpack.c.l.b16 %v1781
    %v1943 = vunpack.c.h.b16 %v1781
    %v1944 = vunpack.c.l.b16 %v1782
    %v1945 = vunpack.c.h.b16 %v1782
    %v1946 = vunpack.c.l.b16 %v1783
    %v1947 = vunpack.c.h.b16 %v1783
    %v1948 = vunpack.c.l.b16 %v1784
    %v1949 = vunpack.c.h.b16 %v1784
    %v1950 = vunpack.c.l.b16 %v1785
    %v1951 = vunpack.c.h.b16 %v1785
    %v1952 = vunpack.c.l.b16 %v1786
    %v1953 = vunpack.c.h.b16 %v1786
    %v1954 = vunpack.c.l.b16 %v1787
    %v1955 = vunpack.c.h.b16 %v1787
    %v1956 = vunpack.c.l.b16 %v1788
    %v1957 = vunpack.c.h.b16 %v1788
    %v1958 = vunpack.c.l.b16 %v1789
    %v1959 = vunpack.c.h.b16 %v1789
    %v1960 = vunpack.c.l.b16 %v1790
    %v1961 = vunpack.c.h.b16 %v1790
    %v1962 = vunpack.c.l.b16 %v1791
    %v1963 = vunpack.c.h.b16 %v1791
    %v1964 = vunpack.c.l.b16 %v1792
    %v1965 = vunpack.c.h.b16 %v1792
    %v1966 = vunpack.c.l.b16 %v1793
    %v1967 = vunpack.c.h.b16 %v1793
    %v1968 = vunpack.c.l.b16 %v1794
    %v1969 = vunpack.c.h.b16 %v1794
    %v1970 = vunpack.c.l.b16 %v1795
    %v1971 = vunpack.c.h.b16 %v1795
    %v1972 = vunpack.c.l.b16 %v1796
    %v1973 = vunpack.c.h.b16 %v1796
    %v1974 = vpack.c.b16 %v1884, %v1878
    %v1975 = vpack.c.b16 %v1885, %v1879
    %v1976 = vpack.c.b16 %v1886, %v1880
    %v1977 = vpack.c.b16 %v1887, %v1881
    %v1978 = vpack.c.b16 %v1888, %v1882
    %v1979 = vpack.c.b16 %v1889, %v1883
    %v1980 = vpack.c.b16 %v1896, %v1890
    %v1981 = vpack.c.b16 %v1897, %v1891
    %v1982 = vpack.c.b16 %v1898, %v1892
    %v1983 = vpack.c.b16 %v1899, %v1893
    %v1984 = vpack.c.b16 %v1900, %v1894
    %v1985 = vpack.c.b16 %v1901, %v1895
    %v1986 = vpack.c.b16 %v1908, %v1902
    %v1987 = vpack.c.b16 %v1909, %v1903
    %v1988 = vpack.c.b16 %v1910, %v1904
    %v1989 = vpack.c.b16 %v1911, %v1905
    %v1990 = vpack.c.b16 %v1912, %v1906
    %v1991 = vpack.c.b16 %v1913, %v1907
    %v1992 = vpack.c.b16 %v1920, %v1914
    %v1993 = vpack.c.b16 %v1921, %v1915
    %v1994 = vpack.c.b16 %v1922, %v1916
    %v1995 = vpack.c.b16 %v1923, %v1917
    %v1996 = vpack.c.b16 %v1924, %v1918
    %v1997 = vpack.c.b16 %v1925, %v1919
    %v1998 = vpack.c.b16 %v1932, %v1926
    %v1999 = vpack.c.b16 %v1933, %v1927
    %v2000 = vpack.c.b16 %v1934, %v1928
    %v2001 = vpack.c.b16 %v1935, %v1929
    %v2002 = vpack.c.b16 %v1936, %v1930
    %v2003 = vpack.c.b16 %v1937, %v1931
    %v2004 = vpack.c.b16 %v1944, %v1938
    %v2005 = vpack.c.b16 %v1945, %v1939
    %v2006 = vpack.c.b16 %v1946, %v1940
    %v2007 = vpack.c.b16 %v1947, %v1941
    %v2008 = vpack.c.b16 %v1948, %v1942
    %v2009 = vpack.c.b16 %v1949, %v1943
    %v2010 = vpack.c.b16 %v1956, %v1950
    %v2011 = vpack.c.b16 %v1957, %v1951
    %v2012 = vpack.c.b16 %v1958, %v1952
    %v2013 = vpack.c.b16 %v1959, %v1953
    %v2014 = vpack.c.b16 %v1960, %v1954
    %v2015 = vpack.c.b16 %v1961, %v1955
    %v2016 = vpack.c.b16 %v1968, %v1962
    %v2017 = vpack.c.b16 %v1969, %v1963
    %v2018 = vpack.c.b16 %v1970, %v1964
    %v2019 = vpack.c.b16 %v1971, %v1965
    %v2020 = vpack.c.b16 %v1972, %v1966
    %v2021 = vpack.c.b16 %v1973, %v1967
    %2070 = vmatprep.subr.bf16.mxu0 %v1975
    %2071 = vmatpush1.bf16.msra.mxu0 %v1974
    %2072 = vmatprep.subr.bf16.mxu0 %v1981
    %2073 = vmatpush1.bf16.msra.mxu0 %v1980
    %2074 = vmatprep.subr.bf16.mxu0 %v1987
    %2075 = vmatpush1.bf16.msra.mxu0 %v1986
    %2076 = vmatprep.subr.bf16.mxu0 %v1993
    %2077 = vmatpush1.bf16.msra.mxu0 %v1992
    %2078 = vmatprep.subr.bf16.mxu0 %v1999
    %2079 = vmatpush1.bf16.msra.mxu0 %v1998
    %2080 = vmatprep.subr.bf16.mxu0 %v2005
    %2081 = vmatpush1.bf16.msra.mxu0 %v2004
    %2082 = vmatprep.subr.bf16.mxu0 %v2011
    %2083 = vmatpush1.bf16.msra.mxu0 %v2010
    %2084 = vmatprep.subr.bf16.mxu0 %v2017
    %2085 = vmatpush1.bf16.msra.mxu0 %v2016
    %2086 = vmatprep.subr.bf16.mxu0 0
    %2087 = vmatpush1.bf16.msra.mxu0 0
    %2088 = vmatprep.subr.bf16.mxu0 0
    %2089 = vmatpush1.bf16.msra.mxu0 0
    %2090 = vmatprep.subr.bf16.mxu0 0
    %2091 = vmatpush1.bf16.msra.mxu0 0
    %2092 = vmatprep.subr.bf16.mxu0 0
    %2093 = vmatpush1.bf16.msra.mxu0 0
    %2094 = vmatprep.subr.bf16.mxu0 0
    %2095 = vmatpush1.bf16.msra.mxu0 0
    %2096 = vmatprep.subr.bf16.mxu0 0
    %2097 = vmatpush1.bf16.msra.mxu0 0
    %2098 = vmatprep.subr.bf16.mxu0 0
    %2099 = vmatpush1.bf16.msra.mxu0 0
    %2100 = vmatprep.subr.bf16.mxu0 0
    %2101 = vmatpush1.bf16.msra.mxu0 0
    %2102 = vmatprep.mubr.bf16.mxu0 0
    %2103 = vmatmul.mubr.bf16.gmra.mrb[0].mxu0 %v1747
    %v2104 = vpop.f32.mrb[0].mxu0
    %v2105 = vadd.f32 %v1803, %v2104
    %v2106 = vpop.f32.mrb[0].mxu0
    %v2107 = vadd.f32 %v1807, %v2106
    %v2108 = vpop.f32.mrb[0].mxu0
    %v2109 = vadd.f32 %v1803, %v2108
    %v2110 = vpop.f32.mrb[0].mxu0
    %v2111 = vadd.f32 %v1807, %v2110
    %2112 = vdwg.mxu0
    %2113 = vmatprep.subr.bf16.mxu0 %v1977
    %2114 = vmatpush1.bf16.msra.mxu0 %v1976
    %2115 = vmatprep.subr.bf16.mxu0 %v1983
    %2116 = vmatpush1.bf16.msra.mxu0 %v1982
    %2117 = vmatprep.subr.bf16.mxu0 %v1989
    %2118 = vmatpush1.bf16.msra.mxu0 %v1988
    %2119 = vmatprep.subr.bf16.mxu0 %v1995
    %2120 = vmatpush1.bf16.msra.mxu0 %v1994
    %2121 = vmatprep.subr.bf16.mxu0 %v2001
    %2122 = vmatpush1.bf16.msra.mxu0 %v2000
    %2123 = vmatprep.subr.bf16.mxu0 %v2007
    %2124 = vmatpush1.bf16.msra.mxu0 %v2006
    %2125 = vmatprep.subr.bf16.mxu0 %v2013
    %2126 = vmatpush1.bf16.msra.mxu0 %v2012
    %2127 = vmatprep.subr.bf16.mxu0 %v2019
    %2128 = vmatpush1.bf16.msra.mxu0 %v2018
    %2129 = vmatprep.subr.bf16.mxu0 0
    %2130 = vmatpush1.bf16.msra.mxu0 0
    %2131 = vmatprep.subr.bf16.mxu0 0
    %2132 = vmatpush1.bf16.msra.mxu0 0
    %2133 = vmatprep.subr.bf16.mxu0 0
    %2134 = vmatpush1.bf16.msra.mxu0 0
    %2135 = vmatprep.subr.bf16.mxu0 0
    %2136 = vmatpush1.bf16.msra.mxu0 0
    %2137 = vmatprep.subr.bf16.mxu0 0
    %2138 = vmatpush1.bf16.msra.mxu0 0
    %2139 = vmatprep.subr.bf16.mxu0 0
    %2140 = vmatpush1.bf16.msra.mxu0 0
    %2141 = vmatprep.subr.bf16.mxu0 0
    %2142 = vmatpush1.bf16.msra.mxu0 0
    %2143 = vmatprep.subr.bf16.mxu0 0
    %2144 = vmatpush1.bf16.msra.mxu0 0
    %2145 = vmatprep.mubr.bf16.mxu0 0
    %2146 = vmatmul.mubr.bf16.gmra.mrb[0].mxu0 %v1747
    %v2147 = vpop.f32.mrb[0].mxu0
    %v2148 = vadd.f32 %v1811, %v2147
    %v2149 = vpop.f32.mrb[0].mxu0
    %v2150 = vadd.f32 %v1815, %v2149
    %v2151 = vpop.f32.mrb[0].mxu0
    %v2152 = vadd.f32 %v1811, %v2151
    %v2153 = vpop.f32.mrb[0].mxu0
    %v2154 = vadd.f32 %v1815, %v2153
    %2155 = vdwg.mxu0
    %2156 = vmatprep.subr.bf16.mxu0 %v1979
    %2157 = vmatpush1.bf16.msra.mxu0 %v1978
    %2158 = vmatprep.subr.bf16.mxu0 %v1985
    %2159 = vmatpush1.bf16.msra.mxu0 %v1984
    %2160 = vmatprep.subr.bf16.mxu0 %v1991
    %2161 = vmatpush1.bf16.msra.mxu0 %v1990
    %2162 = vmatprep.subr.bf16.mxu0 %v1997
    %2163 = vmatpush1.bf16.msra.mxu0 %v1996
    %2164 = vmatprep.subr.bf16.mxu0 %v2003
    %2165 = vmatpush1.bf16.msra.mxu0 %v2002
    %2166 = vmatprep.subr.bf16.mxu0 %v2009
    %2167 = vmatpush1.bf16.msra.mxu0 %v2008
    %2168 = vmatprep.subr.bf16.mxu0 %v2015
    %2169 = vmatpush1.bf16.msra.mxu0 %v2014
    %2170 = vmatprep.subr.bf16.mxu0 %v2021
    %2171 = vmatpush1.bf16.msra.mxu0 %v2020
    %2172 = vmatprep.subr.bf16.mxu0 0
    %2173 = vmatpush1.bf16.msra.mxu0 0
    %2174 = vmatprep.subr.bf16.mxu0 0
    %2175 = vmatpush1.bf16.msra.mxu0 0
    %2176 = vmatprep.subr.bf16.mxu0 0
    %2177 = vmatpush1.bf16.msra.mxu0 0
    %2178 = vmatprep.subr.bf16.mxu0 0
    %2179 = vmatpush1.bf16.msra.mxu0 0
    %2180 = vmatprep.subr.bf16.mxu0 0
    %2181 = vmatpush1.bf16.msra.mxu0 0
    %2182 = vmatprep.subr.bf16.mxu0 0
    %2183 = vmatpush1.bf16.msra.mxu0 0
    %2184 = vmatprep.subr.bf16.mxu0 0
    %2185 = vmatpush1.bf16.msra.mxu0 0
    %2186 = vmatprep.subr.bf16.mxu0 0
    %2187 = vmatpush1.bf16.msra.mxu0 0
    %2188 = vmatprep.mubr.bf16.mxu0 0
    %2189 = vmatmul.mubr.bf16.gmra.mrb[0].mxu0 %v1747
    %v2190 = vpop.f32.mrb[0].mxu0
    %v2191 = vadd.f32 %v1819, %v2190
    %v2192 = vpop.f32.mrb[0].mxu0
    %v2193 = vadd.f32 %v1823, %v2192
    %v2194 = vpop.f32.mrb[0].mxu0
    %v2195 = vadd.f32 %v1819, %v2194
    %v2196 = vpop.f32.mrb[0].mxu0
    %v2197 = vadd.f32 %v1823, %v2196
    %2198 = vdwg.mxu0
    %v2199 = vpack.c.bf16 %v2107, %v2105
    %v2200 = vpack.c.bf16 %v2111, %v2109
    %v2201 = vpack.c.bf16 %v2150, %v2148
    %v2202 = vpack.c.bf16 %v2154, %v2152
    %v2203 = vpack.c.bf16 %v2193, %v2191
    %v2204 = vpack.c.bf16 %v2197, %v2195
    %2205 = vmatprep.subr.bf16.mxu0 0
    %2206 = vmatpush1.bf16.xpose.msra.mxu0 %v2201
    %2207 = vmatprep.subr.bf16.mxu0 0
    %2208 = vmatpush1.bf16.xpose.msra.mxu0 %v2202
    %2209 = vmatprep.subr.bf16.mxu0 0
    %2210 = vmatpush1.bf16.xpose.msra.mxu0 0
    %2211 = vmatprep.subr.bf16.mxu0 0
    %2212 = vmatpush1.bf16.xpose.msra.mxu0 0
    %2213 = vmatprep.subr.bf16.mxu0 0
    %2214 = vmatpush1.bf16.xpose.msra.mxu0 0
    %2215 = vmatprep.subr.bf16.mxu0 0
    %2216 = vmatpush1.bf16.xpose.msra.mxu0 0
    %2217 = vmatprep.subr.bf16.mxu0 0
    %2218 = vmatpush1.bf16.xpose.msra.mxu0 0
    %2219 = vmatprep.subr.bf16.mxu0 0
    %2220 = vmatpush1.bf16.xpose.msra.mxu0 0
    %2221 = vmatprep.subr.bf16.mxu0 0
    %2222 = vmatpush1.bf16.xpose.msra.mxu0 0
    %2223 = vmatprep.subr.bf16.mxu0 0
    %2224 = vmatpush1.bf16.xpose.msra.mxu0 0
    %2225 = vmatprep.subr.bf16.mxu0 0
    %2226 = vmatpush1.bf16.xpose.msra.mxu0 0
    %2227 = vmatprep.subr.bf16.mxu0 0
    %2228 = vmatpush1.bf16.xpose.msra.mxu0 0
    %2229 = vmatprep.subr.bf16.mxu0 0
    %2230 = vmatpush1.bf16.xpose.msra.mxu0 0
    %2231 = vmatprep.subr.bf16.mxu0 0
    %2232 = vmatpush1.bf16.xpose.msra.mxu0 0
    %2233 = vmatprep.subr.bf16.mxu0 0
    %2234 = vmatpush1.bf16.xpose.msra.mxu0 0
    %2235 = vmatprep.subr.bf16.mxu0 0
    %2236 = vmatpush1.bf16.xpose.msra.mxu0 0
    %2237 = vmatprep.mubr.bf16.mxu0 0
    %2238 = vmatmul.mubr.bf16.gmra.mrb[0].mxu0 %v2199
    %v2239 = vpop.f32.mrb[0].mxu0
    %v2240 = vadd.f32 %v152, %v2239
    %v2241 = vpop.f32.mrb[0].mxu0
    %v2242 = vpop.f32.mrb[0].mxu0
    %v2243 = vadd.f32 %v153, %v2242
    %v2244 = vpop.f32.mrb[0].mxu0
    %2245 = vmatprep.mubr.bf16.mxu0 0
    %2246 = vmatmul.mubr.bf16.gmra.mrb[0].mxu0 %v2200
    %v2247 = vpop.f32.mrb[0].mxu0
    %v2248 = vadd.f32 %v154, %v2247
    %v2249 = vpop.f32.mrb[0].mxu0
    %v2250 = vpop.f32.mrb[0].mxu0
    %v2251 = vadd.f32 %v155, %v2250
    %v2252 = vpop.f32.mrb[0].mxu0
    %2253 = vdwg.mxu0
    %v2254 = vsel %vm661, %v2240, -inf
    %2255 = vmax.xlane.f32.xlu0 %v2254
    %v2256 = vpop.xlane.xlu0 %2255
    %v2257 = vsel %vm661, %v2243, -inf
    %2258 = vmax.xlane.f32.xlu0 %v2257
    %v2259 = vpop.xlane.xlu0 %2258
    %v2260 = vsel %vm661, %v2248, -inf
    %2261 = vmax.xlane.f32.xlu0 %v2260
    %v2262 = vpop.xlane.xlu0 %2261
    %v2263 = vsel %vm661, %v2251, -inf
    %2264 = vmax.xlane.f32.xlu0 %v2263
    %v2265 = vpop.xlane.xlu0 %2264
    %v2266 = vsub.f32 %v2240, %v2256
    %v2267 = vsub.f32 %v2243, %v2259
    %v2268 = vsub.f32 %v2248, %v2262
    %v2269 = vsub.f32 %v2251, %v2265
    %v2270 = vmul.f32 %v2266, 1.442695
    %v2271 = vpow.pop %v2270
    %v2272 = vmul.f32 %v2267, 1.442695
    %v2273 = vpow.pop %v2272
    %v2274 = vmul.f32 %v2268, 1.442695
    %v2275 = vpow.pop %v2274
    %v2276 = vmul.f32 %v2269, 1.442695
    %v2277 = vpow.pop %v2276
    %v2278 = vsel %vm661, %v2271, 0.0
    %2279 = vadd.xlane.f32.xlu0 %v2278
    %v2280 = vpop.xlane.xlu0 %2279
    %v2281 = vsel %vm661, %v2273, 0.0
    %2282 = vadd.xlane.f32.xlu0 %v2281
    %v2283 = vpop.xlane.xlu0 %2282
    %v2284 = vsel %vm661, %v2275, 0.0
    %2285 = vadd.xlane.f32.xlu0 %v2284
    %v2286 = vpop.xlane.xlu0 %2285
    %v2287 = vsel %vm661, %v2277, 0.0
    %2288 = vadd.xlane.f32.xlu0 %v2287
    %v2289 = vpop.xlane.xlu0 %2288
    %v2290 = vrcp.pop %v2280
    %v2291 = vrcp.pop %v2283
    %v2292 = vrcp.pop %v2286
    %v2293 = vrcp.pop %v2289
    %v2294 = vmul.f32 %v2271, %v2290
    %v2295 = vmul.f32 %v2273, %v2291
    %v2296 = vmul.f32 %v2275, %v2292
    %v2297 = vmul.f32 %v2277, %v2293
    %v2298 = vpack.c.bf16 %v2295, %v2294
    %v2299 = vpack.c.bf16 %v2297, %v2296
    %v2301 = vsel %vm661, %v2298, 0
    %v2304 = vsel %vm661, %v2299, 0
    %2306 = vmatprep.subr.bf16.mxu0 0
    %2307 = vmatpush1.bf16.msra.mxu0 %v2203
    %2308 = vmatprep.subr.bf16.mxu0 0
    %2309 = vmatpush1.bf16.msra.mxu0 %v2204
    %2310 = vmatprep.subr.bf16.mxu0 0
    %2311 = vmatpush1.bf16.msra.mxu0 0
    %2312 = vmatprep.subr.bf16.mxu0 0
    %2313 = vmatpush1.bf16.msra.mxu0 0
    %2314 = vmatprep.subr.bf16.mxu0 0
    %2315 = vmatpush1.bf16.msra.mxu0 0
    %2316 = vmatprep.subr.bf16.mxu0 0
    %2317 = vmatpush1.bf16.msra.mxu0 0
    %2318 = vmatprep.subr.bf16.mxu0 0
    %2319 = vmatpush1.bf16.msra.mxu0 0
    %2320 = vmatprep.subr.bf16.mxu0 0
    %2321 = vmatpush1.bf16.msra.mxu0 0
    %2322 = vmatprep.subr.bf16.mxu0 0
    %2323 = vmatpush1.bf16.msra.mxu0 0
    %2324 = vmatprep.subr.bf16.mxu0 0
    %2325 = vmatpush1.bf16.msra.mxu0 0
    %2326 = vmatprep.subr.bf16.mxu0 0
    %2327 = vmatpush1.bf16.msra.mxu0 0
    %2328 = vmatprep.subr.bf16.mxu0 0
    %2329 = vmatpush1.bf16.msra.mxu0 0
    %2330 = vmatprep.subr.bf16.mxu0 0
    %2331 = vmatpush1.bf16.msra.mxu0 0
    %2332 = vmatprep.subr.bf16.mxu0 0
    %2333 = vmatpush1.bf16.msra.mxu0 0
    %2334 = vmatprep.subr.bf16.mxu0 0
    %2335 = vmatpush1.bf16.msra.mxu0 0
    %2336 = vmatprep.subr.bf16.mxu0 0
    %2337 = vmatpush1.bf16.msra.mxu0 0
    %2338 = vmatprep.mubr.bf16.mxu0 0
    %2339 = vmatmul.mubr.bf16.gmra.mrb[0].mxu0 %v2301
    %v2340 = vpop.f32.mrb[0].mxu0
    %v2341 = vadd.f32 0.0, %v2340
    %v2342 = vpop.f32.mrb[0].mxu0
    %v2343 = vpop.f32.mrb[0].mxu0
    %v2344 = vadd.f32 0.0, %v2343
    %v2345 = vpop.f32.mrb[0].mxu0
    %2346 = vmatprep.mubr.bf16.mxu0 0
    %2347 = vmatmul.mubr.bf16.gmra.mrb[0].mxu0 %v2304
    %v2348 = vpop.f32.mrb[0].mxu0
    %v2349 = vadd.f32 0.0, %v2348
    %v2350 = vpop.f32.mrb[0].mxu0
    %v2351 = vpop.f32.mrb[0].mxu0
    %v2352 = vadd.f32 0.0, %v2351
    %v2353 = vpop.f32.mrb[0].mxu0
    %2354 = vdwg.mxu0
    %v2355 = vpack.c.bf16 %v2349, %v2341
    %v2356 = vpack.c.bf16 %v2352, %v2344
    %s2357 = scalar_lea.vmem [#allocation5], 128
    %v2358 = vld [vmem:[%s2357] sm:$0xf]
    %v2359 = vld [vmem:[%s2357 + $0x4] sm:$0xf]
    %v2360 = vld [vmem:[%s2357 + $0x8] sm:$0xf]
    %v2361 = vld [vmem:[%s2357 + $0xc] sm:$0xf]
    %v2362 = vld [vmem:[%s2357 + $0x10] sm:$0xf]
    %v2363 = vld [vmem:[%s2357 + $0x14] sm:$0xf]
    %v2364 = vld [vmem:[%s2357 + $0x18] sm:$0xf]
    %v2365 = vld [vmem:[%s2357 + $0x1c] sm:$0xf]
    %v2366 = vld [vmem:[%s2357 + $0x20] sm:$0xf]
    %v2367 = vld [vmem:[%s2357 + $0x24] sm:$0xf]
    %v2368 = vld [vmem:[%s2357 + $0x28] sm:$0xf]
    %v2369 = vld [vmem:[%s2357 + $0x2c] sm:$0xf]
    %v2370 = vld [vmem:[%s2357 + $0x30] sm:$0xf]
    %v2371 = vld [vmem:[%s2357 + $0x34] sm:$0xf]
    %v2372 = vld [vmem:[%s2357 + $0x38] sm:$0xf]
    %v2373 = vld [vmem:[%s2357 + $0x3c] sm:$0xf]
    %v2374 = vld [vmem:[%s2357 + $0x40] sm:$0xf]
    %v2375 = vld [vmem:[%s2357 + $0x44] sm:$0xf]
    %v2376 = vld [vmem:[%s2357 + $0x48] sm:$0xf]
    %v2377 = vld [vmem:[%s2357 + $0x4c] sm:$0xf]
    %v2378 = vld [vmem:[%s2357 + $0x50] sm:$0xf]
    %v2379 = vld [vmem:[%s2357 + $0x54] sm:$0xf]
    %v2380 = vld [vmem:[%s2357 + $0x58] sm:$0xf]
    %v2381 = vld [vmem:[%s2357 + $0x5c] sm:$0xf]
    %v2382 = vld [vmem:[%s2357 + $0x60] sm:$0xf]
    %v2383 = vld [vmem:[%s2357 + $0x64] sm:$0xf]
    %v2384 = vld [vmem:[%s2357 + $0x68] sm:$0xf]
    %v2385 = vld [vmem:[%s2357 + $0x6c] sm:$0xf]
    %v2386 = vld [vmem:[%s2357 + $0x70] sm:$0xf]
    %v2387 = vld [vmem:[%s2357 + $0x74] sm:$0xf]
    %v2388 = vld [vmem:[%s2357 + $0x78] sm:$0xf]
    %v2389 = vld [vmem:[%s2357 + $0x7c] sm:$0xf]
    %s2390 = scalar_lea.vmem %s7, 1
    %v2391 = vld [vmem:[%s2390] sm:$0x1]
    %v2393 = vlaneseq
    %v2394 = vshrl.u32 %v2393, 7
    %v2395 = vsub.s32 0, %v2394
    %v2396 = vrot.slane %v2391, %v2395
    %v2430 = vunpack.c.l.b16 %v2358
    %v2431 = vunpack.c.l.b16 %v2359
    %v2432 = vunpack.c.l.b16 %v2360
    %v2433 = vunpack.c.l.b16 %v2361
    %v2434 = vunpack.c.l.b16 %v2362
    %v2435 = vunpack.c.l.b16 %v2363
    %v2436 = vunpack.c.l.b16 %v2364
    %v2437 = vunpack.c.l.b16 %v2365
    %v2438 = vunpack.c.l.b16 %v2366
    %v2439 = vunpack.c.l.b16 %v2367
    %v2440 = vunpack.c.l.b16 %v2368
    %v2441 = vunpack.c.l.b16 %v2369
    %v2442 = vunpack.c.l.b16 %v2370
    %v2443 = vunpack.c.l.b16 %v2371
    %v2444 = vunpack.c.l.b16 %v2372
    %v2445 = vunpack.c.l.b16 %v2373
    %v2446 = vunpack.c.l.b16 %v2374
    %v2447 = vunpack.c.l.b16 %v2375
    %v2448 = vunpack.c.l.b16 %v2376
    %v2449 = vunpack.c.l.b16 %v2377
    %v2450 = vunpack.c.l.b16 %v2378
    %v2451 = vunpack.c.l.b16 %v2379
    %v2452 = vunpack.c.l.b16 %v2380
    %v2453 = vunpack.c.l.b16 %v2381
    %v2454 = vunpack.c.l.b16 %v2382
    %v2455 = vunpack.c.l.b16 %v2383
    %v2456 = vunpack.c.l.b16 %v2384
    %v2457 = vunpack.c.l.b16 %v2385
    %v2458 = vunpack.c.l.b16 %v2386
    %v2459 = vunpack.c.l.b16 %v2387
    %v2460 = vunpack.c.l.b16 %v2388
    %v2461 = vunpack.c.l.b16 %v2389
    %v2462 = vpack.c.b16 %v2431, %v2430
    %v2463 = vpack.c.b16 %v2433, %v2432
    %v2464 = vpack.c.b16 %v2435, %v2434
    %v2465 = vpack.c.b16 %v2437, %v2436
    %v2466 = vpack.c.b16 %v2439, %v2438
    %v2467 = vpack.c.b16 %v2441, %v2440
    %v2468 = vpack.c.b16 %v2443, %v2442
    %v2469 = vpack.c.b16 %v2445, %v2444
    %v2470 = vpack.c.b16 %v2447, %v2446
    %v2471 = vpack.c.b16 %v2449, %v2448
    %v2472 = vpack.c.b16 %v2451, %v2450
    %v2473 = vpack.c.b16 %v2453, %v2452
    %v2474 = vpack.c.b16 %v2455, %v2454
    %v2475 = vpack.c.b16 %v2457, %v2456
    %v2476 = vpack.c.b16 %v2459, %v2458
    %v2477 = vpack.c.b16 %v2461, %v2460
    %2494 = vmatprep.subr.bf16.mxu0 0
    %2495 = vmatpush1.bf16.msra.mxu0 %v2462
    %2496 = vmatprep.subr.bf16.mxu0 0
    %2497 = vmatpush1.bf16.msra.mxu0 %v2463
    %2498 = vmatprep.subr.bf16.mxu0 0
    %2499 = vmatpush1.bf16.msra.mxu0 %v2464
    %2500 = vmatprep.subr.bf16.mxu0 0
    %2501 = vmatpush1.bf16.msra.mxu0 %v2465
    %2502 = vmatprep.subr.bf16.mxu0 0
    %2503 = vmatpush1.bf16.msra.mxu0 %v2466
    %2504 = vmatprep.subr.bf16.mxu0 0
    %2505 = vmatpush1.bf16.msra.mxu0 %v2467
    %2506 = vmatprep.subr.bf16.mxu0 0
    %2507 = vmatpush1.bf16.msra.mxu0 %v2468
    %2508 = vmatprep.subr.bf16.mxu0 0
    %2509 = vmatpush1.bf16.msra.mxu0 %v2469
    %2510 = vmatprep.subr.bf16.mxu0 0
    %2511 = vmatpush1.bf16.msra.mxu0 %v2470
    %2512 = vmatprep.subr.bf16.mxu0 0
    %2513 = vmatpush1.bf16.msra.mxu0 %v2471
    %2514 = vmatprep.subr.bf16.mxu0 0
    %2515 = vmatpush1.bf16.msra.mxu0 %v2472
    %2516 = vmatprep.subr.bf16.mxu0 0
    %2517 = vmatpush1.bf16.msra.mxu0 %v2473
    %2518 = vmatprep.subr.bf16.mxu0 0
    %2519 = vmatpush1.bf16.msra.mxu0 %v2474
    %2520 = vmatprep.subr.bf16.mxu0 0
    %2521 = vmatpush1.bf16.msra.mxu0 %v2475
    %2522 = vmatprep.subr.bf16.mxu0 0
    %2523 = vmatpush1.bf16.msra.mxu0 %v2476
    %2524 = vmatprep.subr.bf16.mxu0 0
    %2525 = vmatpush1.bf16.msra.mxu0 %v2477
    %2526 = vmatprep.mubr.bf16.mxu0 %v2356
    %2527 = vmatmul.mubr.bf16.gmra.mrb[0].mxu0 %v2355
    %v2528 = vpop.f32.mrb[0].mxu0
    %v2529 = vadd.f32 %v2396, %v2528
    %v2530 = vpop.f32.mrb[0].mxu0
    %v2531 = vpop.f32.mrb[0].mxu0
    %v2532 = vadd.f32 %v2396, %v2531
    %v2533 = vpop.f32.mrb[0].mxu0
    %2534 = vdwg.mxu0
    %v2535 = vadd.f32 %v2529, %v1745
    %v2536 = vadd.f32 %v2532, %v1746
    %s2537 = scalar_lea.vmem %s8, 1
    %v2538 = vld [vmem:[%s2537] sm:$0x1]
    %s2539 = scalar_lea.vmem %s9, 1
    %v2540 = vld [vmem:[%s2539] sm:$0x1]
    %2541 = vadd.xlane.f32.xlu0 %v2535
    %v2542 = vpop.xlane.xlu0 %2541
    %2543 = vadd.xlane.f32.xlu0 %v2536
    %v2544 = vpop.xlane.xlu0 %2543
    %v2545 = vmul.f32 %v2542, %v117
    %v2546 = vmul.f32 %v2544, %v117
    %v2547 = vsub.f32 %v2535, %v2545
    %v2548 = vsub.f32 %v2536, %v2546
    %v2549 = vmul.f32 %v2547, %v2547
    %v2550 = vmul.f32 %v2548, %v2548
    %2551 = vadd.xlane.f32.xlu0 %v2549
    %v2552 = vpop.xlane.xlu0 %2551
    %2553 = vadd.xlane.f32.xlu0 %v2550
    %v2554 = vpop.xlane.xlu0 %2553
    %v2555 = vmul.f32 %v2552, %v117
    %v2556 = vmul.f32 %v2554, %v117
    %v2557 = vadd.f32 %v2555, 1e-12
    %v2558 = vadd.f32 %v2556, 1e-12
    %v2559 = vrsqrt.pop %v2557
    %v2560 = vrsqrt.pop %v2558
    %v2561 = vmul.f32 %v2547, %v2559
    %v2562 = vmul.f32 %v2548, %v2560
    %v2564 = vlaneseq
    %v2565 = vshrl.u32 %v2564, 7
    %v2566 = vsub.s32 0, %v2565
    %v2567 = vrot.slane %v2538, %v2566
    %v2569 = vmul.f32 %v2561, %v2567
    %v2570 = vmul.f32 %v2562, %v2567
    %v2572 = vlaneseq
    %v2573 = vshrl.u32 %v2572, 7
    %v2574 = vsub.s32 0, %v2573
    %v2575 = vrot.slane %v2540, %v2574
    %v2577 = vadd.f32 %v2569, %v2575
    %v2578 = vadd.f32 %v2570, %v2575
    %v2579 = vpack.c.bf16 %v2578, %v2577
    %s2580 = scalar_lea.vmem %s10, 256
    %v2581 = vld [vmem:[%s2580] sm:$0xff]
    %v2582 = vld [vmem:[%s2580 + $0x8] sm:$0xff]
    %v2583 = vld [vmem:[%s2580 + $0x10] sm:$0xff]
    %v2584 = vld [vmem:[%s2580 + $0x18] sm:$0xff]
    %v2585 = vld [vmem:[%s2580 + $0x20] sm:$0xff]
    %v2586 = vld [vmem:[%s2580 + $0x28] sm:$0xff]
    %v2587 = vld [vmem:[%s2580 + $0x30] sm:$0xff]
    %v2588 = vld [vmem:[%s2580 + $0x38] sm:$0xff]
    %v2589 = vld [vmem:[%s2580 + $0x40] sm:$0xff]
    %v2590 = vld [vmem:[%s2580 + $0x48] sm:$0xff]
    %v2591 = vld [vmem:[%s2580 + $0x50] sm:$0xff]
    %v2592 = vld [vmem:[%s2580 + $0x58] sm:$0xff]
    %v2593 = vld [vmem:[%s2580 + $0x60] sm:$0xff]
    %v2594 = vld [vmem:[%s2580 + $0x68] sm:$0xff]
    %v2595 = vld [vmem:[%s2580 + $0x70] sm:$0xff]
    %v2596 = vld [vmem:[%s2580 + $0x78] sm:$0xff]
    %v2597 = vld [vmem:[%s2580 + $0x80] sm:$0xff]
    %v2598 = vld [vmem:[%s2580 + $0x88] sm:$0xff]
    %v2599 = vld [vmem:[%s2580 + $0x90] sm:$0xff]
    %v2600 = vld [vmem:[%s2580 + $0x98] sm:$0xff]
    %v2601 = vld [vmem:[%s2580 + $0xa0] sm:$0xff]
    %v2602 = vld [vmem:[%s2580 + $0xa8] sm:$0xff]
    %v2603 = vld [vmem:[%s2580 + $0xb0] sm:$0xff]
    %v2604 = vld [vmem:[%s2580 + $0xb8] sm:$0xff]
    %v2605 = vld [vmem:[%s2580 + $0xc0] sm:$0xff]
    %v2606 = vld [vmem:[%s2580 + $0xc8] sm:$0xff]
    %v2607 = vld [vmem:[%s2580 + $0xd0] sm:$0xff]
    %v2608 = vld [vmem:[%s2580 + $0xd8] sm:$0xff]
    %v2609 = vld [vmem:[%s2580 + $0xe0] sm:$0xff]
    %v2610 = vld [vmem:[%s2580 + $0xe8] sm:$0xff]
    %v2611 = vld [vmem:[%s2580 + $0xf0] sm:$0xff]
    %v2612 = vld [vmem:[%s2580 + $0xf8] sm:$0xff]
    %s2613 = scalar_lea.vmem %s11, 4
    %v2614 = vld [vmem:[%s2613] sm:$0xf]
    %v2616 = vlaneseq
    %v2617 = vshrl.u32 %v2616, 7
    %v2618 = vsub.s32 0, %v2617
    %v2619 = vrot.slane %v2614, %v2618
    %v2620 = vlaneseq
    %v2621 = vshrl.u32 %v2620, 7
    %v2622 = vsub.s32 1, %v2621
    %v2623 = vrot.slane %v2614, %v2622
    %v2624 = vlaneseq
    %v2625 = vshrl.u32 %v2624, 7
    %v2626 = vsub.s32 2, %v2625
    %v2627 = vrot.slane %v2614, %v2626
    %v2628 = vlaneseq
    %v2629 = vshrl.u32 %v2628, 7
    %v2630 = vsub.s32 3, %v2629
    %v2631 = vrot.slane %v2614, %v2630
    %v2668 = vunpack.c.l.b16 %v2581
    %v2669 = vunpack.c.h.b16 %v2581
    %v2670 = vunpack.c.l.b16 %v2582
    %v2671 = vunpack.c.h.b16 %v2582
    %v2672 = vunpack.c.l.b16 %v2583
    %v2673 = vunpack.c.h.b16 %v2583
    %v2674 = vunpack.c.l.b16 %v2584
    %v2675 = vunpack.c.h.b16 %v2584
    %v2676 = vunpack.c.l.b16 %v2585
    %v2677 = vunpack.c.h.b16 %v2585
    %v2678 = vunpack.c.l.b16 %v2586
    %v2679 = vunpack.c.h.b16 %v2586
    %v2680 = vunpack.c.l.b16 %v2587
    %v2681 = vunpack.c.h.b16 %v2587
    %v2682 = vunpack.c.l.b16 %v2588
    %v2683 = vunpack.c.h.b16 %v2588
    %v2684 = vunpack.c.l.b16 %v2589
    %v2685 = vunpack.c.h.b16 %v2589
    %v2686 = vunpack.c.l.b16 %v2590
    %v2687 = vunpack.c.h.b16 %v2590
    %v2688 = vunpack.c.l.b16 %v2591
    %v2689 = vunpack.c.h.b16 %v2591
    %v2690 = vunpack.c.l.b16 %v2592
    %v2691 = vunpack.c.h.b16 %v2592
    %v2692 = vunpack.c.l.b16 %v2593
    %v2693 = vunpack.c.h.b16 %v2593
    %v2694 = vunpack.c.l.b16 %v2594
    %v2695 = vunpack.c.h.b16 %v2594
    %v2696 = vunpack.c.l.b16 %v2595
    %v2697 = vunpack.c.h.b16 %v2595
    %v2698 = vunpack.c.l.b16 %v2596
    %v2699 = vunpack.c.h.b16 %v2596
    %v2700 = vunpack.c.l.b16 %v2597
    %v2701 = vunpack.c.h.b16 %v2597
    %v2702 = vunpack.c.l.b16 %v2598
    %v2703 = vunpack.c.h.b16 %v2598
    %v2704 = vunpack.c.l.b16 %v2599
    %v2705 = vunpack.c.h.b16 %v2599
    %v2706 = vunpack.c.l.b16 %v2600
    %v2707 = vunpack.c.h.b16 %v2600
    %v2708 = vunpack.c.l.b16 %v2601
    %v2709 = vunpack.c.h.b16 %v2601
    %v2710 = vunpack.c.l.b16 %v2602
    %v2711 = vunpack.c.h.b16 %v2602
    %v2712 = vunpack.c.l.b16 %v2603
    %v2713 = vunpack.c.h.b16 %v2603
    %v2714 = vunpack.c.l.b16 %v2604
    %v2715 = vunpack.c.h.b16 %v2604
    %v2716 = vunpack.c.l.b16 %v2605
    %v2717 = vunpack.c.h.b16 %v2605
    %v2718 = vunpack.c.l.b16 %v2606
    %v2719 = vunpack.c.h.b16 %v2606
    %v2720 = vunpack.c.l.b16 %v2607
    %v2721 = vunpack.c.h.b16 %v2607
    %v2722 = vunpack.c.l.b16 %v2608
    %v2723 = vunpack.c.h.b16 %v2608
    %v2724 = vunpack.c.l.b16 %v2609
    %v2725 = vunpack.c.h.b16 %v2609
    %v2726 = vunpack.c.l.b16 %v2610
    %v2727 = vunpack.c.h.b16 %v2610
    %v2728 = vunpack.c.l.b16 %v2611
    %v2729 = vunpack.c.h.b16 %v2611
    %v2730 = vunpack.c.l.b16 %v2612
    %v2731 = vunpack.c.h.b16 %v2612
    %v2732 = vpack.c.b16 %v2672, %v2668
    %v2733 = vpack.c.b16 %v2673, %v2669
    %v2734 = vpack.c.b16 %v2674, %v2670
    %v2735 = vpack.c.b16 %v2675, %v2671
    %v2736 = vpack.c.b16 %v2680, %v2676
    %v2737 = vpack.c.b16 %v2681, %v2677
    %v2738 = vpack.c.b16 %v2682, %v2678
    %v2739 = vpack.c.b16 %v2683, %v2679
    %v2740 = vpack.c.b16 %v2688, %v2684
    %v2741 = vpack.c.b16 %v2689, %v2685
    %v2742 = vpack.c.b16 %v2690, %v2686
    %v2743 = vpack.c.b16 %v2691, %v2687
    %v2744 = vpack.c.b16 %v2696, %v2692
    %v2745 = vpack.c.b16 %v2697, %v2693
    %v2746 = vpack.c.b16 %v2698, %v2694
    %v2747 = vpack.c.b16 %v2699, %v2695
    %v2748 = vpack.c.b16 %v2704, %v2700
    %v2749 = vpack.c.b16 %v2705, %v2701
    %v2750 = vpack.c.b16 %v2706, %v2702
    %v2751 = vpack.c.b16 %v2707, %v2703
    %v2752 = vpack.c.b16 %v2712, %v2708
    %v2753 = vpack.c.b16 %v2713, %v2709
    %v2754 = vpack.c.b16 %v2714, %v2710
    %v2755 = vpack.c.b16 %v2715, %v2711
    %v2756 = vpack.c.b16 %v2720, %v2716
    %v2757 = vpack.c.b16 %v2721, %v2717
    %v2758 = vpack.c.b16 %v2722, %v2718
    %v2759 = vpack.c.b16 %v2723, %v2719
    %v2760 = vpack.c.b16 %v2728, %v2724
    %v2761 = vpack.c.b16 %v2729, %v2725
    %v2762 = vpack.c.b16 %v2730, %v2726
    %v2763 = vpack.c.b16 %v2731, %v2727
    %2796 = vmatprep.subr.bf16.mxu0 %v2733
    %2797 = vmatpush1.bf16.msra.mxu0 %v2732
    %2798 = vmatprep.subr.bf16.mxu0 %v2737
    %2799 = vmatpush1.bf16.msra.mxu0 %v2736
    %2800 = vmatprep.subr.bf16.mxu0 %v2741
    %2801 = vmatpush1.bf16.msra.mxu0 %v2740
    %2802 = vmatprep.subr.bf16.mxu0 %v2745
    %2803 = vmatpush1.bf16.msra.mxu0 %v2744
    %2804 = vmatprep.subr.bf16.mxu0 %v2749
    %2805 = vmatpush1.bf16.msra.mxu0 %v2748
    %2806 = vmatprep.subr.bf16.mxu0 %v2753
    %2807 = vmatpush1.bf16.msra.mxu0 %v2752
    %2808 = vmatprep.subr.bf16.mxu0 %v2757
    %2809 = vmatpush1.bf16.msra.mxu0 %v2756
    %2810 = vmatprep.subr.bf16.mxu0 %v2761
    %2811 = vmatpush1.bf16.msra.mxu0 %v2760
    %2812 = vmatprep.subr.bf16.mxu0 0
    %2813 = vmatpush1.bf16.msra.mxu0 0
    %2814 = vmatprep.subr.bf16.mxu0 0
    %2815 = vmatpush1.bf16.msra.mxu0 0
    %2816 = vmatprep.subr.bf16.mxu0 0
    %2817 = vmatpush1.bf16.msra.mxu0 0
    %2818 = vmatprep.subr.bf16.mxu0 0
    %2819 = vmatpush1.bf16.msra.mxu0 0
    %2820 = vmatprep.subr.bf16.mxu0 0
    %2821 = vmatpush1.bf16.msra.mxu0 0
    %2822 = vmatprep.subr.bf16.mxu0 0
    %2823 = vmatpush1.bf16.msra.mxu0 0
    %2824 = vmatprep.subr.bf16.mxu0 0
    %2825 = vmatpush1.bf16.msra.mxu0 0
    %2826 = vmatprep.subr.bf16.mxu0 0
    %2827 = vmatpush1.bf16.msra.mxu0 0
    %2828 = vmatprep.mubr.bf16.mxu0 0
    %2829 = vmatmul.mubr.bf16.gmra.mrb[0].mxu0 %v2579
    %v2830 = vpop.f32.mrb[0].mxu0
    %v2831 = vadd.f32 %v2619, %v2830
    %v2832 = vpop.f32.mrb[0].mxu0
    %v2833 = vadd.f32 %v2623, %v2832
    %v2834 = vpop.f32.mrb[0].mxu0
    %v2835 = vadd.f32 %v2619, %v2834
    %v2836 = vpop.f32.mrb[0].mxu0
    %v2837 = vadd.f32 %v2623, %v2836
    %2838 = vdwg.mxu0
    %2839 = vmatprep.subr.bf16.mxu0 %v2735
    %2840 = vmatpush1.bf16.msra.mxu0 %v2734
    %2841 = vmatprep.subr.bf16.mxu0 %v2739
    %2842 = vmatpush1.bf16.msra.mxu0 %v2738
    %2843 = vmatprep.subr.bf16.mxu0 %v2743
    %2844 = vmatpush1.bf16.msra.mxu0 %v2742
    %2845 = vmatprep.subr.bf16.mxu0 %v2747
    %2846 = vmatpush1.bf16.msra.mxu0 %v2746
    %2847 = vmatprep.subr.bf16.mxu0 %v2751
    %2848 = vmatpush1.bf16.msra.mxu0 %v2750
    %2849 = vmatprep.subr.bf16.mxu0 %v2755
    %2850 = vmatpush1.bf16.msra.mxu0 %v2754
    %2851 = vmatprep.subr.bf16.mxu0 %v2759
    %2852 = vmatpush1.bf16.msra.mxu0 %v2758
    %2853 = vmatprep.subr.bf16.mxu0 %v2763
    %2854 = vmatpush1.bf16.msra.mxu0 %v2762
    %2855 = vmatprep.subr.bf16.mxu0 0
    %2856 = vmatpush1.bf16.msra.mxu0 0
    %2857 = vmatprep.subr.bf16.mxu0 0
    %2858 = vmatpush1.bf16.msra.mxu0 0
    %2859 = vmatprep.subr.bf16.mxu0 0
    %2860 = vmatpush1.bf16.msra.mxu0 0
    %2861 = vmatprep.subr.bf16.mxu0 0
    %2862 = vmatpush1.bf16.msra.mxu0 0
    %2863 = vmatprep.subr.bf16.mxu0 0
    %2864 = vmatpush1.bf16.msra.mxu0 0
    %2865 = vmatprep.subr.bf16.mxu0 0
    %2866 = vmatpush1.bf16.msra.mxu0 0
    %2867 = vmatprep.subr.bf16.mxu0 0
    %2868 = vmatpush1.bf16.msra.mxu0 0
    %2869 = vmatprep.subr.bf16.mxu0 0
    %2870 = vmatpush1.bf16.msra.mxu0 0
    %2871 = vmatprep.mubr.bf16.mxu0 0
    %2872 = vmatmul.mubr.bf16.gmra.mrb[0].mxu0 %v2579
    %v2873 = vpop.f32.mrb[0].mxu0
    %v2874 = vadd.f32 %v2627, %v2873
    %v2875 = vpop.f32.mrb[0].mxu0
    %v2876 = vadd.f32 %v2631, %v2875
    %v2877 = vpop.f32.mrb[0].mxu0
    %v2878 = vadd.f32 %v2627, %v2877
    %v2879 = vpop.f32.mrb[0].mxu0
    %v2880 = vadd.f32 %v2631, %v2879
    %2881 = vdwg.mxu0
    %v2882 = vmul.f32 %v2831, 0.5
    %v2883 = vmul.f32 %v2833, 0.5
    %v2884 = vmul.f32 %v2874, 0.5
    %v2885 = vmul.f32 %v2876, 0.5
    %v2886 = vmul.f32 %v2835, 0.5
    %v2887 = vmul.f32 %v2837, 0.5
    %v2888 = vmul.f32 %v2878, 0.5
    %v2889 = vmul.f32 %v2880, 0.5
    %v2890 = vmul.f32 %v2831, 0.044715
    %v2891 = vmul.f32 %v2833, 0.044715
    %v2892 = vmul.f32 %v2874, 0.044715
    %v2893 = vmul.f32 %v2876, 0.044715
    %v2894 = vmul.f32 %v2835, 0.044715
    %v2895 = vmul.f32 %v2837, 0.044715
    %v2896 = vmul.f32 %v2878, 0.044715
    %v2897 = vmul.f32 %v2880, 0.044715
    %v2898 = vmul.f32 %v2890, %v2831
    %v2899 = vmul.f32 %v2891, %v2833
    %v2900 = vmul.f32 %v2892, %v2874
    %v2901 = vmul.f32 %v2893, %v2876
    %v2902 = vmul.f32 %v2894, %v2835
    %v2903 = vmul.f32 %v2895, %v2837
    %v2904 = vmul.f32 %v2896, %v2878
    %v2905 = vmul.f32 %v2897, %v2880
    %v2906 = vmul.f32 %v2898, %v2831
    %v2907 = vmul.f32 %v2899, %v2833
    %v2908 = vmul.f32 %v2900, %v2874
    %v2909 = vmul.f32 %v2901, %v2876
    %v2910 = vmul.f32 %v2902, %v2835
    %v2911 = vmul.f32 %v2903, %v2837
    %v2912 = vmul.f32 %v2904, %v2878
    %v2913 = vmul.f32 %v2905, %v2880
    %v2914 = vadd.f32 %v2831, %v2906
    %v2915 = vadd.f32 %v2833, %v2907
    %v2916 = vadd.f32 %v2874, %v2908
    %v2917 = vadd.f32 %v2876, %v2909
    %v2918 = vadd.f32 %v2835, %v2910
    %v2919 = vadd.f32 %v2837, %v2911
    %v2920 = vadd.f32 %v2878, %v2912
    %v2921 = vadd.f32 %v2880, %v2913
    %v2922 = vmul.f32 %v2914, 0.7978846
    %v2923 = vmul.f32 %v2915, 0.7978846
    %v2924 = vmul.f32 %v2916, 0.7978846
    %v2925 = vmul.f32 %v2917, 0.7978846
    %v2926 = vmul.f32 %v2918, 0.7978846
    %v2927 = vmul.f32 %v2919, 0.7978846
    %v2928 = vmul.f32 %v2920, 0.7978846
    %v2929 = vmul.f32 %v2921, 0.7978846
    %v2930 = vtanh.pop %v2922
    %v2931 = vtanh.pop %v2923
    %v2932 = vtanh.pop %v2924
    %v2933 = vtanh.pop %v2925
    %v2934 = vtanh.pop %v2926
    %v2935 = vtanh.pop %v2927
    %v2936 = vtanh.pop %v2928
    %v2937 = vtanh.pop %v2929
    %v2938 = vadd.f32 %v2930, 1.0
    %v2939 = vadd.f32 %v2931, 1.0
    %v2940 = vadd.f32 %v2932, 1.0
    %v2941 = vadd.f32 %v2933, 1.0
    %v2942 = vadd.f32 %v2934, 1.0
    %v2943 = vadd.f32 %v2935, 1.0
    %v2944 = vadd.f32 %v2936, 1.0
    %v2945 = vadd.f32 %v2937, 1.0
    %v2946 = vmul.f32 %v2882, %v2938
    %v2947 = vmul.f32 %v2883, %v2939
    %v2948 = vmul.f32 %v2884, %v2940
    %v2949 = vmul.f32 %v2885, %v2941
    %v2950 = vmul.f32 %v2886, %v2942
    %v2951 = vmul.f32 %v2887, %v2943
    %v2952 = vmul.f32 %v2888, %v2944
    %v2953 = vmul.f32 %v2889, %v2945
    %v2954 = vpack.c.bf16 %v2950, %v2946
    %v2955 = vpack.c.bf16 %v2951, %v2947
    %v2956 = vpack.c.bf16 %v2952, %v2948
    %v2957 = vpack.c.bf16 %v2953, %v2949
    %s2958 = scalar_lea.vmem [#allocation7], 256
    %v2959 = vld [vmem:[%s2958] sm:$0xf]
    %v2960 = vld [vmem:[%s2958 + $0x4] sm:$0xf]
    %v2961 = vld [vmem:[%s2958 + $0x8] sm:$0xf]
    %v2962 = vld [vmem:[%s2958 + $0xc] sm:$0xf]
    %v2963 = vld [vmem:[%s2958 + $0x10] sm:$0xf]
    %v2964 = vld [vmem:[%s2958 + $0x14] sm:$0xf]
    %v2965 = vld [vmem:[%s2958 + $0x18] sm:$0xf]
    %v2966 = vld [vmem:[%s2958 + $0x1c] sm:$0xf]
    %v2967 = vld [vmem:[%s2958 + $0x20] sm:$0xf]
    %v2968 = vld [vmem:[%s2958 + $0x24] sm:$0xf]
    %v2969 = vld [vmem:[%s2958 + $0x28] sm:$0xf]
    %v2970 = vld [vmem:[%s2958 + $0x2c] sm:$0xf]
    %v2971 = vld [vmem:[%s2958 + $0x30] sm:$0xf]
    %v2972 = vld [vmem:[%s2958 + $0x34] sm:$0xf]
    %v2973 = vld [vmem:[%s2958 + $0x38] sm:$0xf]
    %v2974 = vld [vmem:[%s2958 + $0x3c] sm:$0xf]
    %v2975 = vld [vmem:[%s2958 + $0x40] sm:$0xf]
    %v2976 = vld [vmem:[%s2958 + $0x44] sm:$0xf]
    %v2977 = vld [vmem:[%s2958 + $0x48] sm:$0xf]
    %v2978 = vld [vmem:[%s2958 + $0x4c] sm:$0xf]
    %v2979 = vld [vmem:[%s2958 + $0x50] sm:$0xf]
    %v2980 = vld [vmem:[%s2958 + $0x54] sm:$0xf]
    %v2981 = vld [vmem:[%s2958 + $0x58] sm:$0xf]
    %v2982 = vld [vmem:[%s2958 + $0x5c] sm:$0xf]
    %v2983 = vld [vmem:[%s2958 + $0x60] sm:$0xf]
    %v2984 = vld [vmem:[%s2958 + $0x64] sm:$0xf]
    %v2985 = vld [vmem:[%s2958 + $0x68] sm:$0xf]
    %v2986 = vld [vmem:[%s2958 + $0x6c] sm:$0xf]
    %v2987 = vld [vmem:[%s2958 + $0x70] sm:$0xf]
    %v2988 = vld [vmem:[%s2958 + $0x74] sm:$0xf]
    %v2989 = vld [vmem:[%s2958 + $0x78] sm:$0xf]
    %v2990 = vld [vmem:[%s2958 + $0x7c] sm:$0xf]
    %v2991 = vld [vmem:[%s2958 + $0x80] sm:$0xf]
    %v2992 = vld [vmem:[%s2958 + $0x84] sm:$0xf]
    %v2993 = vld [vmem:[%s2958 + $0x88] sm:$0xf]
    %v2994 = vld [vmem:[%s2958 + $0x8c] sm:$0xf]
    %v2995 = vld [vmem:[%s2958 + $0x90] sm:$0xf]
    %v2996 = vld [vmem:[%s2958 + $0x94] sm:$0xf]
    %v2997 = vld [vmem:[%s2958 + $0x98] sm:$0xf]
    %v2998 = vld [vmem:[%s2958 + $0x9c] sm:$0xf]
    %v2999 = vld [vmem:[%s2958 + $0xa0] sm:$0xf]
    %v3000 = vld [vmem:[%s2958 + $0xa4] sm:$0xf]
    %v3001 = vld [vmem:[%s2958 + $0xa8] sm:$0xf]
    %v3002 = vld [vmem:[%s2958 + $0xac] sm:$0xf]
    %v3003 = vld [vmem:[%s2958 + $0xb0] sm:$0xf]
    %v3004 = vld [vmem:[%s2958 + $0xb4] sm:$0xf]
    %v3005 = vld [vmem:[%s2958 + $0xb8] sm:$0xf]
    %v3006 = vld [vmem:[%s2958 + $0xbc] sm:$0xf]
    %v3007 = vld [vmem:[%s2958 + $0xc0] sm:$0xf]
    %v3008 = vld [vmem:[%s2958 + $0xc4] sm:$0xf]
    %v3009 = vld [vmem:[%s2958 + $0xc8] sm:$0xf]
    %v3010 = vld [vmem:[%s2958 + $0xcc] sm:$0xf]
    %v3011 = vld [vmem:[%s2958 + $0xd0] sm:$0xf]
    %v3012 = vld [vmem:[%s2958 + $0xd4] sm:$0xf]
    %v3013 = vld [vmem:[%s2958 + $0xd8] sm:$0xf]
    %v3014 = vld [vmem:[%s2958 + $0xdc] sm:$0xf]
    %v3015 = vld [vmem:[%s2958 + $0xe0] sm:$0xf]
    %v3016 = vld [vmem:[%s2958 + $0xe4] sm:$0xf]
    %v3017 = vld [vmem:[%s2958 + $0xe8] sm:$0xf]
    %v3018 = vld [vmem:[%s2958 + $0xec] sm:$0xf]
    %v3019 = vld [vmem:[%s2958 + $0xf0] sm:$0xf]
    %v3020 = vld [vmem:[%s2958 + $0xf4] sm:$0xf]
    %v3021 = vld [vmem:[%s2958 + $0xf8] sm:$0xf]
    %v3022 = vld [vmem:[%s2958 + $0xfc] sm:$0xf]
    %s3023 = scalar_lea.vmem %s13, 1
    %v3024 = vld [vmem:[%s3023] sm:$0x1]
    %v3026 = vlaneseq
    %v3027 = vshrl.u32 %v3026, 7
    %v3028 = vsub.s32 0, %v3027
    %v3029 = vrot.slane %v3024, %v3028
    %v3095 = vunpack.c.l.b16 %v2959
    %v3096 = vunpack.c.l.b16 %v2960
    %v3097 = vunpack.c.l.b16 %v2961
    %v3098 = vunpack.c.l.b16 %v2962
    %v3099 = vunpack.c.l.b16 %v2963
    %v3100 = vunpack.c.l.b16 %v2964
    %v3101 = vunpack.c.l.b16 %v2965
    %v3102 = vunpack.c.l.b16 %v2966
    %v3103 = vunpack.c.l.b16 %v2967
    %v3104 = vunpack.c.l.b16 %v2968
    %v3105 = vunpack.c.l.b16 %v2969
    %v3106 = vunpack.c.l.b16 %v2970
    %v3107 = vunpack.c.l.b16 %v2971
    %v3108 = vunpack.c.l.b16 %v2972
    %v3109 = vunpack.c.l.b16 %v2973
    %v3110 = vunpack.c.l.b16 %v2974
    %v3111 = vunpack.c.l.b16 %v2975
    %v3112 = vunpack.c.l.b16 %v2976
    %v3113 = vunpack.c.l.b16 %v2977
    %v3114 = vunpack.c.l.b16 %v2978
    %v3115 = vunpack.c.l.b16 %v2979
    %v3116 = vunpack.c.l.b16 %v2980
    %v3117 = vunpack.c.l.b16 %v2981
    %v3118 = vunpack.c.l.b16 %v2982
    %v3119 = vunpack.c.l.b16 %v2983
    %v3120 = vunpack.c.l.b16 %v2984
    %v3121 = vunpack.c.l.b16 %v2985
    %v3122 = vunpack.c.l.b16 %v2986
    %v3123 = vunpack.c.l.b16 %v2987
    %v3124 = vunpack.c.l.b16 %v2988
    %v3125 = vunpack.c.l.b16 %v2989
    %v3126 = vunpack.c.l.b16 %v2990
    %v3127 = vunpack.c.l.b16 %v2991
    %v3128 = vunpack.c.l.b16 %v2992
    %v3129 = vunpack.c.l.b16 %v2993
    %v3130 = vunpack.c.l.b16 %v2994
    %v3131 = vunpack.c.l.b16 %v2995
    %v3132 = vunpack.c.l.b16 %v2996
    %v3133 = vunpack.c.l.b16 %v2997
    %v3134 = vunpack.c.l.b16 %v2998
    %v3135 = vunpack.c.l.b16 %v2999
    %v3136 = vunpack.c.l.b16 %v3000
    %v3137 = vunpack.c.l.b16 %v3001
    %v3138 = vunpack.c.l.b16 %v3002
    %v3139 = vunpack.c.l.b16 %v3003
    %v3140 = vunpack.c.l.b16 %v3004
    %v3141 = vunpack.c.l.b16 %v3005
    %v3142 = vunpack.c.l.b16 %v3006
    %v3143 = vunpack.c.l.b16 %v3007
    %v3144 = vunpack.c.l.b16 %v3008
    %v3145 = vunpack.c.l.b16 %v3009
    %v3146 = vunpack.c.l.b16 %v3010
    %v3147 = vunpack.c.l.b16 %v3011
    %v3148 = vunpack.c.l.b16 %v3012
    %v3149 = vunpack.c.l.b16 %v3013
    %v3150 = vunpack.c.l.b16 %v3014
    %v3151 = vunpack.c.l.b16 %v3015
    %v3152 = vunpack.c.l.b16 %v3016
    %v3153 = vunpack.c.l.b16 %v3017
    %v3154 = vunpack.c.l.b16 %v3018
    %v3155 = vunpack.c.l.b16 %v3019
    %v3156 = vunpack.c.l.b16 %v3020
    %v3157 = vunpack.c.l.b16 %v3021
    %v3158 = vunpack.c.l.b16 %v3022
    %v3159 = vpack.c.b16 %v3096, %v3095
    %v3160 = vpack.c.b16 %v3098, %v3097
    %v3161 = vpack.c.b16 %v3100, %v3099
    %v3162 = vpack.c.b16 %v3102, %v3101
    %v3163 = vpack.c.b16 %v3104, %v3103
    %v3164 = vpack.c.b16 %v3106, %v3105
    %v3165 = vpack.c.b16 %v3108, %v3107
    %v3166 = vpack.c.b16 %v3110, %v3109
    %v3167 = vpack.c.b16 %v3112, %v3111
    %v3168 = vpack.c.b16 %v3114, %v3113
    %v3169 = vpack.c.b16 %v3116, %v3115
    %v3170 = vpack.c.b16 %v3118, %v3117
    %v3171 = vpack.c.b16 %v3120, %v3119
    %v3172 = vpack.c.b16 %v3122, %v3121
    %v3173 = vpack.c.b16 %v3124, %v3123
    %v3174 = vpack.c.b16 %v3126, %v3125
    %v3175 = vpack.c.b16 %v3128, %v3127
    %v3176 = vpack.c.b16 %v3130, %v3129
    %v3177 = vpack.c.b16 %v3132, %v3131
    %v3178 = vpack.c.b16 %v3134, %v3133
    %v3179 = vpack.c.b16 %v3136, %v3135
    %v3180 = vpack.c.b16 %v3138, %v3137
    %v3181 = vpack.c.b16 %v3140, %v3139
    %v3182 = vpack.c.b16 %v3142, %v3141
    %v3183 = vpack.c.b16 %v3144, %v3143
    %v3184 = vpack.c.b16 %v3146, %v3145
    %v3185 = vpack.c.b16 %v3148, %v3147
    %v3186 = vpack.c.b16 %v3150, %v3149
    %v3187 = vpack.c.b16 %v3152, %v3151
    %v3188 = vpack.c.b16 %v3154, %v3153
    %v3189 = vpack.c.b16 %v3156, %v3155
    %v3190 = vpack.c.b16 %v3158, %v3157
    %3223 = vmatprep.subr.bf16.mxu0 0
    %3224 = vmatpush1.bf16.msra.mxu0 %v3159
    %3225 = vmatprep.subr.bf16.mxu0 0
    %3226 = vmatpush1.bf16.msra.mxu0 %v3160
    %3227 = vmatprep.subr.bf16.mxu0 0
    %3228 = vmatpush1.bf16.msra.mxu0 %v3161
    %3229 = vmatprep.subr.bf16.mxu0 0
    %3230 = vmatpush1.bf16.msra.mxu0 %v3162
    %3231 = vmatprep.subr.bf16.mxu0 0
    %3232 = vmatpush1.bf16.msra.mxu0 %v3163
    %3233 = vmatprep.subr.bf16.mxu0 0
    %3234 = vmatpush1.bf16.msra.mxu0 %v3164
    %3235 = vmatprep.subr.bf16.mxu0 0
    %3236 = vmatpush1.bf16.msra.mxu0 %v3165
    %3237 = vmatprep.subr.bf16.mxu0 0
    %3238 = vmatpush1.bf16.msra.mxu0 %v3166
    %3239 = vmatprep.subr.bf16.mxu0 0
    %3240 = vmatpush1.bf16.msra.mxu0 %v3167
    %3241 = vmatprep.subr.bf16.mxu0 0
    %3242 = vmatpush1.bf16.msra.mxu0 %v3168
    %3243 = vmatprep.subr.bf16.mxu0 0
    %3244 = vmatpush1.bf16.msra.mxu0 %v3169
    %3245 = vmatprep.subr.bf16.mxu0 0
    %3246 = vmatpush1.bf16.msra.mxu0 %v3170
    %3247 = vmatprep.subr.bf16.mxu0 0
    %3248 = vmatpush1.bf16.msra.mxu0 %v3171
    %3249 = vmatprep.subr.bf16.mxu0 0
    %3250 = vmatpush1.bf16.msra.mxu0 %v3172
    %3251 = vmatprep.subr.bf16.mxu0 0
    %3252 = vmatpush1.bf16.msra.mxu0 %v3173
    %3253 = vmatprep.subr.bf16.mxu0 0
    %3254 = vmatpush1.bf16.msra.mxu0 %v3174
    %3255 = vmatprep.mubr.bf16.mxu0 %v2955
    %3256 = vmatmul.mubr.bf16.gmra.mrb[0].mxu0 %v2954
    %v3257 = vpop.f32.mrb[0].mxu0
    %v3258 = vadd.f32 %v3029, %v3257
    %v3259 = vpop.f32.mrb[0].mxu0
    %v3260 = vpop.f32.mrb[0].mxu0
    %v3261 = vadd.f32 %v3029, %v3260
    %v3262 = vpop.f32.mrb[0].mxu0
    %3263 = vdwg.mxu0
    %3264 = vmatprep.subr.bf16.mxu0 0
    %3265 = vmatpush1.bf16.msra.mxu0 %v3175
    %3266 = vmatprep.subr.bf16.mxu0 0
    %3267 = vmatpush1.bf16.msra.mxu0 %v3176
    %3268 = vmatprep.subr.bf16.mxu0 0
    %3269 = vmatpush1.bf16.msra.mxu0 %v3177
    %3270 = vmatprep.subr.bf16.mxu0 0
    %3271 = vmatpush1.bf16.msra.mxu0 %v3178
    %3272 = vmatprep.subr.bf16.mxu0 0
    %3273 = vmatpush1.bf16.msra.mxu0 %v3179
    %3274 = vmatprep.subr.bf16.mxu0 0
    %3275 = vmatpush1.bf16.msra.mxu0 %v3180
    %3276 = vmatprep.subr.bf16.mxu0 0
    %3277 = vmatpush1.bf16.msra.mxu0 %v3181
    %3278 = vmatprep.subr.bf16.mxu0 0
    %3279 = vmatpush1.bf16.msra.mxu0 %v3182
    %3280 = vmatprep.subr.bf16.mxu0 0
    %3281 = vmatpush1.bf16.msra.mxu0 %v3183
    %3282 = vmatprep.subr.bf16.mxu0 0
    %3283 = vmatpush1.bf16.msra.mxu0 %v3184
    %3284 = vmatprep.subr.bf16.mxu0 0
    %3285 = vmatpush1.bf16.msra.mxu0 %v3185
    %3286 = vmatprep.subr.bf16.mxu0 0
    %3287 = vmatpush1.bf16.msra.mxu0 %v3186
    %3288 = vmatprep.subr.bf16.mxu0 0
    %3289 = vmatpush1.bf16.msra.mxu0 %v3187
    %3290 = vmatprep.subr.bf16.mxu0 0
    %3291 = vmatpush1.bf16.msra.mxu0 %v3188
    %3292 = vmatprep.subr.bf16.mxu0 0
    %3293 = vmatpush1.bf16.msra.mxu0 %v3189
    %3294 = vmatprep.subr.bf16.mxu0 0
    %3295 = vmatpush1.bf16.msra.mxu0 %v3190
    %3296 = vmatprep.mubr.bf16.mxu0 %v2957
    %3297 = vmatmul.mubr.bf16.gmra.mrb[0].mxu0 %v2956
    %v3298 = vpop.f32.mrb[0].mxu0
    %v3299 = vadd.f32 %v3258, %v3298
    %v3300 = vpop.f32.mrb[0].mxu0
    %v3301 = vpop.f32.mrb[0].mxu0
    %v3302 = vadd.f32 %v3261, %v3301
    %v3303 = vpop.f32.mrb[0].mxu0
    %3304 = vdwg.mxu0
    %v3305 = vadd.f32 %v3299, %v2577
    %v3306 = vadd.f32 %v3302, %v2578
    %s3307 = scalar_lea.vmem %s14, 1
    %v3308 = vld [vmem:[%s3307] sm:$0x1]
    %s3309 = scalar_lea.vmem %s15, 1
    %v3310 = vld [vmem:[%s3309] sm:$0x1]
    %3311 = vadd.xlane.f32.xlu0 %v3305
    %v3312 = vpop.xlane.xlu0 %3311
    %3313 = vadd.xlane.f32.xlu0 %v3306
    %v3314 = vpop.xlane.xlu0 %3313
    %v3315 = vmul.f32 %v3312, %v117
    %v3316 = vmul.f32 %v3314, %v117
    %v3317 = vsub.f32 %v3305, %v3315
    %v3318 = vsub.f32 %v3306, %v3316
    %v3319 = vmul.f32 %v3317, %v3317
    %v3320 = vmul.f32 %v3318, %v3318
    %3321 = vadd.xlane.f32.xlu0 %v3319
    %v3322 = vpop.xlane.xlu0 %3321
    %3323 = vadd.xlane.f32.xlu0 %v3320
    %v3324 = vpop.xlane.xlu0 %3323
    %v3325 = vmul.f32 %v3322, %v117
    %v3326 = vmul.f32 %v3324, %v117
    %v3327 = vadd.f32 %v3325, 1e-12
    %v3328 = vadd.f32 %v3326, 1e-12
    %v3329 = vrsqrt.pop %v3327
    %v3330 = vrsqrt.pop %v3328
    %v3331 = vmul.f32 %v3317, %v3329
    %v3332 = vmul.f32 %v3318, %v3330
    %v3334 = vlaneseq
    %v3335 = vshrl.u32 %v3334, 7
    %v3336 = vsub.s32 0, %v3335
    %v3337 = vrot.slane %v3308, %v3336
    %v3339 = vmul.f32 %v3331, %v3337
    %v3340 = vmul.f32 %v3332, %v3337
    %v3342 = vlaneseq
    %v3343 = vshrl.u32 %v3342, 7
    %v3344 = vsub.s32 0, %v3343
    %v3345 = vrot.slane %v3310, %v3344
    %v3347 = vadd.f32 %v3339, %v3345
    %v3348 = vadd.f32 %v3340, %v3345
    %v3349 = vpack.c.bf16 %v3348, %v3347
    %v3350 = vld [vmem:[%s16] sm:$0xf]
    %v3351 = vld [vmem:[%s16 + $0x4] sm:$0xf]
    %v3352 = vld [vmem:[%s16 + $0x8] sm:$0xf]
    %v3353 = vld [vmem:[%s16 + $0xc] sm:$0xf]
    %v3354 = vld [vmem:[%s16 + $0x10] sm:$0xf]
    %v3355 = vld [vmem:[%s16 + $0x14] sm:$0xf]
    %v3356 = vld [vmem:[%s16 + $0x18] sm:$0xf]
    %v3357 = vld [vmem:[%s16 + $0x1c] sm:$0xf]
    %v3358 = vld [vmem:[%s16 + $0x20] sm:$0xf]
    %v3359 = vld [vmem:[%s16 + $0x24] sm:$0xf]
    %v3360 = vld [vmem:[%s16 + $0x28] sm:$0xf]
    %v3361 = vld [vmem:[%s16 + $0x2c] sm:$0xf]
    %v3362 = vld [vmem:[%s16 + $0x30] sm:$0xf]
    %v3363 = vld [vmem:[%s16 + $0x34] sm:$0xf]
    %v3364 = vld [vmem:[%s16 + $0x38] sm:$0xf]
    %v3365 = vld [vmem:[%s16 + $0x3c] sm:$0xf]
    %v3366 = vld [vmem:[%s17] sm:$0x1]
    %v3368 = vlaneseq
    %v3369 = vshrl.u32 %v3368, 7
    %v3370 = vsub.s32 0, %v3369
    %v3371 = vrot.slane %v3366, %v3370
    %v3389 = vunpack.c.l.b16 %v3350
    %v3390 = vunpack.c.l.b16 %v3351
    %v3391 = vunpack.c.l.b16 %v3352
    %v3392 = vunpack.c.l.b16 %v3353
    %v3393 = vunpack.c.l.b16 %v3354
    %v3394 = vunpack.c.l.b16 %v3355
    %v3395 = vunpack.c.l.b16 %v3356
    %v3396 = vunpack.c.l.b16 %v3357
    %v3397 = vunpack.c.l.b16 %v3358
    %v3398 = vunpack.c.l.b16 %v3359
    %v3399 = vunpack.c.l.b16 %v3360
    %v3400 = vunpack.c.l.b16 %v3361
    %v3401 = vunpack.c.l.b16 %v3362
    %v3402 = vunpack.c.l.b16 %v3363
    %v3403 = vunpack.c.l.b16 %v3364
    %v3404 = vunpack.c.l.b16 %v3365
    %v3405 = vpack.c.b16 %v3390, %v3389
    %v3406 = vpack.c.b16 %v3392, %v3391
    %v3407 = vpack.c.b16 %v3394, %v3393
    %v3408 = vpack.c.b16 %v3396, %v3395
    %v3409 = vpack.c.b16 %v3398, %v3397
    %v3410 = vpack.c.b16 %v3400, %v3399
    %v3411 = vpack.c.b16 %v3402, %v3401
    %v3412 = vpack.c.b16 %v3404, %v3403
    %3421 = vmatprep.subr.bf16.mxu0 0
    %3422 = vmatpush1.bf16.msra.mxu0 %v3405
    %3423 = vmatprep.subr.bf16.mxu0 0
    %3424 = vmatpush1.bf16.msra.mxu0 %v3406
    %3425 = vmatprep.subr.bf16.mxu0 0
    %3426 = vmatpush1.bf16.msra.mxu0 %v3407
    %3427 = vmatprep.subr.bf16.mxu0 0
    %3428 = vmatpush1.bf16.msra.mxu0 %v3408
    %3429 = vmatprep.subr.bf16.mxu0 0
    %3430 = vmatpush1.bf16.msra.mxu0 %v3409
    %3431 = vmatprep.subr.bf16.mxu0 0
    %3432 = vmatpush1.bf16.msra.mxu0 %v3410
    %3433 = vmatprep.subr.bf16.mxu0 0
    %3434 = vmatpush1.bf16.msra.mxu0 %v3411
    %3435 = vmatprep.subr.bf16.mxu0 0
    %3436 = vmatpush1.bf16.msra.mxu0 %v3412
    %3437 = vmatprep.subr.bf16.mxu0 0
    %3438 = vmatpush1.bf16.msra.mxu0 0
    %3439 = vmatprep.subr.bf16.mxu0 0
    %3440 = vmatpush1.bf16.msra.mxu0 0
    %3441 = vmatprep.subr.bf16.mxu0 0
    %3442 = vmatpush1.bf16.msra.mxu0 0
    %3443 = vmatprep.subr.bf16.mxu0 0
    %3444 = vmatpush1.bf16.msra.mxu0 0
    %3445 = vmatprep.subr.bf16.mxu0 0
    %3446 = vmatpush1.bf16.msra.mxu0 0
    %3447 = vmatprep.subr.bf16.mxu0 0
    %3448 = vmatpush1.bf16.msra.mxu0 0
    %3449 = vmatprep.subr.bf16.mxu0 0
    %3450 = vmatpush1.bf16.msra.mxu0 0
    %3451 = vmatprep.subr.bf16.mxu0 0
    %3452 = vmatpush1.bf16.msra.mxu0 0
    %3453 = vmatprep.mubr.bf16.mxu0 0
    %3454 = vmatmul.mubr.bf16.gmra.mrb[0].mxu0 %v3349
    %v3455 = vpop.f32.mrb[0].mxu0
    %v3456 = vadd.f32 %v3371, %v3455
    %v3457 = vpop.f32.mrb[0].mxu0
    %v3458 = vpop.f32.mrb[0].mxu0
    %v3459 = vadd.f32 %v3371, %v3458
    %v3460 = vpop.f32.mrb[0].mxu0
    %3461 = vdwg.mxu0
    %v3462 = vtanh.pop %v3456
    %v3463 = vtanh.pop %v3459
    %v3464 = vld [vmem:[%s18] sm:$0x1]
    %v3466 = vlaneseq
    %v3467 = vshrl.u32 %v3466, 7
    %v3468 = vsub.s32 0, %v3467
    %v3469 = vrot.slane %v3464, %v3468
    %v3471 = vmul.f32 %v3462, %v3469
    %v3472 = vmul.f32 %v3463, %v3469
    %3473 = vadd.xlane.f32.xlu0 %v3471
    %v3474 = vpop.xlane.xlu0 %3473
    %3475 = vadd.xlane.f32.xlu0 %v3472
    %v3476 = vpop.xlane.xlu0 %3475
    %v3477 = vld [vmem:[#allocation2] sm:$0x1]
    %v3479 = vlaneseq
    %v3480 = vshrl.u32 %v3479, 7
    %v3481 = vsub.s32 0, %v3480
    %v3482 = vrot.slane %v3477, %v3481
    %v3484 = vadd.f32 %v3474, %v3482
    %v3485 = vadd.f32 %v3476, %v3482
    %3487 = vset.pattern.permute.xlu0 0
    %3488 = vperm.xlu0 %3487, %v3484
    %v3489 = vpop.permute.xlu0 %3488
    %3492 = vset.pattern.permute.xlu0 0
    %3493 = vperm.xlu0 %3492, %v3485
    %v3494 = vpop.permute.xlu0 %3493
    %3496 = vst [vmem:[%s20] sm:$0xff] %v3489
    %3497 = vst [vmem:[%s20 + $0x8] sm:$0xff] %v3494
    // Predicated region
    $region94: #{bert_forward.1} parent=1 // pred_check
      _
    $region95: #{bert_forward.1} parent=1 // pred_check_branch
      %3499 = sbr.rel (0) target = $region97
    $region96: #{bert_forward.1} parent=1 // pred_region
      _
    $region97: #{bert_forward.1} parent=1 // pred_fallthru
      _
    // Predicated region
    $region98: #{bert_forward.1} parent=1 // pred_check
      _
    $region99: #{bert_forward.1} parent=1 // pred_check_branch
      %3501 = sbr.rel (0) target = $region101
    $region100: #{bert_forward.1} parent=1 // pred_region
      _
    $region101: #{bert_forward.1} parent=1 // pred_fallthru
      _
    %3502 = vsyncpa [#allocation4], 1
    %3503 = vsyncpa [#allocation6], 1

</llo_original>
